<compile_context>
chip_gen: v7x
topology: tpu7x:2x2x1
jax: 0.10.0
libtpu: 0.0.40
codegen_flags: <defaults>
</compile_context>

<pallas_src>
import functools
import math

import jax
import jax.numpy as jnp
import numpy as np
from jax.experimental import pallas as pl
from jax.experimental.pallas import tpu as pltpu


def _decoder_layer_kernel(x_ref, enc_ref, mask_ref,
                          wqkv_s_ref, wo_s_ref, bo_s_ref,
                          wqkv_c_ref, wo_c_ref, bo_c_ref,
                          w1_ref, b1_ref, w2_ref, b2_ref,
                          ln_g_ref, ln_b_ref,
                          o_ref, *, num_heads, eps, compute_dtype):
    H = num_heads
    x = x_ref[0]           # (S, D)
    enc = enc_ref[0]       # (Se, D)
    mask = mask_ref[...]   # (S, S); 1.0 = keep, 0.0 = masked

    def cast(t):
        return t.astype(compute_dtype)

    def layer_norm(y, idx):
        g = ln_g_ref[...][idx:idx + 1, :]   # (1, D)
        b = ln_b_ref[...][idx:idx + 1, :]   # (1, D)
        mu = jnp.mean(y, axis=-1, keepdims=True)
        c = y - mu
        var = jnp.mean(c * c, axis=-1, keepdims=True)
        return c * jax.lax.rsqrt(var + eps) * g + b

    def mha(x_q, x_kv, w_qkv, wo_h, bo, attn_mask):
        # x_q: (Sq, D); x_kv: (Skv, D)
        # w_qkv: (3, H, hd, D)  per-head [out, in] rows; Q part pre-scaled
        # wo_h : (H, D, hd)     output projection split per head
        # bo   : (1, D)
        xq_b = cast(jnp.broadcast_to(x_q, (H,) + x_q.shape))       # (H, Sq, D)
        if x_kv is x_q:            # self-attention: reuse the same broadcast
            xkv_b = xq_b
        else:
            xkv_b = cast(jnp.broadcast_to(x_kv, (H,) + x_kv.shape))
        wq, wk, wv = cast(w_qkv[0]), cast(w_qkv[1]), cast(w_qkv[2])

        # Head-batched projections; contraction over the full model dim D.
        q = jnp.einsum('hsd,hed->hse', xq_b, wq,
                       preferred_element_type=jnp.float32)         # (H, Sq, hd)
        k = jnp.einsum('hsd,hed->hse', xkv_b, wk,
                       preferred_element_type=jnp.float32)         # (H, Skv, hd)
        v = jnp.einsum('hsd,hed->hse', xkv_b, wv,
                       preferred_element_type=jnp.float32)         # (H, Skv, hd)

        # Scores (scale already folded into wq on the host).
        s = jnp.einsum('hqe,hke->hqk', cast(q), cast(k),
                       preferred_element_type=jnp.float32)         # (H, Sq, Skv)
        if attn_mask is not None:
            s = jnp.where(attn_mask[None, :, :] == 0.0, -1e30, s)

        # Numerically stable softmax; divide replaced by pl.reciprocal.
        m = jnp.max(s, axis=-1, keepdims=True)
        p = jnp.exp(s - m)
        l = jnp.sum(p, axis=-1, keepdims=True)
        p = p * pl.reciprocal(l, approx=False)   # approx=True in prod (EUP, ~free)

        ctx = jnp.einsum('hqk,hke->hqe', cast(p), cast(v),
                         preferred_element_type=jnp.float32)       # (H, Sq, hd)

        # Output projection with the head-combine folded in:
        # out = sum_h ctx_h @ Wo_h  — no lane-dim concatenate / transpose.
        out_h = jnp.einsum('hqe,hde->hqd', cast(ctx), cast(wo_h),
                           preferred_element_type=jnp.float32)     # (H, Sq, D)
        return jnp.sum(out_h, axis=0) + bo                         # (Sq, D)

    # --- masked self-attention sublayer (dropout = identity at inference) ---
    attn = mha(x, x, wqkv_s_ref[...], wo_s_ref[...], bo_s_ref[...], mask)
    x1 = layer_norm(x + attn, 0)

    # --- cross-attention sublayer (no mask, matches the module forward) ---
    cross = mha(x1, enc, wqkv_c_ref[...], wo_c_ref[...], bo_c_ref[...], None)
    x2 = layer_norm(x1 + cross, 1)

    # --- feed-forward sublayer: fc2(relu(fc1(x))) ---
    h = jnp.dot(cast(x2), cast(w1_ref[...]),
                preferred_element_type=jnp.float32) + b1_ref[...]
    h = jnp.maximum(h, 0.0)
    ff = jnp.dot(cast(h), cast(w2_ref[...]),
                 preferred_element_type=jnp.float32) + b2_ref[...]
    x3 = layer_norm(x2 + ff, 2)

    o_ref[0] = x3.astype(o_ref.dtype)


def decoder_layer(x, encoder_output, tgt_mask, params, *, num_heads,
                  eps=1e-5, compute_dtype=jnp.float32):
    """x: [B, S, D]; encoder_output: [B, Se, D]; tgt_mask: [S, S] (1=keep, 0=mask)."""
    B, S, D = x.shape
    _, Se, _ = encoder_output.shape
    H = num_heads
    hd = D // H
    scale = 1.0 / math.sqrt(hd)

    # ---- host-side (one-time) weight layout prep: no transposes in-kernel ----
    def qkv_heads(wq, wk, wv):
        # (3, H, hd, D): PyTorch [out, in] rows grouped per head; attention
        # scale folded into the Q projection.
        return jnp.stack([wq * scale, wk, wv], axis=0).reshape(3, H, hd, D)

    def out_heads(wo):
        # (H, D, hd): wo[d_out, h*hd + e] -> [h, d_out, e]
        return wo.reshape(D, H, hd).transpose(1, 0, 2)

    wqkv_s = qkv_heads(params["self_wq"], params["self_wk"], params["self_wv"])
    wo_s = out_heads(params["self_wo"])
    bo_s = params["self_bo"][None, :]
    wqkv_c = qkv_heads(params["cross_wq"], params["cross_wk"], params["cross_wv"])
    wo_c = out_heads(params["cross_wo"])
    bo_c = params["cross_bo"][None, :]
    w1 = params["ff_w1"].T              # (D, d_ff)  pre-transposed to [in, out]
    b1 = params["ff_b1"][None, :]
    w2 = params["ff_w2"].T              # (d_ff, D)
    b2 = params["ff_b2"][None, :]
    ln_g = jnp.stack([params["ln1_g"], params["ln2_g"], params["ln3_g"]], axis=0)
    ln_b = jnp.stack([params["ln1_b"], params["ln2_b"], params["ln3_b"]], axis=0)
    mask = tgt_mask.astype(jnp.float32)
    d_ff = w1.shape[1]

    kernel = functools.partial(_decoder_layer_kernel, num_heads=H, eps=eps,
                               compute_dtype=compute_dtype)

    def full(shape):
        return pl.BlockSpec(shape, lambda b: (0,) * len(shape))

    in_specs = [
        pl.BlockSpec((1, S, D), lambda b: (b, 0, 0)),    # x
        pl.BlockSpec((1, Se, D), lambda b: (b, 0, 0)),   # encoder_output
        full((S, S)),                                    # tgt_mask
        full((3, H, hd, D)), full((H, D, hd)), full((1, D)),          # self-attn
        full((3, H, hd, D)), full((H, D, hd)), full((1, D)),          # cross-attn
        full((D, d_ff)), full((1, d_ff)), full((d_ff, D)), full((1, D)),  # FFN
        full((3, D)), full((3, D)),                      # LayerNorm gamma / beta
    ]

    return pl.pallas_call(
        kernel,
        out_shape=jax.ShapeDtypeStruct((B, S, D), x.dtype),
        grid_spec=pltpu.PrefetchScalarGridSpec(
            num_scalar_prefetch=0,
            grid=(B,),
            in_specs=in_specs,
            out_specs=pl.BlockSpec((1, S, D), lambda b: (b, 0, 0)),
        ),
        compiler_params=pltpu.CompilerParams(
            dimension_semantics=("parallel",),
            vmem_limit_bytes=32 * 1024 * 1024,
        ),
    )(x, encoder_output, mask,
      wqkv_s, wo_s, bo_s,
      wqkv_c, wo_c, bo_c,
      w1, b1, w2, b2,
      ln_g, ln_b)


def _reference(x, encoder_output, tgt_mask, params, *, num_heads, eps=1e-5):
    """Pure-JAX reference matching the PyTorch DecoderLayer (eval mode)."""
    def mha(q, k, v, wq, wk, wv, wo, bo, mask):
        B, Sq, D = q.shape
        H = num_heads
        hd = D // H
        Q, K, V = q @ wq.T, k @ wk.T, v @ wv.T
        split = lambda t: t.reshape(B, -1, H, hd).transpose(0, 2, 1, 3)
        Qh, Kh, Vh = split(Q), split(K), split(V)
        s = jnp.einsum("bhqe,bhke->bhqk", Qh, Kh) / math.sqrt(hd)
        if mask is not None:
            s = jnp.where(mask[None, None, :, :] == 0, -1e30, s)
        w = jax.nn.softmax(s, axis=-1)
        ctx = jnp.einsum("bhqk,bhke->bhqe", w, Vh)
        ctx = ctx.transpose(0, 2, 1, 3).reshape(B, Sq, D)
        return ctx @ wo.T + bo

    def ln(y, g, b):
        mu = y.mean(-1, keepdims=True)
        var = ((y - mu) ** 2).mean(-1, keepdims=True)
        return (y - mu) / jnp.sqrt(var + eps) * g + b

    p = params
    attn = mha(x, x, x, p["self_wq"], p["self_wk"], p["self_wv"],
               p["self_wo"], p["self_bo"], tgt_mask)
    x1 = ln(x + attn, p["ln1_g"], p["ln1_b"])
    cross = mha(x1, encoder_output, encoder_output, p["cross_wq"], p["cross_wk"],
                p["cross_wv"], p["cross_wo"], p["cross_bo"], None)
    x2 = ln(x1 + cross, p["ln2_g"], p["ln2_b"])
    h = jax.nn.relu(x2 @ p["ff_w1"].T + p["ff_b1"])
    ff = h @ p["ff_w2"].T + p["ff_b2"]
    return ln(x2 + ff, p["ln3_g"], p["ln3_b"])


def _init_params(key, d_model, d_ff):
    ks = jax.random.split(key, 20)
    bd = 1.0 / math.sqrt(d_model)
    bf = 1.0 / math.sqrt(d_ff)
    u = lambda k, shape, b: jax.random.uniform(k, shape, jnp.float32, -b, b)
    return {
        "self_wq": u(ks[0], (d_model, d_model), bd),
        "self_wk": u(ks[1], (d_model, d_model), bd),
        "self_wv": u(ks[2], (d_model, d_model), bd),
        "self_wo": u(ks[3], (d_model, d_model), bd),
        "self_bo": u(ks[4], (d_model,), bd),
        "cross_wq": u(ks[5], (d_model, d_model), bd),
        "cross_wk": u(ks[6], (d_model, d_model), bd),
        "cross_wv": u(ks[7], (d_model, d_model), bd),
        "cross_wo": u(ks[8], (d_model, d_model), bd),
        "cross_bo": u(ks[9], (d_model,), bd),
        "ff_w1": u(ks[10], (d_ff, d_model), bd),
        "ff_b1": u(ks[11], (d_ff,), bd),
        "ff_w2": u(ks[12], (d_model, d_ff), bf),
        "ff_b2": u(ks[13], (d_model,), bf),
        "ln1_g": 1.0 + 0.1 * jax.random.normal(ks[14], (d_model,), jnp.float32),
        "ln1_b": 0.1 * jax.random.normal(ks[15], (d_model,), jnp.float32),
        "ln2_g": 1.0 + 0.1 * jax.random.normal(ks[16], (d_model,), jnp.float32),
        "ln2_b": 0.1 * jax.random.normal(ks[17], (d_model,), jnp.float32),
        "ln3_g": 1.0 + 0.1 * jax.random.normal(ks[18], (d_model,), jnp.float32),
        "ln3_b": 0.1 * jax.random.normal(ks[19], (d_model,), jnp.float32),
    }


if __name__ == "__main__":
    B, S, S_enc, d_model, num_heads, d_ff = 2, 8, 16, 32, 4, 64

    root = jax.random.PRNGKey(0)
    kx, kenc, kp = jax.random.split(root, 3)

    x = jax.random.normal(kx, (B, S, d_model), dtype=jnp.float32)
    enc_out = jax.random.normal(kenc, (B, S_enc, d_model), dtype=jnp.float32)
    tgt_mask = jnp.tril(jnp.ones((S, S), dtype=jnp.float32))   # causal mask
    params = _init_params(kp, d_model, d_ff)

    out = decoder_layer(x, enc_out, tgt_mask, params, num_heads=num_heads)
    out = jax.block_until_ready(out)

    ref = _reference(x, enc_out, tgt_mask, params, num_heads=num_heads)
    np.testing.assert_allclose(np.asarray(out), np.asarray(ref),
                               rtol=1e-4, atol=1e-4)

    print("KERNEL_OK")
</pallas_src>

<mosaic_0001>
module attributes {stable_mosaic.version = 11 : i64} {
  func.func @_decoder_layer_kernel(%arg0: i32, %arg1: memref<1x8x32xf32, #tpu.memory_space<vmem>>, %arg2: memref<1x16x32xf32, #tpu.memory_space<vmem>>, %arg3: memref<8x8xf32, #tpu.memory_space<vmem>>, %arg4: memref<3x4x8x32xf32, #tpu.memory_space<vmem>>, %arg5: memref<4x32x8xf32, #tpu.memory_space<vmem>>, %arg6: memref<1x32xf32, #tpu.memory_space<vmem>>, %arg7: memref<3x4x8x32xf32, #tpu.memory_space<vmem>>, %arg8: memref<4x32x8xf32, #tpu.memory_space<vmem>>, %arg9: memref<1x32xf32, #tpu.memory_space<vmem>>, %arg10: memref<32x64xf32, #tpu.memory_space<vmem>>, %arg11: memref<1x64xf32, #tpu.memory_space<vmem>>, %arg12: memref<64x32xf32, #tpu.memory_space<vmem>>, %arg13: memref<1x32xf32, #tpu.memory_space<vmem>>, %arg14: memref<3x32xf32, #tpu.memory_space<vmem>>, %arg15: memref<3x32xf32, #tpu.memory_space<vmem>>, %arg16: memref<1x8x32xf32, #tpu.memory_space<vmem>>) attributes {dimension_semantics = [#tpu.dimension_semantics<parallel>], iteration_bounds = array<i64: 2>, scalar_prefetch = 0 : i64, scratch_operands = 0 : i64, tpu.core_type = #tpu.core_type<tc>, window_params = [{transform_indices = @transform_0, window_bounds = array<i64: 1, 8, 32>}, {transform_indices = @transform_1, window_bounds = array<i64: 1, 16, 32>}, {pipeline_mode = #tpu.pipeline_mode<synchronous>, transform_indices = @transform_2, window_bounds = array<i64: 8, 8>}, {pipeline_mode = #tpu.pipeline_mode<synchronous>, transform_indices = @transform_3, window_bounds = array<i64: 3, 4, 8, 32>}, {pipeline_mode = #tpu.pipeline_mode<synchronous>, transform_indices = @transform_4, window_bounds = array<i64: 4, 32, 8>}, {pipeline_mode = #tpu.pipeline_mode<synchronous>, transform_indices = @transform_5, window_bounds = array<i64: 1, 32>}, {pipeline_mode = #tpu.pipeline_mode<synchronous>, transform_indices = @transform_6, window_bounds = array<i64: 3, 4, 8, 32>}, {pipeline_mode = #tpu.pipeline_mode<synchronous>, transform_indices = @transform_7, window_bounds = array<i64: 4, 32, 8>}, {pipeline_mode = #tpu.pipeline_mode<synchronous>, transform_indices = @transform_8, window_bounds = array<i64: 1, 32>}, {pipeline_mode = #tpu.pipeline_mode<synchronous>, transform_indices = @transform_9, window_bounds = array<i64: 32, 64>}, {pipeline_mode = #tpu.pipeline_mode<synchronous>, transform_indices = @transform_10, window_bounds = array<i64: 1, 64>}, {pipeline_mode = #tpu.pipeline_mode<synchronous>, transform_indices = @transform_11, window_bounds = array<i64: 64, 32>}, {pipeline_mode = #tpu.pipeline_mode<synchronous>, transform_indices = @transform_12, window_bounds = array<i64: 1, 32>}, {pipeline_mode = #tpu.pipeline_mode<synchronous>, transform_indices = @transform_13, window_bounds = array<i64: 3, 32>}, {pipeline_mode = #tpu.pipeline_mode<synchronous>, transform_indices = @transform_14, window_bounds = array<i64: 3, 32>}, {transform_indices = @transform_15, window_bounds = array<i64: 1, 8, 32>}]} {
    %c0 = arith.constant 0 : index
    %c0_0 = arith.constant 0 : index
    %c0_1 = arith.constant 0 : index
    %0 = vector.load %arg1[%c0, %c0_0, %c0_1] : memref<1x8x32xf32, #tpu.memory_space<vmem>>, vector<1x8x32xf32>
    %1 = vector.shape_cast %0 : vector<1x8x32xf32> to vector<8x32xf32>
    %c0_2 = arith.constant 0 : index
    %c0_3 = arith.constant 0 : index
    %c0_4 = arith.constant 0 : index
    %2 = vector.load %arg2[%c0_2, %c0_3, %c0_4] : memref<1x16x32xf32, #tpu.memory_space<vmem>>, vector<1x16x32xf32>
    %3 = vector.shape_cast %2 : vector<1x16x32xf32> to vector<16x32xf32>
    %c0_5 = arith.constant 0 : index
    %c0_6 = arith.constant 0 : index
    %4 = vector.load %arg3[%c0_5, %c0_6] : memref<8x8xf32, #tpu.memory_space<vmem>>, vector<8x8xf32>
    %c0_7 = arith.constant 0 : index
    %c0_8 = arith.constant 0 : index
    %c0_9 = arith.constant 0 : index
    %c0_10 = arith.constant 0 : index
    %5 = vector.load %arg4[%c0_7, %c0_8, %c0_9, %c0_10] : memref<3x4x8x32xf32, #tpu.memory_space<vmem>>, vector<3x4x8x32xf32>
    %c0_11 = arith.constant 0 : index
    %c0_12 = arith.constant 0 : index
    %c0_13 = arith.constant 0 : index
    %6 = vector.load %arg5[%c0_11, %c0_12, %c0_13] : memref<4x32x8xf32, #tpu.memory_space<vmem>>, vector<4x32x8xf32>
    %c0_14 = arith.constant 0 : index
    %c0_15 = arith.constant 0 : index
    %7 = vector.load %arg6[%c0_14, %c0_15] : memref<1x32xf32, #tpu.memory_space<vmem>>, vector<1x32xf32>
    %8 = vector.shape_cast %1 : vector<8x32xf32> to vector<1x8x32xf32>
    %9 = vector.broadcast %8 : vector<1x8x32xf32> to vector<4x8x32xf32>
    %10 = vector.extract_strided_slice %5 {offsets = [0, 0, 0, 0], sizes = [1, 4, 8, 32], strides = [1, 1, 1, 1]} : vector<3x4x8x32xf32> to vector<1x4x8x32xf32>
    %11 = vector.shape_cast %10 : vector<1x4x8x32xf32> to vector<4x8x32xf32>
    %12 = vector.extract_strided_slice %5 {offsets = [1, 0, 0, 0], sizes = [1, 4, 8, 32], strides = [1, 1, 1, 1]} : vector<3x4x8x32xf32> to vector<1x4x8x32xf32>
    %13 = vector.shape_cast %12 : vector<1x4x8x32xf32> to vector<4x8x32xf32>
    %14 = vector.extract_strided_slice %5 {offsets = [2, 0, 0, 0], sizes = [1, 4, 8, 32], strides = [1, 1, 1, 1]} : vector<3x4x8x32xf32> to vector<1x4x8x32xf32>
    %15 = vector.shape_cast %14 : vector<1x4x8x32xf32> to vector<4x8x32xf32>
    "tpu.trace_start"() <{level = 10 : i32, message = "hsd,hed->hse"}> : () -> ()
    %cst = arith.constant dense<0.000000e+00> : vector<4x8x8xf32>
    %16 = tpu.matmul %9, %11, %cst {dimension_numbers = #tpu.dot_dimension_numbers<[2], [2], [1], [1], [0, 0, 0, 1, 1, 1], [0], [0]>} : vector<4x8x32xf32>, vector<4x8x32xf32>, vector<4x8x8xf32> -> vector<4x8x8xf32>
    %cst_16 = arith.constant dense<0.000000e+00> : vector<4x8x8xf32>
    %17 = tpu.matmul %9, %13, %cst_16 {dimension_numbers = #tpu.dot_dimension_numbers<[2], [2], [1], [1], [0, 0, 0, 1, 1, 1], [0], [0]>} : vector<4x8x32xf32>, vector<4x8x32xf32>, vector<4x8x8xf32> -> vector<4x8x8xf32>
    %cst_17 = arith.constant dense<0.000000e+00> : vector<4x8x8xf32>
    %18 = tpu.matmul %9, %15, %cst_17 {dimension_numbers = #tpu.dot_dimension_numbers<[2], [2], [1], [1], [0, 0, 0, 1, 1, 1], [0], [0]>} : vector<4x8x32xf32>, vector<4x8x32xf32>, vector<4x8x8xf32> -> vector<4x8x8xf32>
    "tpu.trace_stop"() : () -> ()
    "tpu.trace_start"() <{level = 10 : i32, message = "hqe,hke->hqk"}> : () -> ()
    %cst_18 = arith.constant dense<0.000000e+00> : vector<4x8x8xf32>
    %19 = tpu.matmul %16, %17, %cst_18 {dimension_numbers = #tpu.dot_dimension_numbers<[2], [2], [1], [1], [0, 0, 0, 1, 1, 1], [0], [0]>} : vector<4x8x8xf32>, vector<4x8x8xf32>, vector<4x8x8xf32> -> vector<4x8x8xf32>
    "tpu.trace_stop"() : () -> ()
    %20 = vector.shape_cast %4 : vector<8x8xf32> to vector<1x8x8xf32>
    %cst_19 = arith.constant 0.000000e+00 : f32
    %21 = vector.broadcast %cst_19 : f32 to vector<1x8x8xf32>
    %22 = arith.cmpf oeq, %20, %21 : vector<1x8x8xf32>
    %cst_20 = arith.constant -1.000000e+30 : f32
    %23 = vector.shape_cast %22 : vector<1x8x8xi1> to vector<1x8x8xi1>
    %24 = vector.broadcast %23 : vector<1x8x8xi1> to vector<4x8x8xi1>
    %25 = vector.broadcast %cst_20 : f32 to vector<4x8x8xf32>
    %26 = arith.select %24, %25, %19 : vector<4x8x8xi1>, vector<4x8x8xf32>
    %cst_21 = arith.constant dense<0xFF800000> : vector<4x8xf32>
    %27 = vector.multi_reduction <maximumf>, %26, %cst_21 [2] : vector<4x8x8xf32> to vector<4x8xf32>
    %28 = vector.shape_cast %27 : vector<4x8xf32> to vector<4x8x1xf32>
    %29 = vector.broadcast %28 : vector<4x8x1xf32> to vector<4x8x8xf32>
    %30 = arith.subf %26, %29 : vector<4x8x8xf32>
    %31 = math.exp %30 : vector<4x8x8xf32>
    %cst_22 = arith.constant dense<0.000000e+00> : vector<4x8xf32>
    %32 = vector.multi_reduction <add>, %31, %cst_22 [2] : vector<4x8x8xf32> to vector<4x8xf32>
    %33 = vector.shape_cast %32 : vector<4x8xf32> to vector<4x8x1xf32>
    %34 = tpu.reciprocal %33 : vector<4x8x1xf32> -> vector<4x8x1xf32>
    %35 = vector.broadcast %34 : vector<4x8x1xf32> to vector<4x8x8xf32>
    %36 = arith.mulf %31, %35 : vector<4x8x8xf32>
    "tpu.trace_start"() <{level = 10 : i32, message = "hqk,hke->hqe"}> : () -> ()
    %cst_23 = arith.constant dense<0.000000e+00> : vector<4x8x8xf32>
    %37 = tpu.matmul %36, %18, %cst_23 {dimension_numbers = #tpu.dot_dimension_numbers<[2], [1], [1], [2], [0, 0, 0, 1, 1, 2], [0], [0]>} : vector<4x8x8xf32>, vector<4x8x8xf32>, vector<4x8x8xf32> -> vector<4x8x8xf32>
    "tpu.trace_stop"() : () -> ()
    "tpu.trace_start"() <{level = 10 : i32, message = "hqe,hde->hqd"}> : () -> ()
    %cst_24 = arith.constant dense<0.000000e+00> : vector<4x8x32xf32>
    %38 = tpu.matmul %37, %6, %cst_24 {dimension_numbers = #tpu.dot_dimension_numbers<[2], [2], [1], [1], [0, 0, 0, 1, 1, 1], [0], [0]>} : vector<4x8x8xf32>, vector<4x32x8xf32>, vector<4x8x32xf32> -> vector<4x8x32xf32>
    "tpu.trace_stop"() : () -> ()
    %cst_25 = arith.constant dense<0.000000e+00> : vector<8x32xf32>
    %39 = vector.multi_reduction <add>, %38, %cst_25 [0] : vector<4x8x32xf32> to vector<8x32xf32>
    %40 = vector.broadcast %7 : vector<1x32xf32> to vector<8x32xf32>
    %41 = arith.addf %39, %40 : vector<8x32xf32>
    %42 = arith.addf %1, %41 : vector<8x32xf32>
    %c0_26 = arith.constant 0 : index
    %c0_27 = arith.constant 0 : index
    %43 = vector.load %arg14[%c0_26, %c0_27] : memref<3x32xf32, #tpu.memory_space<vmem>>, vector<3x32xf32>
    %44 = vector.extract_strided_slice %43 {offsets = [0, 0], sizes = [1, 32], strides = [1, 1]} : vector<3x32xf32> to vector<1x32xf32>
    %c0_28 = arith.constant 0 : index
    %c0_29 = arith.constant 0 : index
    %45 = vector.load %arg15[%c0_28, %c0_29] : memref<3x32xf32, #tpu.memory_space<vmem>>, vector<3x32xf32>
    %46 = vector.extract_strided_slice %45 {offsets = [0, 0], sizes = [1, 32], strides = [1, 1]} : vector<3x32xf32> to vector<1x32xf32>
    %cst_30 = arith.constant dense<0.000000e+00> : vector<8xf32>
    %47 = vector.multi_reduction <add>, %42, %cst_30 [1] : vector<8x32xf32> to vector<8xf32>
    %48 = vector.shape_cast %47 : vector<8xf32> to vector<8x1xf32>
    %cst_31 = arith.constant 3.200000e+01 : f32
    %49 = vector.broadcast %cst_31 : f32 to vector<8x1xf32>
    %50 = arith.divf %48, %49 : vector<8x1xf32>
    %51 = vector.broadcast %50 : vector<8x1xf32> to vector<8x32xf32>
    %52 = arith.subf %42, %51 : vector<8x32xf32>
    %53 = arith.mulf %52, %52 : vector<8x32xf32>
    %cst_32 = arith.constant dense<0.000000e+00> : vector<8xf32>
    %54 = vector.multi_reduction <add>, %53, %cst_32 [1] : vector<8x32xf32> to vector<8xf32>
    %55 = vector.shape_cast %54 : vector<8xf32> to vector<8x1xf32>
    %cst_33 = arith.constant 3.200000e+01 : f32
    %56 = vector.broadcast %cst_33 : f32 to vector<8x1xf32>
    %57 = arith.divf %55, %56 : vector<8x1xf32>
    %cst_34 = arith.constant 9.99999974E-6 : f32
    %58 = vector.broadcast %cst_34 : f32 to vector<8x1xf32>
    %59 = arith.addf %57, %58 : vector<8x1xf32>
    %60 = math.rsqrt %59 : vector<8x1xf32>
    %61 = vector.broadcast %60 : vector<8x1xf32> to vector<8x32xf32>
    %62 = arith.mulf %52, %61 : vector<8x32xf32>
    %63 = vector.broadcast %44 : vector<1x32xf32> to vector<8x32xf32>
    %64 = arith.mulf %62, %63 : vector<8x32xf32>
    %65 = vector.broadcast %46 : vector<1x32xf32> to vector<8x32xf32>
    %66 = arith.addf %64, %65 : vector<8x32xf32>
    %c0_35 = arith.constant 0 : index
    %c0_36 = arith.constant 0 : index
    %c0_37 = arith.constant 0 : index
    %c0_38 = arith.constant 0 : index
    %67 = vector.load %arg7[%c0_35, %c0_36, %c0_37, %c0_38] : memref<3x4x8x32xf32, #tpu.memory_space<vmem>>, vector<3x4x8x32xf32>
    %c0_39 = arith.constant 0 : index
    %c0_40 = arith.constant 0 : index
    %c0_41 = arith.constant 0 : index
    %68 = vector.load %arg8[%c0_39, %c0_40, %c0_41] : memref<4x32x8xf32, #tpu.memory_space<vmem>>, vector<4x32x8xf32>
    %c0_42 = arith.constant 0 : index
    %c0_43 = arith.constant 0 : index
    %69 = vector.load %arg9[%c0_42, %c0_43] : memref<1x32xf32, #tpu.memory_space<vmem>>, vector<1x32xf32>
    %70 = vector.shape_cast %66 : vector<8x32xf32> to vector<1x8x32xf32>
    %71 = vector.broadcast %70 : vector<1x8x32xf32> to vector<4x8x32xf32>
    %72 = vector.shape_cast %3 : vector<16x32xf32> to vector<1x16x32xf32>
    %73 = vector.broadcast %72 : vector<1x16x32xf32> to vector<4x16x32xf32>
    %74 = vector.extract_strided_slice %67 {offsets = [0, 0, 0, 0], sizes = [1, 4, 8, 32], strides = [1, 1, 1, 1]} : vector<3x4x8x32xf32> to vector<1x4x8x32xf32>
    %75 = vector.shape_cast %74 : vector<1x4x8x32xf32> to vector<4x8x32xf32>
    %76 = vector.extract_strided_slice %67 {offsets = [1, 0, 0, 0], sizes = [1, 4, 8, 32], strides = [1, 1, 1, 1]} : vector<3x4x8x32xf32> to vector<1x4x8x32xf32>
    %77 = vector.shape_cast %76 : vector<1x4x8x32xf32> to vector<4x8x32xf32>
    %78 = vector.extract_strided_slice %67 {offsets = [2, 0, 0, 0], sizes = [1, 4, 8, 32], strides = [1, 1, 1, 1]} : vector<3x4x8x32xf32> to vector<1x4x8x32xf32>
    %79 = vector.shape_cast %78 : vector<1x4x8x32xf32> to vector<4x8x32xf32>
    "tpu.trace_start"() <{level = 10 : i32, message = "hsd,hed->hse"}> : () -> ()
    %cst_44 = arith.constant dense<0.000000e+00> : vector<4x8x8xf32>
    %80 = tpu.matmul %71, %75, %cst_44 {dimension_numbers = #tpu.dot_dimension_numbers<[2], [2], [1], [1], [0, 0, 0, 1, 1, 1], [0], [0]>} : vector<4x8x32xf32>, vector<4x8x32xf32>, vector<4x8x8xf32> -> vector<4x8x8xf32>
    %cst_45 = arith.constant dense<0.000000e+00> : vector<4x16x8xf32>
    %81 = tpu.matmul %73, %77, %cst_45 {dimension_numbers = #tpu.dot_dimension_numbers<[2], [2], [1], [1], [0, 0, 0, 1, 1, 1], [0], [0]>} : vector<4x16x32xf32>, vector<4x8x32xf32>, vector<4x16x8xf32> -> vector<4x16x8xf32>
    %cst_46 = arith.constant dense<0.000000e+00> : vector<4x16x8xf32>
    %82 = tpu.matmul %73, %79, %cst_46 {dimension_numbers = #tpu.dot_dimension_numbers<[2], [2], [1], [1], [0, 0, 0, 1, 1, 1], [0], [0]>} : vector<4x16x32xf32>, vector<4x8x32xf32>, vector<4x16x8xf32> -> vector<4x16x8xf32>
    "tpu.trace_stop"() : () -> ()
    "tpu.trace_start"() <{level = 10 : i32, message = "hqe,hke->hqk"}> : () -> ()
    %cst_47 = arith.constant dense<0.000000e+00> : vector<4x8x16xf32>
    %83 = tpu.matmul %80, %81, %cst_47 {dimension_numbers = #tpu.dot_dimension_numbers<[2], [2], [1], [1], [0, 0, 0, 1, 1, 1], [0], [0]>} : vector<4x8x8xf32>, vector<4x16x8xf32>, vector<4x8x16xf32> -> vector<4x8x16xf32>
    "tpu.trace_stop"() : () -> ()
    %cst_48 = arith.constant dense<0xFF800000> : vector<4x8xf32>
    %84 = vector.multi_reduction <maximumf>, %83, %cst_48 [2] : vector<4x8x16xf32> to vector<4x8xf32>
    %85 = vector.shape_cast %84 : vector<4x8xf32> to vector<4x8x1xf32>
    %86 = vector.broadcast %85 : vector<4x8x1xf32> to vector<4x8x16xf32>
    %87 = arith.subf %83, %86 : vector<4x8x16xf32>
    %88 = math.exp %87 : vector<4x8x16xf32>
    %cst_49 = arith.constant dense<0.000000e+00> : vector<4x8xf32>
    %89 = vector.multi_reduction <add>, %88, %cst_49 [2] : vector<4x8x16xf32> to vector<4x8xf32>
    %90 = vector.shape_cast %89 : vector<4x8xf32> to vector<4x8x1xf32>
    %91 = tpu.reciprocal %90 : vector<4x8x1xf32> -> vector<4x8x1xf32>
    %92 = vector.broadcast %91 : vector<4x8x1xf32> to vector<4x8x16xf32>
    %93 = arith.mulf %88, %92 : vector<4x8x16xf32>
    "tpu.trace_start"() <{level = 10 : i32, message = "hqk,hke->hqe"}> : () -> ()
    %cst_50 = arith.constant dense<0.000000e+00> : vector<4x8x8xf32>
    %94 = tpu.matmul %93, %82, %cst_50 {dimension_numbers = #tpu.dot_dimension_numbers<[2], [1], [1], [2], [0, 0, 0, 1, 1, 2], [0], [0]>} : vector<4x8x16xf32>, vector<4x16x8xf32>, vector<4x8x8xf32> -> vector<4x8x8xf32>
    "tpu.trace_stop"() : () -> ()
    "tpu.trace_start"() <{level = 10 : i32, message = "hqe,hde->hqd"}> : () -> ()
    %cst_51 = arith.constant dense<0.000000e+00> : vector<4x8x32xf32>
    %95 = tpu.matmul %94, %68, %cst_51 {dimension_numbers = #tpu.dot_dimension_numbers<[2], [2], [1], [1], [0, 0, 0, 1, 1, 1], [0], [0]>} : vector<4x8x8xf32>, vector<4x32x8xf32>, vector<4x8x32xf32> -> vector<4x8x32xf32>
    "tpu.trace_stop"() : () -> ()
    %cst_52 = arith.constant dense<0.000000e+00> : vector<8x32xf32>
    %96 = vector.multi_reduction <add>, %95, %cst_52 [0] : vector<4x8x32xf32> to vector<8x32xf32>
    %97 = vector.broadcast %69 : vector<1x32xf32> to vector<8x32xf32>
    %98 = arith.addf %96, %97 : vector<8x32xf32>
    %99 = arith.addf %66, %98 : vector<8x32xf32>
    %c0_53 = arith.constant 0 : index
    %c0_54 = arith.constant 0 : index
    %100 = vector.load %arg14[%c0_53, %c0_54] : memref<3x32xf32, #tpu.memory_space<vmem>>, vector<3x32xf32>
    %101 = vector.extract_strided_slice %100 {offsets = [1, 0], sizes = [1, 32], strides = [1, 1]} : vector<3x32xf32> to vector<1x32xf32>
    %c0_55 = arith.constant 0 : index
    %c0_56 = arith.constant 0 : index
    %102 = vector.load %arg15[%c0_55, %c0_56] : memref<3x32xf32, #tpu.memory_space<vmem>>, vector<3x32xf32>
    %103 = vector.extract_strided_slice %102 {offsets = [1, 0], sizes = [1, 32], strides = [1, 1]} : vector<3x32xf32> to vector<1x32xf32>
    %cst_57 = arith.constant dense<0.000000e+00> : vector<8xf32>
    %104 = vector.multi_reduction <add>, %99, %cst_57 [1] : vector<8x32xf32> to vector<8xf32>
    %105 = vector.shape_cast %104 : vector<8xf32> to vector<8x1xf32>
    %cst_58 = arith.constant 3.200000e+01 : f32
    %106 = vector.broadcast %cst_58 : f32 to vector<8x1xf32>
    %107 = arith.divf %105, %106 : vector<8x1xf32>
    %108 = vector.broadcast %107 : vector<8x1xf32> to vector<8x32xf32>
    %109 = arith.subf %99, %108 : vector<8x32xf32>
    %110 = arith.mulf %109, %109 : vector<8x32xf32>
    %cst_59 = arith.constant dense<0.000000e+00> : vector<8xf32>
    %111 = vector.multi_reduction <add>, %110, %cst_59 [1] : vector<8x32xf32> to vector<8xf32>
    %112 = vector.shape_cast %111 : vector<8xf32> to vector<8x1xf32>
    %cst_60 = arith.constant 3.200000e+01 : f32
    %113 = vector.broadcast %cst_60 : f32 to vector<8x1xf32>
    %114 = arith.divf %112, %113 : vector<8x1xf32>
    %cst_61 = arith.constant 9.99999974E-6 : f32
    %115 = vector.broadcast %cst_61 : f32 to vector<8x1xf32>
    %116 = arith.addf %114, %115 : vector<8x1xf32>
    %117 = math.rsqrt %116 : vector<8x1xf32>
    %118 = vector.broadcast %117 : vector<8x1xf32> to vector<8x32xf32>
    %119 = arith.mulf %109, %118 : vector<8x32xf32>
    %120 = vector.broadcast %101 : vector<1x32xf32> to vector<8x32xf32>
    %121 = arith.mulf %119, %120 : vector<8x32xf32>
    %122 = vector.broadcast %103 : vector<1x32xf32> to vector<8x32xf32>
    %123 = arith.addf %121, %122 : vector<8x32xf32>
    %c0_62 = arith.constant 0 : index
    %c0_63 = arith.constant 0 : index
    %124 = vector.load %arg10[%c0_62, %c0_63] : memref<32x64xf32, #tpu.memory_space<vmem>>, vector<32x64xf32>
    %cst_64 = arith.constant dense<0.000000e+00> : vector<8x64xf32>
    %125 = tpu.matmul %123, %124, %cst_64 {dimension_numbers = #tpu.dot_dimension_numbers<[1], [0], [0], [1], [0, 0, 1, 1], [], []>} : vector<8x32xf32>, vector<32x64xf32>, vector<8x64xf32> -> vector<8x64xf32>
    %c0_65 = arith.constant 0 : index
    %c0_66 = arith.constant 0 : index
    %126 = vector.load %arg11[%c0_65, %c0_66] : memref<1x64xf32, #tpu.memory_space<vmem>>, vector<1x64xf32>
    %127 = vector.broadcast %126 : vector<1x64xf32> to vector<8x64xf32>
    %128 = arith.addf %125, %127 : vector<8x64xf32>
    %cst_67 = arith.constant 0.000000e+00 : f32
    %129 = vector.broadcast %cst_67 : f32 to vector<8x64xf32>
    %130 = arith.maximumf %128, %129 : vector<8x64xf32>
    %c0_68 = arith.constant 0 : index
    %c0_69 = arith.constant 0 : index
    %131 = vector.load %arg12[%c0_68, %c0_69] : memref<64x32xf32, #tpu.memory_space<vmem>>, vector<64x32xf32>
    %cst_70 = arith.constant dense<0.000000e+00> : vector<8x32xf32>
    %132 = tpu.matmul %130, %131, %cst_70 {dimension_numbers = #tpu.dot_dimension_numbers<[1], [0], [0], [1], [0, 0, 1, 1], [], []>} : vector<8x64xf32>, vector<64x32xf32>, vector<8x32xf32> -> vector<8x32xf32>
    %c0_71 = arith.constant 0 : index
    %c0_72 = arith.constant 0 : index
    %133 = vector.load %arg13[%c0_71, %c0_72] : memref<1x32xf32, #tpu.memory_space<vmem>>, vector<1x32xf32>
    %134 = vector.broadcast %133 : vector<1x32xf32> to vector<8x32xf32>
    %135 = arith.addf %132, %134 : vector<8x32xf32>
    %136 = arith.addf %123, %135 : vector<8x32xf32>
    %c0_73 = arith.constant 0 : index
    %c0_74 = arith.constant 0 : index
    %137 = vector.load %arg14[%c0_73, %c0_74] : memref<3x32xf32, #tpu.memory_space<vmem>>, vector<3x32xf32>
    %138 = vector.extract_strided_slice %137 {offsets = [2, 0], sizes = [1, 32], strides = [1, 1]} : vector<3x32xf32> to vector<1x32xf32>
    %c0_75 = arith.constant 0 : index
    %c0_76 = arith.constant 0 : index
    %139 = vector.load %arg15[%c0_75, %c0_76] : memref<3x32xf32, #tpu.memory_space<vmem>>, vector<3x32xf32>
    %140 = vector.extract_strided_slice %139 {offsets = [2, 0], sizes = [1, 32], strides = [1, 1]} : vector<3x32xf32> to vector<1x32xf32>
    %cst_77 = arith.constant dense<0.000000e+00> : vector<8xf32>
    %141 = vector.multi_reduction <add>, %136, %cst_77 [1] : vector<8x32xf32> to vector<8xf32>
    %142 = vector.shape_cast %141 : vector<8xf32> to vector<8x1xf32>
    %cst_78 = arith.constant 3.200000e+01 : f32
    %143 = vector.broadcast %cst_78 : f32 to vector<8x1xf32>
    %144 = arith.divf %142, %143 : vector<8x1xf32>
    %145 = vector.broadcast %144 : vector<8x1xf32> to vector<8x32xf32>
    %146 = arith.subf %136, %145 : vector<8x32xf32>
    %147 = arith.mulf %146, %146 : vector<8x32xf32>
    %cst_79 = arith.constant dense<0.000000e+00> : vector<8xf32>
    %148 = vector.multi_reduction <add>, %147, %cst_79 [1] : vector<8x32xf32> to vector<8xf32>
    %149 = vector.shape_cast %148 : vector<8xf32> to vector<8x1xf32>
    %cst_80 = arith.constant 3.200000e+01 : f32
    %150 = vector.broadcast %cst_80 : f32 to vector<8x1xf32>
    %151 = arith.divf %149, %150 : vector<8x1xf32>
    %cst_81 = arith.constant 9.99999974E-6 : f32
    %152 = vector.broadcast %cst_81 : f32 to vector<8x1xf32>
    %153 = arith.addf %151, %152 : vector<8x1xf32>
    %154 = math.rsqrt %153 : vector<8x1xf32>
    %155 = vector.broadcast %154 : vector<8x1xf32> to vector<8x32xf32>
    %156 = arith.mulf %146, %155 : vector<8x32xf32>
    %157 = vector.broadcast %138 : vector<1x32xf32> to vector<8x32xf32>
    %158 = arith.mulf %156, %157 : vector<8x32xf32>
    %159 = vector.broadcast %140 : vector<1x32xf32> to vector<8x32xf32>
    %160 = arith.addf %158, %159 : vector<8x32xf32>
    %c0_82 = arith.constant 0 : index
    %c0_83 = arith.constant 0 : index
    %c0_84 = arith.constant 0 : index
    %161 = vector.load %arg16[%c0_82, %c0_83, %c0_84] : memref<1x8x32xf32, #tpu.memory_space<vmem>>, vector<1x8x32xf32>
    %162 = vector.shape_cast %161 : vector<1x8x32xf32> to vector<8x32xf32>
    %163 = vector.shape_cast %160 : vector<8x32xf32> to vector<1x8x32xf32>
    tpu.vector_store %arg16[%c0_82, %c0_83, %c0_84], %163 {strides = array<i32>} : memref<1x8x32xf32, #tpu.memory_space<vmem>>, vector<1x8x32xf32>,
    return
  }
  func.func @transform_0(%arg0: i32) -> (i32, i32, i32) {
    %c0_i32 = arith.constant 0 : i32
    %c0_i32_0 = arith.constant 0 : i32
    %c0_i32_1 = arith.constant 0 : i32
    return %arg0, %c0_i32, %c0_i32_0 : i32, i32, i32
  }
  func.func @transform_1(%arg0: i32) -> (i32, i32, i32) {
    %c0_i32 = arith.constant 0 : i32
    %c0_i32_0 = arith.constant 0 : i32
    %c0_i32_1 = arith.constant 0 : i32
    return %arg0, %c0_i32, %c0_i32_0 : i32, i32, i32
  }
  func.func @transform_2(%arg0: i32) -> (i32, i32) {
    %c0_i32 = arith.constant 0 : i32
    %c0_i32_0 = arith.constant 0 : i32
    %c0_i32_1 = arith.constant 0 : i32
    return %c0_i32, %c0_i32_0 : i32, i32
  }
  func.func @transform_3(%arg0: i32) -> (i32, i32, i32, i32) {
    %c0_i32 = arith.constant 0 : i32
    %c0_i32_0 = arith.constant 0 : i32
    %c0_i32_1 = arith.constant 0 : i32
    %c0_i32_2 = arith.constant 0 : i32
    %c0_i32_3 = arith.constant 0 : i32
    return %c0_i32, %c0_i32_0, %c0_i32_1, %c0_i32_2 : i32, i32, i32, i32
  }
  func.func @transform_4(%arg0: i32) -> (i32, i32, i32) {
    %c0_i32 = arith.constant 0 : i32
    %c0_i32_0 = arith.constant 0 : i32
    %c0_i32_1 = arith.constant 0 : i32
    %c0_i32_2 = arith.constant 0 : i32
    return %c0_i32, %c0_i32_0, %c0_i32_1 : i32, i32, i32
  }
  func.func @transform_5(%arg0: i32) -> (i32, i32) {
    %c0_i32 = arith.constant 0 : i32
    %c0_i32_0 = arith.constant 0 : i32
    %c0_i32_1 = arith.constant 0 : i32
    return %c0_i32, %c0_i32_0 : i32, i32
  }
  func.func @transform_6(%arg0: i32) -> (i32, i32, i32, i32) {
    %c0_i32 = arith.constant 0 : i32
    %c0_i32_0 = arith.constant 0 : i32
    %c0_i32_1 = arith.constant 0 : i32
    %c0_i32_2 = arith.constant 0 : i32
    %c0_i32_3 = arith.constant 0 : i32
    return %c0_i32, %c0_i32_0, %c0_i32_1, %c0_i32_2 : i32, i32, i32, i32
  }
  func.func @transform_7(%arg0: i32) -> (i32, i32, i32) {
    %c0_i32 = arith.constant 0 : i32
    %c0_i32_0 = arith.constant 0 : i32
    %c0_i32_1 = arith.constant 0 : i32
    %c0_i32_2 = arith.constant 0 : i32
    return %c0_i32, %c0_i32_0, %c0_i32_1 : i32, i32, i32
  }
  func.func @transform_8(%arg0: i32) -> (i32, i32) {
    %c0_i32 = arith.constant 0 : i32
    %c0_i32_0 = arith.constant 0 : i32
    %c0_i32_1 = arith.constant 0 : i32
    return %c0_i32, %c0_i32_0 : i32, i32
  }
  func.func @transform_9(%arg0: i32) -> (i32, i32) {
    %c0_i32 = arith.constant 0 : i32
    %c0_i32_0 = arith.constant 0 : i32
    %c0_i32_1 = arith.constant 0 : i32
    return %c0_i32, %c0_i32_0 : i32, i32
  }
  func.func @transform_10(%arg0: i32) -> (i32, i32) {
    %c0_i32 = arith.constant 0 : i32
    %c0_i32_0 = arith.constant 0 : i32
    %c0_i32_1 = arith.constant 0 : i32
    return %c0_i32, %c0_i32_0 : i32, i32
  }
  func.func @transform_11(%arg0: i32) -> (i32, i32) {
    %c0_i32 = arith.constant 0 : i32
    %c0_i32_0 = arith.constant 0 : i32
    %c0_i32_1 = arith.constant 0 : i32
    return %c0_i32, %c0_i32_0 : i32, i32
  }
  func.func @transform_12(%arg0: i32) -> (i32, i32) {
    %c0_i32 = arith.constant 0 : i32
    %c0_i32_0 = arith.constant 0 : i32
    %c0_i32_1 = arith.constant 0 : i32
    return %c0_i32, %c0_i32_0 : i32, i32
  }
  func.func @transform_13(%arg0: i32) -> (i32, i32) {
    %c0_i32 = arith.constant 0 : i32
    %c0_i32_0 = arith.constant 0 : i32
    %c0_i32_1 = arith.constant 0 : i32
    return %c0_i32, %c0_i32_0 : i32, i32
  }
  func.func @transform_14(%arg0: i32) -> (i32, i32) {
    %c0_i32 = arith.constant 0 : i32
    %c0_i32_0 = arith.constant 0 : i32
    %c0_i32_1 = arith.constant 0 : i32
    return %c0_i32, %c0_i32_0 : i32, i32
  }
  func.func @transform_15(%arg0: i32) -> (i32, i32, i32) {
    %c0_i32 = arith.constant 0 : i32
    %c0_i32_0 = arith.constant 0 : i32
    %c0_i32_1 = arith.constant 0 : i32
    return %arg0, %c0_i32, %c0_i32_0 : i32, i32, i32
  }
}

</mosaic_0001>

<llo_original>
// kernel: tpu_custom_call.1
$region0: #{tpu_custom_call.1}
  #allocation0 [shape = 'u32[]', space=smem, size = 0x4, offset = 0x4, fixed_abs, tag = 'smem constant byte address 0x4 - core index']
  #allocation1 [shape = 'u32[144,128]{1,0:T(1,128)}', space=vmem, size = 0x12000, scoped, tag = 'internal scratch']
  %s0 = inlined_call_operand.vmem [shape: f32[2,8,32], index: 0, kind: input, shape index: {}]
  %s1 = inlined_call_operand.vmem [shape: f32[2,16,32], index: 1, kind: input, shape index: {}]
  %s2 = inlined_call_operand.vmem [shape: f32[8,8], index: 2, kind: input, shape index: {}]
  %s3 = inlined_call_operand.vmem [shape: f32[3,4,8,32], index: 3, kind: input, shape index: {}]
  %s4 = inlined_call_operand.vmem [shape: f32[4,32,8], index: 4, kind: input, shape index: {}]
  %s5 = inlined_call_operand.vmem [shape: f32[1,32], index: 5, kind: input, shape index: {}]
  %s6 = inlined_call_operand.vmem [shape: f32[3,4,8,32], index: 6, kind: input, shape index: {}]
  %s7 = inlined_call_operand.vmem [shape: f32[4,32,8], index: 7, kind: input, shape index: {}]
  %s8 = inlined_call_operand.vmem [shape: f32[1,32], index: 8, kind: input, shape index: {}]
  %s9 = inlined_call_operand.vmem [shape: f32[32,64], index: 9, kind: input, shape index: {}]
  %s10 = inlined_call_operand.vmem [shape: f32[1,64], index: 10, kind: input, shape index: {}]
  %s11 = inlined_call_operand.vmem [shape: f32[64,32], index: 11, kind: input, shape index: {}]
  %s12 = inlined_call_operand.vmem [shape: f32[1,32], index: 12, kind: input, shape index: {}]
  %s13 = inlined_call_operand.vmem [shape: f32[3,32], index: 13, kind: input, shape index: {}]
  %s14 = inlined_call_operand.vmem [shape: f32[3,32], index: 14, kind: input, shape index: {}]
  %s15 = inlined_call_operand.hbm [shape: f32[2,8,32], index: 15, kind: output, shape index: {}]
  %s16 = sld [smem:[#allocation0]]
  $region93: #{tpu_custom_call.1} parent=0
    _
  %s18 = ssub.s32 1, %s16
  %s19 = scalar_select 0, %s18, %s16
  $region1: #{tpu_custom_call.1} parent=0
    #allocation2 [shape = 'u8[8192]{0}', space=vmem, size = 0x2000, scoped, tag = 'output window, operand 0']
    #allocation3 [shape = 's32[2]{0}', space=sflag, size = 0x8, scoped, tag = 'scoped memory for tpu_custom_call.1']
    %20 = vsyncpa [#allocation3], 0
    %s21 = scalar_lea.sflag [#allocation3], 1
    %22 = vsyncpa %s21, 0
    loop: start=0, step=1, limit=4
    $region2: #{tpu_custom_call.1} parent=1 // loop_pre_header
      _
    $region3: #{tpu_custom_call.1} parent=1 // loop_header
      %s24 = sphi 0, %s28
      %p25 = scmp.ge.s32.totalorder %s24, 4
      %s34 = sphi 0, %s36
      %s37 = sphi 0, %s34
      %s38 = sphi 0, %s37
      %s54 = sphi 0, %s38
      %s60 = sphi 0, %s62
      %s63 = sphi 0, %s60
      %s64 = sphi 0, %s63
      %s80 = sphi 0, %s64
      %s84 = sphi 0, %s84
      %s86 = sphi 0, %s84
      %s87 = sphi 0, %s86
      %s101 = sphi 0, %s87
      %s105 = sphi 0, %s105
      %s107 = sphi 0, %s105
      %s108 = sphi 0, %s107
      %s122 = sphi 0, %s108
      %s126 = sphi 0, %s126
      %s128 = sphi 0, %s126
      %s129 = sphi 0, %s128
      %s143 = sphi 0, %s129
      %s147 = sphi 0, %s147
      %s149 = sphi 0, %s147
      %s150 = sphi 0, %s149
      %s164 = sphi 0, %s150
      %s168 = sphi 0, %s168
      %s170 = sphi 0, %s168
      %s171 = sphi 0, %s170
      %s185 = sphi 0, %s171
      %s189 = sphi 0, %s189
      %s191 = sphi 0, %s189
      %s192 = sphi 0, %s191
      %s206 = sphi 0, %s192
      %s210 = sphi 0, %s210
      %s212 = sphi 0, %s210
      %s213 = sphi 0, %s212
      %s227 = sphi 0, %s213
      %s231 = sphi 0, %s231
      %s233 = sphi 0, %s231
      %s234 = sphi 0, %s233
      %s248 = sphi 0, %s234
      %s252 = sphi 0, %s252
      %s254 = sphi 0, %s252
      %s255 = sphi 0, %s254
      %s269 = sphi 0, %s255
      %s273 = sphi 0, %s273
      %s275 = sphi 0, %s273
      %s276 = sphi 0, %s275
      %s290 = sphi 0, %s276
      %s294 = sphi 0, %s294
      %s296 = sphi 0, %s294
      %s297 = sphi 0, %s296
      %s311 = sphi 0, %s297
      %s315 = sphi 0, %s315
      %s317 = sphi 0, %s315
      %s318 = sphi 0, %s317
      %s332 = sphi 0, %s318
      %s336 = sphi 0, %s336
      %s338 = sphi 0, %s336
      %s339 = sphi 0, %s338
      %s353 = sphi 0, %s339
      %s359 = sphi 0, %s361
      %s362 = sphi 0, %s359
      %s363 = sphi 0, %s362
      %s379 = sphi 0, %s363
    $region4: #{tpu_custom_call.1} parent=1 // loop_header_branch
      %27 = sbr.rel (%p25) target = $region8
    $region5: #{tpu_custom_call.1} parent=1 // loop_body
      %s29 = ssub.s32 %s24, 1
      %s30 = ssub.s32 %s24, 2
      %s31 = sadd.s32 %s24, 1
      %s32 = ssub.s32 %s24, %s31
      %p33 = scmp.eq.s32.totalorder %s32, 0
      %s35 = sadd.s32 %s34, 1
      %s36 = scalar_select %p33, %s34, %s35
      %p39 = pneg %p33
      %p40 = scmp.eq.s32.totalorder %s24, 1
      %p41 = por %p39, %p40
      %p42 = scmp.ne.s32.totalorder %s34, %s37
      %p43 = scmp.eq.s32.totalorder %s24, 0
      %p44 = por %p42, %p43
      %p45 = scmp.ne.s32.totalorder %s34, %s37
      %p46 = scmp.eq.s32.totalorder %s29, 1
      %p47 = por %p45, %p46
      %p48 = scmp.ne.s32.totalorder %s37, %s38
      %p49 = scmp.eq.s32.totalorder %s29, 0
      %p50 = por %p48, %p49
      %p51 = scmp.ne.s32.totalorder %s37, %s38
      %p52 = scmp.eq.s32.totalorder %s30, 1
      %p53 = por %p51, %p52
      %p55 = scmp.ne.s32.totalorder %s38, %s54
      %p56 = scmp.eq.s32.totalorder %s30, 0
      %p57 = por %p55, %p56
      %s58 = ssub.s32 %s24, %s31
      %p59 = scmp.eq.s32.totalorder %s58, 0
      %s61 = sadd.s32 %s60, 1
      %s62 = scalar_select %p59, %s60, %s61
      %p65 = pneg %p59
      %p66 = scmp.eq.s32.totalorder %s24, 1
      %p67 = por %p65, %p66
      %p68 = scmp.ne.s32.totalorder %s60, %s63
      %p69 = scmp.eq.s32.totalorder %s24, 0
      %p70 = por %p68, %p69
      %p71 = scmp.ne.s32.totalorder %s60, %s63
      %p72 = scmp.eq.s32.totalorder %s29, 1
      %p73 = por %p71, %p72
      %p74 = scmp.ne.s32.totalorder %s63, %s64
      %p75 = scmp.eq.s32.totalorder %s29, 0
      %p76 = por %p74, %p75
      %p77 = scmp.ne.s32.totalorder %s63, %s64
      %p78 = scmp.eq.s32.totalorder %s30, 1
      %p79 = por %p77, %p78
      %p81 = scmp.ne.s32.totalorder %s64, %s80
      %p82 = scmp.eq.s32.totalorder %s30, 0
      %p83 = por %p81, %p82
      %s85 = sadd.s32 %s84, 1
      %p88 = scmp.eq.s32.totalorder %s24, 1
      %p89 = scmp.ne.s32.totalorder %s84, %s86
      %p90 = scmp.eq.s32.totalorder %s24, 0
      %p91 = por %p89, %p90
      %p92 = scmp.ne.s32.totalorder %s84, %s86
      %p93 = scmp.eq.s32.totalorder %s29, 1
      %p94 = por %p92, %p93
      %p95 = scmp.ne.s32.totalorder %s86, %s87
      %p96 = scmp.eq.s32.totalorder %s29, 0
      %p97 = por %p95, %p96
      %p98 = scmp.ne.s32.totalorder %s86, %s87
      %p99 = scmp.eq.s32.totalorder %s30, 1
      %p100 = por %p98, %p99
      %p102 = scmp.ne.s32.totalorder %s87, %s101
      %p103 = scmp.eq.s32.totalorder %s30, 0
      %p104 = por %p102, %p103
      %s106 = sadd.s32 %s105, 1
      %p109 = scmp.eq.s32.totalorder %s24, 1
      %p110 = scmp.ne.s32.totalorder %s105, %s107
      %p111 = scmp.eq.s32.totalorder %s24, 0
      %p112 = por %p110, %p111
      %p113 = scmp.ne.s32.totalorder %s105, %s107
      %p114 = scmp.eq.s32.totalorder %s29, 1
      %p115 = por %p113, %p114
      %p116 = scmp.ne.s32.totalorder %s107, %s108
      %p117 = scmp.eq.s32.totalorder %s29, 0
      %p118 = por %p116, %p117
      %p119 = scmp.ne.s32.totalorder %s107, %s108
      %p120 = scmp.eq.s32.totalorder %s30, 1
      %p121 = por %p119, %p120
      %p123 = scmp.ne.s32.totalorder %s108, %s122
      %p124 = scmp.eq.s32.totalorder %s30, 0
      %p125 = por %p123, %p124
      %s127 = sadd.s32 %s126, 1
      %p130 = scmp.eq.s32.totalorder %s24, 1
      %p131 = scmp.ne.s32.totalorder %s126, %s128
      %p132 = scmp.eq.s32.totalorder %s24, 0
      %p133 = por %p131, %p132
      %p134 = scmp.ne.s32.totalorder %s126, %s128
      %p135 = scmp.eq.s32.totalorder %s29, 1
      %p136 = por %p134, %p135
      %p137 = scmp.ne.s32.totalorder %s128, %s129
      %p138 = scmp.eq.s32.totalorder %s29, 0
      %p139 = por %p137, %p138
      %p140 = scmp.ne.s32.totalorder %s128, %s129
      %p141 = scmp.eq.s32.totalorder %s30, 1
      %p142 = por %p140, %p141
      %p144 = scmp.ne.s32.totalorder %s129, %s143
      %p145 = scmp.eq.s32.totalorder %s30, 0
      %p146 = por %p144, %p145
      %s148 = sadd.s32 %s147, 1
      %p151 = scmp.eq.s32.totalorder %s24, 1
      %p152 = scmp.ne.s32.totalorder %s147, %s149
      %p153 = scmp.eq.s32.totalorder %s24, 0
      %p154 = por %p152, %p153
      %p155 = scmp.ne.s32.totalorder %s147, %s149
      %p156 = scmp.eq.s32.totalorder %s29, 1
      %p157 = por %p155, %p156
      %p158 = scmp.ne.s32.totalorder %s149, %s150
      %p159 = scmp.eq.s32.totalorder %s29, 0
      %p160 = por %p158, %p159
      %p161 = scmp.ne.s32.totalorder %s149, %s150
      %p162 = scmp.eq.s32.totalorder %s30, 1
      %p163 = por %p161, %p162
      %p165 = scmp.ne.s32.totalorder %s150, %s164
      %p166 = scmp.eq.s32.totalorder %s30, 0
      %p167 = por %p165, %p166
      %s169 = sadd.s32 %s168, 1
      %p172 = scmp.eq.s32.totalorder %s24, 1
      %p173 = scmp.ne.s32.totalorder %s168, %s170
      %p174 = scmp.eq.s32.totalorder %s24, 0
      %p175 = por %p173, %p174
      %p176 = scmp.ne.s32.totalorder %s168, %s170
      %p177 = scmp.eq.s32.totalorder %s29, 1
      %p178 = por %p176, %p177
      %p179 = scmp.ne.s32.totalorder %s170, %s171
      %p180 = scmp.eq.s32.totalorder %s29, 0
      %p181 = por %p179, %p180
      %p182 = scmp.ne.s32.totalorder %s170, %s171
      %p183 = scmp.eq.s32.totalorder %s30, 1
      %p184 = por %p182, %p183
      %p186 = scmp.ne.s32.totalorder %s171, %s185
      %p187 = scmp.eq.s32.totalorder %s30, 0
      %p188 = por %p186, %p187
      %s190 = sadd.s32 %s189, 1
      %p193 = scmp.eq.s32.totalorder %s24, 1
      %p194 = scmp.ne.s32.totalorder %s189, %s191
      %p195 = scmp.eq.s32.totalorder %s24, 0
      %p196 = por %p194, %p195
      %p197 = scmp.ne.s32.totalorder %s189, %s191
      %p198 = scmp.eq.s32.totalorder %s29, 1
      %p199 = por %p197, %p198
      %p200 = scmp.ne.s32.totalorder %s191, %s192
      %p201 = scmp.eq.s32.totalorder %s29, 0
      %p202 = por %p200, %p201
      %p203 = scmp.ne.s32.totalorder %s191, %s192
      %p204 = scmp.eq.s32.totalorder %s30, 1
      %p205 = por %p203, %p204
      %p207 = scmp.ne.s32.totalorder %s192, %s206
      %p208 = scmp.eq.s32.totalorder %s30, 0
      %p209 = por %p207, %p208
      %s211 = sadd.s32 %s210, 1
      %p214 = scmp.eq.s32.totalorder %s24, 1
      %p215 = scmp.ne.s32.totalorder %s210, %s212
      %p216 = scmp.eq.s32.totalorder %s24, 0
      %p217 = por %p215, %p216
      %p218 = scmp.ne.s32.totalorder %s210, %s212
      %p219 = scmp.eq.s32.totalorder %s29, 1
      %p220 = por %p218, %p219
      %p221 = scmp.ne.s32.totalorder %s212, %s213
      %p222 = scmp.eq.s32.totalorder %s29, 0
      %p223 = por %p221, %p222
      %p224 = scmp.ne.s32.totalorder %s212, %s213
      %p225 = scmp.eq.s32.totalorder %s30, 1
      %p226 = por %p224, %p225
      %p228 = scmp.ne.s32.totalorder %s213, %s227
      %p229 = scmp.eq.s32.totalorder %s30, 0
      %p230 = por %p228, %p229
      %s232 = sadd.s32 %s231, 1
      %p235 = scmp.eq.s32.totalorder %s24, 1
      %p236 = scmp.ne.s32.totalorder %s231, %s233
      %p237 = scmp.eq.s32.totalorder %s24, 0
      %p238 = por %p236, %p237
      %p239 = scmp.ne.s32.totalorder %s231, %s233
      %p240 = scmp.eq.s32.totalorder %s29, 1
      %p241 = por %p239, %p240
      %p242 = scmp.ne.s32.totalorder %s233, %s234
      %p243 = scmp.eq.s32.totalorder %s29, 0
      %p244 = por %p242, %p243
      %p245 = scmp.ne.s32.totalorder %s233, %s234
      %p246 = scmp.eq.s32.totalorder %s30, 1
      %p247 = por %p245, %p246
      %p249 = scmp.ne.s32.totalorder %s234, %s248
      %p250 = scmp.eq.s32.totalorder %s30, 0
      %p251 = por %p249, %p250
      %s253 = sadd.s32 %s252, 1
      %p256 = scmp.eq.s32.totalorder %s24, 1
      %p257 = scmp.ne.s32.totalorder %s252, %s254
      %p258 = scmp.eq.s32.totalorder %s24, 0
      %p259 = por %p257, %p258
      %p260 = scmp.ne.s32.totalorder %s252, %s254
      %p261 = scmp.eq.s32.totalorder %s29, 1
      %p262 = por %p260, %p261
      %p263 = scmp.ne.s32.totalorder %s254, %s255
      %p264 = scmp.eq.s32.totalorder %s29, 0
      %p265 = por %p263, %p264
      %p266 = scmp.ne.s32.totalorder %s254, %s255
      %p267 = scmp.eq.s32.totalorder %s30, 1
      %p268 = por %p266, %p267
      %p270 = scmp.ne.s32.totalorder %s255, %s269
      %p271 = scmp.eq.s32.totalorder %s30, 0
      %p272 = por %p270, %p271
      %s274 = sadd.s32 %s273, 1
      %p277 = scmp.eq.s32.totalorder %s24, 1
      %p278 = scmp.ne.s32.totalorder %s273, %s275
      %p279 = scmp.eq.s32.totalorder %s24, 0
      %p280 = por %p278, %p279
      %p281 = scmp.ne.s32.totalorder %s273, %s275
      %p282 = scmp.eq.s32.totalorder %s29, 1
      %p283 = por %p281, %p282
      %p284 = scmp.ne.s32.totalorder %s275, %s276
      %p285 = scmp.eq.s32.totalorder %s29, 0
      %p286 = por %p284, %p285
      %p287 = scmp.ne.s32.totalorder %s275, %s276
      %p288 = scmp.eq.s32.totalorder %s30, 1
      %p289 = por %p287, %p288
      %p291 = scmp.ne.s32.totalorder %s276, %s290
      %p292 = scmp.eq.s32.totalorder %s30, 0
      %p293 = por %p291, %p292
      %s295 = sadd.s32 %s294, 1
      %p298 = scmp.eq.s32.totalorder %s24, 1
      %p299 = scmp.ne.s32.totalorder %s294, %s296
      %p300 = scmp.eq.s32.totalorder %s24, 0
      %p301 = por %p299, %p300
      %p302 = scmp.ne.s32.totalorder %s294, %s296
      %p303 = scmp.eq.s32.totalorder %s29, 1
      %p304 = por %p302, %p303
      %p305 = scmp.ne.s32.totalorder %s296, %s297
      %p306 = scmp.eq.s32.totalorder %s29, 0
      %p307 = por %p305, %p306
      %p308 = scmp.ne.s32.totalorder %s296, %s297
      %p309 = scmp.eq.s32.totalorder %s30, 1
      %p310 = por %p308, %p309
      %p312 = scmp.ne.s32.totalorder %s297, %s311
      %p313 = scmp.eq.s32.totalorder %s30, 0
      %p314 = por %p312, %p313
      %s316 = sadd.s32 %s315, 1
      %p319 = scmp.eq.s32.totalorder %s24, 1
      %p320 = scmp.ne.s32.totalorder %s315, %s317
      %p321 = scmp.eq.s32.totalorder %s24, 0
      %p322 = por %p320, %p321
      %p323 = scmp.ne.s32.totalorder %s315, %s317
      %p324 = scmp.eq.s32.totalorder %s29, 1
      %p325 = por %p323, %p324
      %p326 = scmp.ne.s32.totalorder %s317, %s318
      %p327 = scmp.eq.s32.totalorder %s29, 0
      %p328 = por %p326, %p327
      %p329 = scmp.ne.s32.totalorder %s317, %s318
      %p330 = scmp.eq.s32.totalorder %s30, 1
      %p331 = por %p329, %p330
      %p333 = scmp.ne.s32.totalorder %s318, %s332
      %p334 = scmp.eq.s32.totalorder %s30, 0
      %p335 = por %p333, %p334
      %s337 = sadd.s32 %s336, 1
      %p340 = scmp.eq.s32.totalorder %s24, 1
      %p341 = scmp.ne.s32.totalorder %s336, %s338
      %p342 = scmp.eq.s32.totalorder %s24, 0
      %p343 = por %p341, %p342
      %p344 = scmp.ne.s32.totalorder %s336, %s338
      %p345 = scmp.eq.s32.totalorder %s29, 1
      %p346 = por %p344, %p345
      %p347 = scmp.ne.s32.totalorder %s338, %s339
      %p348 = scmp.eq.s32.totalorder %s29, 0
      %p349 = por %p347, %p348
      %p350 = scmp.ne.s32.totalorder %s338, %s339
      %p351 = scmp.eq.s32.totalorder %s30, 1
      %p352 = por %p350, %p351
      %p354 = scmp.ne.s32.totalorder %s339, %s353
      %p355 = scmp.eq.s32.totalorder %s30, 0
      %p356 = por %p354, %p355
      %s357 = ssub.s32 %s24, %s31
      %p358 = scmp.eq.s32.totalorder %s357, 0
      %s360 = sadd.s32 %s359, 1
      %s361 = scalar_select %p358, %s359, %s360
      %p364 = pneg %p358
      %p365 = scmp.eq.s32.totalorder %s24, 1
      %p366 = por %p364, %p365
      %p367 = scmp.ne.s32.totalorder %s359, %s362
      %p368 = scmp.eq.s32.totalorder %s24, 0
      %p369 = por %p367, %p368
      %p370 = scmp.ne.s32.totalorder %s359, %s362
      %p371 = scmp.eq.s32.totalorder %s29, 1
      %p372 = por %p370, %p371
      %p373 = scmp.ne.s32.totalorder %s362, %s363
      %p374 = scmp.eq.s32.totalorder %s29, 0
      %p375 = por %p373, %p374
      %p376 = scmp.ne.s32.totalorder %s362, %s363
      %p377 = scmp.eq.s32.totalorder %s30, 1
      %p378 = por %p376, %p377
      %p380 = scmp.ne.s32.totalorder %s363, %s379
      %p381 = scmp.eq.s32.totalorder %s30, 0
      %p382 = por %p380, %p381
      %p383 = scmp.le.s32.totalorder 1, %s24
      %p384 = scmp.lt.s32.totalorder %s24, 3
      %p385 = pnand %p383, %p384
      %p386 = pneg %p385
      // Predicated region
      $region9: #{tpu_custom_call.1} parent=5 // pred_check
        _
      $region10: #{tpu_custom_call.1} parent=5 // pred_check_branch
        %388 = sbr.rel (%p385) target = $region12
      $region11: #{tpu_custom_call.1} parent=5 // pred_region
        %s389 = ssub.s32 %s24, 1
        // Predicated region
        $region13: #{tpu_custom_call.1} parent=11 // pred_check
          %p390 = pneg %p97
        $region14: #{tpu_custom_call.1} parent=11 // pred_check_branch
          %392 = sbr.rel (%p390) target = $region16
        $region15: #{tpu_custom_call.1} parent=11 // pred_region
          _
        $region16: #{tpu_custom_call.1} parent=11 // pred_fallthru
          _
        // Predicated region
        $region17: #{tpu_custom_call.1} parent=11 // pred_check
          %p393 = pneg %p118
        $region18: #{tpu_custom_call.1} parent=11 // pred_check_branch
          %395 = sbr.rel (%p393) target = $region20
        $region19: #{tpu_custom_call.1} parent=11 // pred_region
          _
        $region20: #{tpu_custom_call.1} parent=11 // pred_fallthru
          _
        // Predicated region
        $region21: #{tpu_custom_call.1} parent=11 // pred_check
          %p396 = pneg %p139
        $region22: #{tpu_custom_call.1} parent=11 // pred_check_branch
          %398 = sbr.rel (%p396) target = $region24
        $region23: #{tpu_custom_call.1} parent=11 // pred_region
          _
        $region24: #{tpu_custom_call.1} parent=11 // pred_fallthru
          _
        // Predicated region
        $region25: #{tpu_custom_call.1} parent=11 // pred_check
          %p399 = pneg %p160
        $region26: #{tpu_custom_call.1} parent=11 // pred_check_branch
          %401 = sbr.rel (%p399) target = $region28
        $region27: #{tpu_custom_call.1} parent=11 // pred_region
          _
        $region28: #{tpu_custom_call.1} parent=11 // pred_fallthru
          _
        // Predicated region
        $region29: #{tpu_custom_call.1} parent=11 // pred_check
          %p402 = pneg %p181
        $region30: #{tpu_custom_call.1} parent=11 // pred_check_branch
          %404 = sbr.rel (%p402) target = $region32
        $region31: #{tpu_custom_call.1} parent=11 // pred_region
          _
        $region32: #{tpu_custom_call.1} parent=11 // pred_fallthru
          _
        // Predicated region
        $region33: #{tpu_custom_call.1} parent=11 // pred_check
          %p405 = pneg %p202
        $region34: #{tpu_custom_call.1} parent=11 // pred_check_branch
          %407 = sbr.rel (%p405) target = $region36
        $region35: #{tpu_custom_call.1} parent=11 // pred_region
          _
        $region36: #{tpu_custom_call.1} parent=11 // pred_fallthru
          _
        // Predicated region
        $region37: #{tpu_custom_call.1} parent=11 // pred_check
          %p408 = pneg %p223
        $region38: #{tpu_custom_call.1} parent=11 // pred_check_branch
          %410 = sbr.rel (%p408) target = $region40
        $region39: #{tpu_custom_call.1} parent=11 // pred_region
          _
        $region40: #{tpu_custom_call.1} parent=11 // pred_fallthru
          _
        // Predicated region
        $region41: #{tpu_custom_call.1} parent=11 // pred_check
          %p411 = pneg %p244
        $region42: #{tpu_custom_call.1} parent=11 // pred_check_branch
          %413 = sbr.rel (%p411) target = $region44
        $region43: #{tpu_custom_call.1} parent=11 // pred_region
          _
        $region44: #{tpu_custom_call.1} parent=11 // pred_fallthru
          _
        // Predicated region
        $region45: #{tpu_custom_call.1} parent=11 // pred_check
          %p414 = pneg %p265
        $region46: #{tpu_custom_call.1} parent=11 // pred_check_branch
          %416 = sbr.rel (%p414) target = $region48
        $region47: #{tpu_custom_call.1} parent=11 // pred_region
          _
        $region48: #{tpu_custom_call.1} parent=11 // pred_fallthru
          _
        // Predicated region
        $region49: #{tpu_custom_call.1} parent=11 // pred_check
          %p417 = pneg %p286
        $region50: #{tpu_custom_call.1} parent=11 // pred_check_branch
          %419 = sbr.rel (%p417) target = $region52
        $region51: #{tpu_custom_call.1} parent=11 // pred_region
          _
        $region52: #{tpu_custom_call.1} parent=11 // pred_fallthru
          _
        // Predicated region
        $region53: #{tpu_custom_call.1} parent=11 // pred_check
          %p420 = pneg %p307
        $region54: #{tpu_custom_call.1} parent=11 // pred_check_branch
          %422 = sbr.rel (%p420) target = $region56
        $region55: #{tpu_custom_call.1} parent=11 // pred_region
          _
        $region56: #{tpu_custom_call.1} parent=11 // pred_fallthru
          _
        // Predicated region
        $region57: #{tpu_custom_call.1} parent=11 // pred_check
          %p423 = pneg %p328
        $region58: #{tpu_custom_call.1} parent=11 // pred_check_branch
          %425 = sbr.rel (%p423) target = $region60
        $region59: #{tpu_custom_call.1} parent=11 // pred_region
          _
        $region60: #{tpu_custom_call.1} parent=11 // pred_fallthru
          _
        // Predicated region
        $region61: #{tpu_custom_call.1} parent=11 // pred_check
          %p426 = pneg %p349
        $region62: #{tpu_custom_call.1} parent=11 // pred_check_branch
          %428 = sbr.rel (%p426) target = $region64
        $region63: #{tpu_custom_call.1} parent=11 // pred_region
          _
        $region64: #{tpu_custom_call.1} parent=11 // pred_fallthru
          _
      $region12: #{tpu_custom_call.1} parent=5 // pred_fallthru
        _
      %p429 = scmp.lt.s32.totalorder %s24, 2
      // Predicated region
      $region65: #{tpu_custom_call.1} parent=5 // pred_check
        %p430 = pneg %p429
      $region66: #{tpu_custom_call.1} parent=5 // pred_check_branch
        %432 = sbr.rel (%p430) target = $region68
      $region67: #{tpu_custom_call.1} parent=5 // pred_region
        // Predicated region
        $region69: #{tpu_custom_call.1} parent=67 // pred_check
          %p433 = pneg %p44
        $region70: #{tpu_custom_call.1} parent=67 // pred_check_branch
          %435 = sbr.rel (%p433) target = $region72
        $region71: #{tpu_custom_call.1} parent=67 // pred_region
          %p436 = scmp.lt.s32.totalorder %s24, 1
          %s437 = scalar_select %p436, %s24, 1
          %s438 = smul.addr %s437, 8
          %s439 = scalar_lea.vmem %s0, %s438
        $region72: #{tpu_custom_call.1} parent=67 // pred_fallthru
          _
        // Predicated region
        $region73: #{tpu_custom_call.1} parent=67 // pred_check
          %p440 = pneg %p70
        $region74: #{tpu_custom_call.1} parent=67 // pred_check_branch
          %442 = sbr.rel (%p440) target = $region76
        $region75: #{tpu_custom_call.1} parent=67 // pred_region
          %p443 = scmp.lt.s32.totalorder %s24, 1
          %s444 = scalar_select %p443, %s24, 1
          %s445 = smul.addr %s444, 2
          %s446 = smul.addr %s445, 8
          %s447 = scalar_lea.vmem %s1, %s446
        $region76: #{tpu_custom_call.1} parent=67 // pred_fallthru
          _
      $region68: #{tpu_custom_call.1} parent=5 // pred_fallthru
        _
      %p448 = scmp.le.s32.totalorder 1, %s24
      %p449 = scmp.lt.s32.totalorder %s24, 3
      %p450 = pnand %p448, %p449
      %p451 = pneg %p450
      // Predicated region
      $region77: #{tpu_custom_call.1} parent=5 // pred_check
        _
      $region78: #{tpu_custom_call.1} parent=5 // pred_check_branch
        %453 = sbr.rel (%p450) target = $region80
      $region79: #{tpu_custom_call.1} parent=5 // pred_region
        %s454 = ssub.s32 %s24, 1
        %p455 = scmp.lt.s32.totalorder %s29, 1
        %s456 = scalar_select %p455, %s29, 1
        %s457 = smul.addr %s456, 8
        %s458 = scalar_lea.vmem %s0, %s457
        %p459 = pneg %p50
        %p460 = pneg %p47
        %p461 = scmp.lt.s32.totalorder %s29, 1
        %s462 = scalar_select %p461, %s29, 1
        %s463 = smul.addr %s462, 2
        %s464 = smul.addr %s463, 8
        %s465 = scalar_lea.vmem %s1, %s464
        %p466 = pneg %p76
        %p467 = pneg %p73
        %p468 = pneg %p97
        %p469 = pneg %p94
        %p470 = pneg %p118
        %p471 = pneg %p115
        %p472 = pneg %p139
        %p473 = pneg %p136
        %p474 = pneg %p160
        %p475 = pneg %p157
        %p476 = pneg %p181
        %p477 = pneg %p178
        %p478 = pneg %p202
        %p479 = pneg %p199
        %p480 = pneg %p223
        %p481 = pneg %p220
        %p482 = pneg %p244
        %p483 = pneg %p241
        %p484 = pneg %p265
        %p485 = pneg %p262
        %p486 = pneg %p286
        %p487 = pneg %p283
        %p488 = pneg %p307
        %p489 = pneg %p304
        %p490 = pneg %p328
        %p491 = pneg %p325
        %p492 = pneg %p349
        %p493 = pneg %p346
        %p494 = pneg %p375
        %p495 = pneg %p372
        %s496 = sand.u32 %s362, 1
        %s497 = scalar_lea.sflag [#allocation3], %s496
        %s498 = sand.u32 %s362, 1
        %s499 = smul.addr %s498, 8
        %s500 = scalar_lea.vmem [#allocation2], %s499
        %p501 = scmp.lt.s32.totalorder %s29, 1
        %s502 = scalar_select %p501, %s29, 1
        %s503 = smul.addr %s502, 8
        %s504 = scalar_lea.vmem %s0, %s503
        %p505 = scmp.lt.s32.totalorder %s29, 1
        %s506 = scalar_select %p505, %s29, 1
        %s507 = smul.addr %s506, 2
        %s508 = smul.addr %s507, 8
        %s509 = scalar_lea.vmem %s1, %s508
        %v510 = vld [vmem:[%s504] sm:$0xff]
        %v511 = vld [vmem:[%s509] sm:$0xff]
        %v512 = vld [vmem:[%s509 + $0x8] sm:$0xff]
        %v513 = vld [vmem:[%s2] sm:$0xff]
        %v514 = vld [vmem:[%s3] sm:$0xff]
        %v515 = vld [vmem:[%s3 + $0x8] sm:$0xff]
        %v516 = vld [vmem:[%s3 + $0x10] sm:$0xff]
        %v517 = vld [vmem:[%s3 + $0x18] sm:$0xff]
        %v518 = vld [vmem:[%s3 + $0x20] sm:$0xff]
        %v519 = vld [vmem:[%s3 + $0x28] sm:$0xff]
        %v520 = vld [vmem:[%s3 + $0x30] sm:$0xff]
        %v521 = vld [vmem:[%s3 + $0x38] sm:$0xff]
        %v522 = vld [vmem:[%s3 + $0x40] sm:$0xff]
        %v523 = vld [vmem:[%s3 + $0x48] sm:$0xff]
        %v524 = vld [vmem:[%s3 + $0x50] sm:$0xff]
        %v525 = vld [vmem:[%s3 + $0x58] sm:$0xff]
        %v526 = vld [vmem:[%s4] sm:$0xff]
        %v527 = vld [vmem:[%s4 + $0x8] sm:$0xff]
        %v528 = vld [vmem:[%s4 + $0x10] sm:$0xff]
        %v529 = vld [vmem:[%s4 + $0x18] sm:$0xff]
        %v530 = vld [vmem:[%s4 + $0x20] sm:$0xff]
        %v531 = vld [vmem:[%s4 + $0x28] sm:$0xff]
        %v532 = vld [vmem:[%s4 + $0x30] sm:$0xff]
        %v533 = vld [vmem:[%s4 + $0x38] sm:$0xff]
        %v534 = vld [vmem:[%s4 + $0x40] sm:$0xff]
        %v535 = vld [vmem:[%s4 + $0x48] sm:$0xff]
        %v536 = vld [vmem:[%s4 + $0x50] sm:$0xff]
        %v537 = vld [vmem:[%s4 + $0x58] sm:$0xff]
        %v538 = vld [vmem:[%s4 + $0x60] sm:$0xff]
        %v539 = vld [vmem:[%s4 + $0x68] sm:$0xff]
        %v540 = vld [vmem:[%s4 + $0x70] sm:$0xff]
        %v541 = vld [vmem:[%s4 + $0x78] sm:$0xff]
        %v542 = vld [vmem:[%s5] sm:$0x1]
        %vm543 = vcmask 261120
        %v545 = vsel %vm543, %v510, 0
        %v548 = vsel %vm543, %v514, 0
        %550 = vmatprep.subr.mxu0 0.0
        %551 = vmatpush1.xpose.msra.mxu0 %v548
        %552 = vmatprep.subr.mxu0 0.0
        %553 = vmatpush1.xpose.msra.mxu0 0.0
        %554 = vmatprep.subr.mxu0 0.0
        %555 = vmatpush1.xpose.msra.mxu0 0.0
        %556 = vmatprep.subr.mxu0 0.0
        %557 = vmatpush1.xpose.msra.mxu0 0.0
        %558 = vmatprep.subr.mxu0 0.0
        %559 = vmatpush1.xpose.msra.mxu0 0.0
        %560 = vmatprep.subr.mxu0 0.0
        %561 = vmatpush1.xpose.msra.mxu0 0.0
        %562 = vmatprep.subr.mxu0 0.0
        %563 = vmatpush1.xpose.msra.mxu0 0.0
        %564 = vmatprep.subr.mxu0 0.0
        %565 = vmatpush1.xpose.msra.mxu0 0.0
        %566 = vmatprep.subr.mxu0 0.0
        %567 = vmatpush1.xpose.msra.mxu0 0.0
        %568 = vmatprep.subr.mxu0 0.0
        %569 = vmatpush1.xpose.msra.mxu0 0.0
        %570 = vmatprep.subr.mxu0 0.0
        %571 = vmatpush1.xpose.msra.mxu0 0.0
        %572 = vmatprep.subr.mxu0 0.0
        %573 = vmatpush1.xpose.msra.mxu0 0.0
        %574 = vmatprep.subr.mxu0 0.0
        %575 = vmatpush1.xpose.msra.mxu0 0.0
        %576 = vmatprep.subr.mxu0 0.0
        %577 = vmatpush1.xpose.msra.mxu0 0.0
        %578 = vmatprep.subr.mxu0 0.0
        %579 = vmatpush1.xpose.msra.mxu0 0.0
        %580 = vmatprep.subr.mxu0 0.0
        %581 = vmatpush1.xpose.msra.mxu0 0.0
        %582 = vmatprep.subr.mxu0 0.0
        %583 = vmatpush1.xpose.msra.mxu0 0.0
        %584 = vmatprep.subr.mxu0 0.0
        %585 = vmatpush1.xpose.msra.mxu0 0.0
        %586 = vmatprep.subr.mxu0 0.0
        %587 = vmatpush1.xpose.msra.mxu0 0.0
        %588 = vmatprep.subr.mxu0 0.0
        %589 = vmatpush1.xpose.msra.mxu0 0.0
        %590 = vmatprep.subr.mxu0 0.0
        %591 = vmatpush1.xpose.msra.mxu0 0.0
        %592 = vmatprep.subr.mxu0 0.0
        %593 = vmatpush1.xpose.msra.mxu0 0.0
        %594 = vmatprep.subr.mxu0 0.0
        %595 = vmatpush1.xpose.msra.mxu0 0.0
        %596 = vmatprep.subr.mxu0 0.0
        %597 = vmatpush1.xpose.msra.mxu0 0.0
        %598 = vmatprep.subr.mxu0 0.0
        %599 = vmatpush1.xpose.msra.mxu0 0.0
        %600 = vmatprep.subr.mxu0 0.0
        %601 = vmatpush1.xpose.msra.mxu0 0.0
        %602 = vmatprep.subr.mxu0 0.0
        %603 = vmatpush1.xpose.msra.mxu0 0.0
        %604 = vmatprep.subr.mxu0 0.0
        %605 = vmatpush1.xpose.msra.mxu0 0.0
        %606 = vmatprep.subr.mxu0 0.0
        %607 = vmatpush1.xpose.msra.mxu0 0.0
        %608 = vmatprep.subr.mxu0 0.0
        %609 = vmatpush1.xpose.msra.mxu0 0.0
        %610 = vmatprep.subr.mxu0 0.0
        %611 = vmatpush1.xpose.msra.mxu0 0.0
        %612 = vmatprep.subr.mxu0 0.0
        %613 = vmatpush1.xpose.msra.mxu0 0.0
        %614 = vmatprep.mubr.f32.mxu0 0.0
        %615 = vmatmul.mubr.f32.gmra.mrb[0].mxu0 %v545
        %v616 = vpop.f32.mrb[0].mxu0
        %v617 = vadd.f32 0.0, %v616
        %v618 = vpop.f32.mrb[0].mxu0
        %619 = vdwg.mxu0
        %v621 = vsel %vm543, %v515, 0
        %623 = vmatprep.subr.mxu0 0.0
        %624 = vmatpush1.xpose.msra.mxu0 %v621
        %625 = vmatprep.subr.mxu0 0.0
        %626 = vmatpush1.xpose.msra.mxu0 0.0
        %627 = vmatprep.subr.mxu0 0.0
        %628 = vmatpush1.xpose.msra.mxu0 0.0
        %629 = vmatprep.subr.mxu0 0.0
        %630 = vmatpush1.xpose.msra.mxu0 0.0
        %631 = vmatprep.subr.mxu0 0.0
        %632 = vmatpush1.xpose.msra.mxu0 0.0
        %633 = vmatprep.subr.mxu0 0.0
        %634 = vmatpush1.xpose.msra.mxu0 0.0
        %635 = vmatprep.subr.mxu0 0.0
        %636 = vmatpush1.xpose.msra.mxu0 0.0
        %637 = vmatprep.subr.mxu0 0.0
        %638 = vmatpush1.xpose.msra.mxu0 0.0
        %639 = vmatprep.subr.mxu0 0.0
        %640 = vmatpush1.xpose.msra.mxu0 0.0
        %641 = vmatprep.subr.mxu0 0.0
        %642 = vmatpush1.xpose.msra.mxu0 0.0
        %643 = vmatprep.subr.mxu0 0.0
        %644 = vmatpush1.xpose.msra.mxu0 0.0
        %645 = vmatprep.subr.mxu0 0.0
        %646 = vmatpush1.xpose.msra.mxu0 0.0
        %647 = vmatprep.subr.mxu0 0.0
        %648 = vmatpush1.xpose.msra.mxu0 0.0
        %649 = vmatprep.subr.mxu0 0.0
        %650 = vmatpush1.xpose.msra.mxu0 0.0
        %651 = vmatprep.subr.mxu0 0.0
        %652 = vmatpush1.xpose.msra.mxu0 0.0
        %653 = vmatprep.subr.mxu0 0.0
        %654 = vmatpush1.xpose.msra.mxu0 0.0
        %655 = vmatprep.subr.mxu0 0.0
        %656 = vmatpush1.xpose.msra.mxu0 0.0
        %657 = vmatprep.subr.mxu0 0.0
        %658 = vmatpush1.xpose.msra.mxu0 0.0
        %659 = vmatprep.subr.mxu0 0.0
        %660 = vmatpush1.xpose.msra.mxu0 0.0
        %661 = vmatprep.subr.mxu0 0.0
        %662 = vmatpush1.xpose.msra.mxu0 0.0
        %663 = vmatprep.subr.mxu0 0.0
        %664 = vmatpush1.xpose.msra.mxu0 0.0
        %665 = vmatprep.subr.mxu0 0.0
        %666 = vmatpush1.xpose.msra.mxu0 0.0
        %667 = vmatprep.subr.mxu0 0.0
        %668 = vmatpush1.xpose.msra.mxu0 0.0
        %669 = vmatprep.subr.mxu0 0.0
        %670 = vmatpush1.xpose.msra.mxu0 0.0
        %671 = vmatprep.subr.mxu0 0.0
        %672 = vmatpush1.xpose.msra.mxu0 0.0
        %673 = vmatprep.subr.mxu0 0.0
        %674 = vmatpush1.xpose.msra.mxu0 0.0
        %675 = vmatprep.subr.mxu0 0.0
        %676 = vmatpush1.xpose.msra.mxu0 0.0
        %677 = vmatprep.subr.mxu0 0.0
        %678 = vmatpush1.xpose.msra.mxu0 0.0
        %679 = vmatprep.subr.mxu0 0.0
        %680 = vmatpush1.xpose.msra.mxu0 0.0
        %681 = vmatprep.subr.mxu0 0.0
        %682 = vmatpush1.xpose.msra.mxu0 0.0
        %683 = vmatprep.subr.mxu0 0.0
        %684 = vmatpush1.xpose.msra.mxu0 0.0
        %685 = vmatprep.subr.mxu0 0.0
        %686 = vmatpush1.xpose.msra.mxu0 0.0
        %687 = vmatprep.mubr.f32.mxu0 0.0
        %688 = vmatmul.mubr.f32.gmra.mrb[0].mxu0 %v545
        %v689 = vpop.f32.mrb[0].mxu0
        %v690 = vadd.f32 0.0, %v689
        %v691 = vpop.f32.mrb[0].mxu0
        %692 = vdwg.mxu0
        %v694 = vsel %vm543, %v516, 0
        %696 = vmatprep.subr.mxu0 0.0
        %697 = vmatpush1.xpose.msra.mxu0 %v694
        %698 = vmatprep.subr.mxu0 0.0
        %699 = vmatpush1.xpose.msra.mxu0 0.0
        %700 = vmatprep.subr.mxu0 0.0
        %701 = vmatpush1.xpose.msra.mxu0 0.0
        %702 = vmatprep.subr.mxu0 0.0
        %703 = vmatpush1.xpose.msra.mxu0 0.0
        %704 = vmatprep.subr.mxu0 0.0
        %705 = vmatpush1.xpose.msra.mxu0 0.0
        %706 = vmatprep.subr.mxu0 0.0
        %707 = vmatpush1.xpose.msra.mxu0 0.0
        %708 = vmatprep.subr.mxu0 0.0
        %709 = vmatpush1.xpose.msra.mxu0 0.0
        %710 = vmatprep.subr.mxu0 0.0
        %711 = vmatpush1.xpose.msra.mxu0 0.0
        %712 = vmatprep.subr.mxu0 0.0
        %713 = vmatpush1.xpose.msra.mxu0 0.0
        %714 = vmatprep.subr.mxu0 0.0
        %715 = vmatpush1.xpose.msra.mxu0 0.0
        %716 = vmatprep.subr.mxu0 0.0
        %717 = vmatpush1.xpose.msra.mxu0 0.0
        %718 = vmatprep.subr.mxu0 0.0
        %719 = vmatpush1.xpose.msra.mxu0 0.0
        %720 = vmatprep.subr.mxu0 0.0
        %721 = vmatpush1.xpose.msra.mxu0 0.0
        %722 = vmatprep.subr.mxu0 0.0
        %723 = vmatpush1.xpose.msra.mxu0 0.0
        %724 = vmatprep.subr.mxu0 0.0
        %725 = vmatpush1.xpose.msra.mxu0 0.0
        %726 = vmatprep.subr.mxu0 0.0
        %727 = vmatpush1.xpose.msra.mxu0 0.0
        %728 = vmatprep.subr.mxu0 0.0
        %729 = vmatpush1.xpose.msra.mxu0 0.0
        %730 = vmatprep.subr.mxu0 0.0
        %731 = vmatpush1.xpose.msra.mxu0 0.0
        %732 = vmatprep.subr.mxu0 0.0
        %733 = vmatpush1.xpose.msra.mxu0 0.0
        %734 = vmatprep.subr.mxu0 0.0
        %735 = vmatpush1.xpose.msra.mxu0 0.0
        %736 = vmatprep.subr.mxu0 0.0
        %737 = vmatpush1.xpose.msra.mxu0 0.0
        %738 = vmatprep.subr.mxu0 0.0
        %739 = vmatpush1.xpose.msra.mxu0 0.0
        %740 = vmatprep.subr.mxu0 0.0
        %741 = vmatpush1.xpose.msra.mxu0 0.0
        %742 = vmatprep.subr.mxu0 0.0
        %743 = vmatpush1.xpose.msra.mxu0 0.0
        %744 = vmatprep.subr.mxu0 0.0
        %745 = vmatpush1.xpose.msra.mxu0 0.0
        %746 = vmatprep.subr.mxu0 0.0
        %747 = vmatpush1.xpose.msra.mxu0 0.0
        %748 = vmatprep.subr.mxu0 0.0
        %749 = vmatpush1.xpose.msra.mxu0 0.0
        %750 = vmatprep.subr.mxu0 0.0
        %751 = vmatpush1.xpose.msra.mxu0 0.0
        %752 = vmatprep.subr.mxu0 0.0
        %753 = vmatpush1.xpose.msra.mxu0 0.0
        %754 = vmatprep.subr.mxu0 0.0
        %755 = vmatpush1.xpose.msra.mxu0 0.0
        %756 = vmatprep.subr.mxu0 0.0
        %757 = vmatpush1.xpose.msra.mxu0 0.0
        %758 = vmatprep.subr.mxu0 0.0
        %759 = vmatpush1.xpose.msra.mxu0 0.0
        %760 = vmatprep.mubr.f32.mxu0 0.0
        %761 = vmatmul.mubr.f32.gmra.mrb[0].mxu0 %v545
        %v762 = vpop.f32.mrb[0].mxu0
        %v763 = vadd.f32 0.0, %v762
        %v764 = vpop.f32.mrb[0].mxu0
        %765 = vdwg.mxu0
        %v767 = vsel %vm543, %v517, 0
        %769 = vmatprep.subr.mxu0 0.0
        %770 = vmatpush1.xpose.msra.mxu0 %v767
        %771 = vmatprep.subr.mxu0 0.0
        %772 = vmatpush1.xpose.msra.mxu0 0.0
        %773 = vmatprep.subr.mxu0 0.0
        %774 = vmatpush1.xpose.msra.mxu0 0.0
        %775 = vmatprep.subr.mxu0 0.0
        %776 = vmatpush1.xpose.msra.mxu0 0.0
        %777 = vmatprep.subr.mxu0 0.0
        %778 = vmatpush1.xpose.msra.mxu0 0.0
        %779 = vmatprep.subr.mxu0 0.0
        %780 = vmatpush1.xpose.msra.mxu0 0.0
        %781 = vmatprep.subr.mxu0 0.0
        %782 = vmatpush1.xpose.msra.mxu0 0.0
        %783 = vmatprep.subr.mxu0 0.0
        %784 = vmatpush1.xpose.msra.mxu0 0.0
        %785 = vmatprep.subr.mxu0 0.0
        %786 = vmatpush1.xpose.msra.mxu0 0.0
        %787 = vmatprep.subr.mxu0 0.0
        %788 = vmatpush1.xpose.msra.mxu0 0.0
        %789 = vmatprep.subr.mxu0 0.0
        %790 = vmatpush1.xpose.msra.mxu0 0.0
        %791 = vmatprep.subr.mxu0 0.0
        %792 = vmatpush1.xpose.msra.mxu0 0.0
        %793 = vmatprep.subr.mxu0 0.0
        %794 = vmatpush1.xpose.msra.mxu0 0.0
        %795 = vmatprep.subr.mxu0 0.0
        %796 = vmatpush1.xpose.msra.mxu0 0.0
        %797 = vmatprep.subr.mxu0 0.0
        %798 = vmatpush1.xpose.msra.mxu0 0.0
        %799 = vmatprep.subr.mxu0 0.0
        %800 = vmatpush1.xpose.msra.mxu0 0.0
        %801 = vmatprep.subr.mxu0 0.0
        %802 = vmatpush1.xpose.msra.mxu0 0.0
        %803 = vmatprep.subr.mxu0 0.0
        %804 = vmatpush1.xpose.msra.mxu0 0.0
        %805 = vmatprep.subr.mxu0 0.0
        %806 = vmatpush1.xpose.msra.mxu0 0.0
        %807 = vmatprep.subr.mxu0 0.0
        %808 = vmatpush1.xpose.msra.mxu0 0.0
        %809 = vmatprep.subr.mxu0 0.0
        %810 = vmatpush1.xpose.msra.mxu0 0.0
        %811 = vmatprep.subr.mxu0 0.0
        %812 = vmatpush1.xpose.msra.mxu0 0.0
        %813 = vmatprep.subr.mxu0 0.0
        %814 = vmatpush1.xpose.msra.mxu0 0.0
        %815 = vmatprep.subr.mxu0 0.0
        %816 = vmatpush1.xpose.msra.mxu0 0.0
        %817 = vmatprep.subr.mxu0 0.0
        %818 = vmatpush1.xpose.msra.mxu0 0.0
        %819 = vmatprep.subr.mxu0 0.0
        %820 = vmatpush1.xpose.msra.mxu0 0.0
        %821 = vmatprep.subr.mxu0 0.0
        %822 = vmatpush1.xpose.msra.mxu0 0.0
        %823 = vmatprep.subr.mxu0 0.0
        %824 = vmatpush1.xpose.msra.mxu0 0.0
        %825 = vmatprep.subr.mxu0 0.0
        %826 = vmatpush1.xpose.msra.mxu0 0.0
        %827 = vmatprep.subr.mxu0 0.0
        %828 = vmatpush1.xpose.msra.mxu0 0.0
        %829 = vmatprep.subr.mxu0 0.0
        %830 = vmatpush1.xpose.msra.mxu0 0.0
        %831 = vmatprep.subr.mxu0 0.0
        %832 = vmatpush1.xpose.msra.mxu0 0.0
        %833 = vmatprep.mubr.f32.mxu0 0.0
        %834 = vmatmul.mubr.f32.gmra.mrb[0].mxu0 %v545
        %v835 = vpop.f32.mrb[0].mxu0
        %v836 = vadd.f32 0.0, %v835
        %v837 = vpop.f32.mrb[0].mxu0
        %838 = vdwg.mxu0
        %v840 = vsel %vm543, %v518, 0
        %842 = vmatprep.subr.mxu0 0.0
        %843 = vmatpush1.xpose.msra.mxu0 %v840
        %844 = vmatprep.subr.mxu0 0.0
        %845 = vmatpush1.xpose.msra.mxu0 0.0
        %846 = vmatprep.subr.mxu0 0.0
        %847 = vmatpush1.xpose.msra.mxu0 0.0
        %848 = vmatprep.subr.mxu0 0.0
        %849 = vmatpush1.xpose.msra.mxu0 0.0
        %850 = vmatprep.subr.mxu0 0.0
        %851 = vmatpush1.xpose.msra.mxu0 0.0
        %852 = vmatprep.subr.mxu0 0.0
        %853 = vmatpush1.xpose.msra.mxu0 0.0
        %854 = vmatprep.subr.mxu0 0.0
        %855 = vmatpush1.xpose.msra.mxu0 0.0
        %856 = vmatprep.subr.mxu0 0.0
        %857 = vmatpush1.xpose.msra.mxu0 0.0
        %858 = vmatprep.subr.mxu0 0.0
        %859 = vmatpush1.xpose.msra.mxu0 0.0
        %860 = vmatprep.subr.mxu0 0.0
        %861 = vmatpush1.xpose.msra.mxu0 0.0
        %862 = vmatprep.subr.mxu0 0.0
        %863 = vmatpush1.xpose.msra.mxu0 0.0
        %864 = vmatprep.subr.mxu0 0.0
        %865 = vmatpush1.xpose.msra.mxu0 0.0
        %866 = vmatprep.subr.mxu0 0.0
        %867 = vmatpush1.xpose.msra.mxu0 0.0
        %868 = vmatprep.subr.mxu0 0.0
        %869 = vmatpush1.xpose.msra.mxu0 0.0
        %870 = vmatprep.subr.mxu0 0.0
        %871 = vmatpush1.xpose.msra.mxu0 0.0
        %872 = vmatprep.subr.mxu0 0.0
        %873 = vmatpush1.xpose.msra.mxu0 0.0
        %874 = vmatprep.subr.mxu0 0.0
        %875 = vmatpush1.xpose.msra.mxu0 0.0
        %876 = vmatprep.subr.mxu0 0.0
        %877 = vmatpush1.xpose.msra.mxu0 0.0
        %878 = vmatprep.subr.mxu0 0.0
        %879 = vmatpush1.xpose.msra.mxu0 0.0
        %880 = vmatprep.subr.mxu0 0.0
        %881 = vmatpush1.xpose.msra.mxu0 0.0
        %882 = vmatprep.subr.mxu0 0.0
        %883 = vmatpush1.xpose.msra.mxu0 0.0
        %884 = vmatprep.subr.mxu0 0.0
        %885 = vmatpush1.xpose.msra.mxu0 0.0
        %886 = vmatprep.subr.mxu0 0.0
        %887 = vmatpush1.xpose.msra.mxu0 0.0
        %888 = vmatprep.subr.mxu0 0.0
        %889 = vmatpush1.xpose.msra.mxu0 0.0
        %890 = vmatprep.subr.mxu0 0.0
        %891 = vmatpush1.xpose.msra.mxu0 0.0
        %892 = vmatprep.subr.mxu0 0.0
        %893 = vmatpush1.xpose.msra.mxu0 0.0
        %894 = vmatprep.subr.mxu0 0.0
        %895 = vmatpush1.xpose.msra.mxu0 0.0
        %896 = vmatprep.subr.mxu0 0.0
        %897 = vmatpush1.xpose.msra.mxu0 0.0
        %898 = vmatprep.subr.mxu0 0.0
        %899 = vmatpush1.xpose.msra.mxu0 0.0
        %900 = vmatprep.subr.mxu0 0.0
        %901 = vmatpush1.xpose.msra.mxu0 0.0
        %902 = vmatprep.subr.mxu0 0.0
        %903 = vmatpush1.xpose.msra.mxu0 0.0
        %904 = vmatprep.subr.mxu0 0.0
        %905 = vmatpush1.xpose.msra.mxu0 0.0
        %906 = vmatprep.mubr.f32.mxu0 0.0
        %907 = vmatmul.mubr.f32.gmra.mrb[0].mxu0 %v545
        %v908 = vpop.f32.mrb[0].mxu0
        %v909 = vadd.f32 0.0, %v908
        %v910 = vpop.f32.mrb[0].mxu0
        %911 = vdwg.mxu0
        %v913 = vsel %vm543, %v519, 0
        %915 = vmatprep.subr.mxu0 0.0
        %916 = vmatpush1.xpose.msra.mxu0 %v913
        %917 = vmatprep.subr.mxu0 0.0
        %918 = vmatpush1.xpose.msra.mxu0 0.0
        %919 = vmatprep.subr.mxu0 0.0
        %920 = vmatpush1.xpose.msra.mxu0 0.0
        %921 = vmatprep.subr.mxu0 0.0
        %922 = vmatpush1.xpose.msra.mxu0 0.0
        %923 = vmatprep.subr.mxu0 0.0
        %924 = vmatpush1.xpose.msra.mxu0 0.0
        %925 = vmatprep.subr.mxu0 0.0
        %926 = vmatpush1.xpose.msra.mxu0 0.0
        %927 = vmatprep.subr.mxu0 0.0
        %928 = vmatpush1.xpose.msra.mxu0 0.0
        %929 = vmatprep.subr.mxu0 0.0
        %930 = vmatpush1.xpose.msra.mxu0 0.0
        %931 = vmatprep.subr.mxu0 0.0
        %932 = vmatpush1.xpose.msra.mxu0 0.0
        %933 = vmatprep.subr.mxu0 0.0
        %934 = vmatpush1.xpose.msra.mxu0 0.0
        %935 = vmatprep.subr.mxu0 0.0
        %936 = vmatpush1.xpose.msra.mxu0 0.0
        %937 = vmatprep.subr.mxu0 0.0
        %938 = vmatpush1.xpose.msra.mxu0 0.0
        %939 = vmatprep.subr.mxu0 0.0
        %940 = vmatpush1.xpose.msra.mxu0 0.0
        %941 = vmatprep.subr.mxu0 0.0
        %942 = vmatpush1.xpose.msra.mxu0 0.0
        %943 = vmatprep.subr.mxu0 0.0
        %944 = vmatpush1.xpose.msra.mxu0 0.0
        %945 = vmatprep.subr.mxu0 0.0
        %946 = vmatpush1.xpose.msra.mxu0 0.0
        %947 = vmatprep.subr.mxu0 0.0
        %948 = vmatpush1.xpose.msra.mxu0 0.0
        %949 = vmatprep.subr.mxu0 0.0
        %950 = vmatpush1.xpose.msra.mxu0 0.0
        %951 = vmatprep.subr.mxu0 0.0
        %952 = vmatpush1.xpose.msra.mxu0 0.0
        %953 = vmatprep.subr.mxu0 0.0
        %954 = vmatpush1.xpose.msra.mxu0 0.0
        %955 = vmatprep.subr.mxu0 0.0
        %956 = vmatpush1.xpose.msra.mxu0 0.0
        %957 = vmatprep.subr.mxu0 0.0
        %958 = vmatpush1.xpose.msra.mxu0 0.0
        %959 = vmatprep.subr.mxu0 0.0
        %960 = vmatpush1.xpose.msra.mxu0 0.0
        %961 = vmatprep.subr.mxu0 0.0
        %962 = vmatpush1.xpose.msra.mxu0 0.0
        %963 = vmatprep.subr.mxu0 0.0
        %964 = vmatpush1.xpose.msra.mxu0 0.0
        %965 = vmatprep.subr.mxu0 0.0
        %966 = vmatpush1.xpose.msra.mxu0 0.0
        %967 = vmatprep.subr.mxu0 0.0
        %968 = vmatpush1.xpose.msra.mxu0 0.0
        %969 = vmatprep.subr.mxu0 0.0
        %970 = vmatpush1.xpose.msra.mxu0 0.0
        %971 = vmatprep.subr.mxu0 0.0
        %972 = vmatpush1.xpose.msra.mxu0 0.0
        %973 = vmatprep.subr.mxu0 0.0
        %974 = vmatpush1.xpose.msra.mxu0 0.0
        %975 = vmatprep.subr.mxu0 0.0
        %976 = vmatpush1.xpose.msra.mxu0 0.0
        %977 = vmatprep.subr.mxu0 0.0
        %978 = vmatpush1.xpose.msra.mxu0 0.0
        %979 = vmatprep.mubr.f32.mxu0 0.0
        %980 = vmatmul.mubr.f32.gmra.mrb[0].mxu0 %v545
        %v981 = vpop.f32.mrb[0].mxu0
        %v982 = vadd.f32 0.0, %v981
        %v983 = vpop.f32.mrb[0].mxu0
        %984 = vdwg.mxu0
        %v986 = vsel %vm543, %v520, 0
        %988 = vmatprep.subr.mxu0 0.0
        %989 = vmatpush1.xpose.msra.mxu0 %v986
        %990 = vmatprep.subr.mxu0 0.0
        %991 = vmatpush1.xpose.msra.mxu0 0.0
        %992 = vmatprep.subr.mxu0 0.0
        %993 = vmatpush1.xpose.msra.mxu0 0.0
        %994 = vmatprep.subr.mxu0 0.0
        %995 = vmatpush1.xpose.msra.mxu0 0.0
        %996 = vmatprep.subr.mxu0 0.0
        %997 = vmatpush1.xpose.msra.mxu0 0.0
        %998 = vmatprep.subr.mxu0 0.0
        %999 = vmatpush1.xpose.msra.mxu0 0.0
        %1000 = vmatprep.subr.mxu0 0.0
        %1001 = vmatpush1.xpose.msra.mxu0 0.0
        %1002 = vmatprep.subr.mxu0 0.0
        %1003 = vmatpush1.xpose.msra.mxu0 0.0
        %1004 = vmatprep.subr.mxu0 0.0
        %1005 = vmatpush1.xpose.msra.mxu0 0.0
        %1006 = vmatprep.subr.mxu0 0.0
        %1007 = vmatpush1.xpose.msra.mxu0 0.0
        %1008 = vmatprep.subr.mxu0 0.0
        %1009 = vmatpush1.xpose.msra.mxu0 0.0
        %1010 = vmatprep.subr.mxu0 0.0
        %1011 = vmatpush1.xpose.msra.mxu0 0.0
        %1012 = vmatprep.subr.mxu0 0.0
        %1013 = vmatpush1.xpose.msra.mxu0 0.0
        %1014 = vmatprep.subr.mxu0 0.0
        %1015 = vmatpush1.xpose.msra.mxu0 0.0
        %1016 = vmatprep.subr.mxu0 0.0
        %1017 = vmatpush1.xpose.msra.mxu0 0.0
        %1018 = vmatprep.subr.mxu0 0.0
        %1019 = vmatpush1.xpose.msra.mxu0 0.0
        %1020 = vmatprep.subr.mxu0 0.0
        %1021 = vmatpush1.xpose.msra.mxu0 0.0
        %1022 = vmatprep.subr.mxu0 0.0
        %1023 = vmatpush1.xpose.msra.mxu0 0.0
        %1024 = vmatprep.subr.mxu0 0.0
        %1025 = vmatpush1.xpose.msra.mxu0 0.0
        %1026 = vmatprep.subr.mxu0 0.0
        %1027 = vmatpush1.xpose.msra.mxu0 0.0
        %1028 = vmatprep.subr.mxu0 0.0
        %1029 = vmatpush1.xpose.msra.mxu0 0.0
        %1030 = vmatprep.subr.mxu0 0.0
        %1031 = vmatpush1.xpose.msra.mxu0 0.0
        %1032 = vmatprep.subr.mxu0 0.0
        %1033 = vmatpush1.xpose.msra.mxu0 0.0
        %1034 = vmatprep.subr.mxu0 0.0
        %1035 = vmatpush1.xpose.msra.mxu0 0.0
        %1036 = vmatprep.subr.mxu0 0.0
        %1037 = vmatpush1.xpose.msra.mxu0 0.0
        %1038 = vmatprep.subr.mxu0 0.0
        %1039 = vmatpush1.xpose.msra.mxu0 0.0
        %1040 = vmatprep.subr.mxu0 0.0
        %1041 = vmatpush1.xpose.msra.mxu0 0.0
        %1042 = vmatprep.subr.mxu0 0.0
        %1043 = vmatpush1.xpose.msra.mxu0 0.0
        %1044 = vmatprep.subr.mxu0 0.0
        %1045 = vmatpush1.xpose.msra.mxu0 0.0
        %1046 = vmatprep.subr.mxu0 0.0
        %1047 = vmatpush1.xpose.msra.mxu0 0.0
        %1048 = vmatprep.subr.mxu0 0.0
        %1049 = vmatpush1.xpose.msra.mxu0 0.0
        %1050 = vmatprep.subr.mxu0 0.0
        %1051 = vmatpush1.xpose.msra.mxu0 0.0
        %1052 = vmatprep.mubr.f32.mxu0 0.0
        %1053 = vmatmul.mubr.f32.gmra.mrb[0].mxu0 %v545
        %v1054 = vpop.f32.mrb[0].mxu0
        %v1055 = vadd.f32 0.0, %v1054
        %v1056 = vpop.f32.mrb[0].mxu0
        %1057 = vdwg.mxu0
        %v1059 = vsel %vm543, %v521, 0
        %1061 = vmatprep.subr.mxu0 0.0
        %1062 = vmatpush1.xpose.msra.mxu0 %v1059
        %1063 = vmatprep.subr.mxu0 0.0
        %1064 = vmatpush1.xpose.msra.mxu0 0.0
        %1065 = vmatprep.subr.mxu0 0.0
        %1066 = vmatpush1.xpose.msra.mxu0 0.0
        %1067 = vmatprep.subr.mxu0 0.0
        %1068 = vmatpush1.xpose.msra.mxu0 0.0
        %1069 = vmatprep.subr.mxu0 0.0
        %1070 = vmatpush1.xpose.msra.mxu0 0.0
        %1071 = vmatprep.subr.mxu0 0.0
        %1072 = vmatpush1.xpose.msra.mxu0 0.0
        %1073 = vmatprep.subr.mxu0 0.0
        %1074 = vmatpush1.xpose.msra.mxu0 0.0
        %1075 = vmatprep.subr.mxu0 0.0
        %1076 = vmatpush1.xpose.msra.mxu0 0.0
        %1077 = vmatprep.subr.mxu0 0.0
        %1078 = vmatpush1.xpose.msra.mxu0 0.0
        %1079 = vmatprep.subr.mxu0 0.0
        %1080 = vmatpush1.xpose.msra.mxu0 0.0
        %1081 = vmatprep.subr.mxu0 0.0
        %1082 = vmatpush1.xpose.msra.mxu0 0.0
        %1083 = vmatprep.subr.mxu0 0.0
        %1084 = vmatpush1.xpose.msra.mxu0 0.0
        %1085 = vmatprep.subr.mxu0 0.0
        %1086 = vmatpush1.xpose.msra.mxu0 0.0
        %1087 = vmatprep.subr.mxu0 0.0
        %1088 = vmatpush1.xpose.msra.mxu0 0.0
        %1089 = vmatprep.subr.mxu0 0.0
        %1090 = vmatpush1.xpose.msra.mxu0 0.0
        %1091 = vmatprep.subr.mxu0 0.0
        %1092 = vmatpush1.xpose.msra.mxu0 0.0
        %1093 = vmatprep.subr.mxu0 0.0
        %1094 = vmatpush1.xpose.msra.mxu0 0.0
        %1095 = vmatprep.subr.mxu0 0.0
        %1096 = vmatpush1.xpose.msra.mxu0 0.0
        %1097 = vmatprep.subr.mxu0 0.0
        %1098 = vmatpush1.xpose.msra.mxu0 0.0
        %1099 = vmatprep.subr.mxu0 0.0
        %1100 = vmatpush1.xpose.msra.mxu0 0.0
        %1101 = vmatprep.subr.mxu0 0.0
        %1102 = vmatpush1.xpose.msra.mxu0 0.0
        %1103 = vmatprep.subr.mxu0 0.0
        %1104 = vmatpush1.xpose.msra.mxu0 0.0
        %1105 = vmatprep.subr.mxu0 0.0
        %1106 = vmatpush1.xpose.msra.mxu0 0.0
        %1107 = vmatprep.subr.mxu0 0.0
        %1108 = vmatpush1.xpose.msra.mxu0 0.0
        %1109 = vmatprep.subr.mxu0 0.0
        %1110 = vmatpush1.xpose.msra.mxu0 0.0
        %1111 = vmatprep.subr.mxu0 0.0
        %1112 = vmatpush1.xpose.msra.mxu0 0.0
        %1113 = vmatprep.subr.mxu0 0.0
        %1114 = vmatpush1.xpose.msra.mxu0 0.0
        %1115 = vmatprep.subr.mxu0 0.0
        %1116 = vmatpush1.xpose.msra.mxu0 0.0
        %1117 = vmatprep.subr.mxu0 0.0
        %1118 = vmatpush1.xpose.msra.mxu0 0.0
        %1119 = vmatprep.subr.mxu0 0.0
        %1120 = vmatpush1.xpose.msra.mxu0 0.0
        %1121 = vmatprep.subr.mxu0 0.0
        %1122 = vmatpush1.xpose.msra.mxu0 0.0
        %1123 = vmatprep.subr.mxu0 0.0
        %1124 = vmatpush1.xpose.msra.mxu0 0.0
        %1125 = vmatprep.mubr.f32.mxu0 0.0
        %1126 = vmatmul.mubr.f32.gmra.mrb[0].mxu0 %v545
        %v1127 = vpop.f32.mrb[0].mxu0
        %v1128 = vadd.f32 0.0, %v1127
        %v1129 = vpop.f32.mrb[0].mxu0
        %1130 = vdwg.mxu0
        %v1132 = vsel %vm543, %v522, 0
        %1134 = vmatprep.subr.mxu0 0.0
        %1135 = vmatpush1.xpose.msra.mxu0 %v1132
        %1136 = vmatprep.subr.mxu0 0.0
        %1137 = vmatpush1.xpose.msra.mxu0 0.0
        %1138 = vmatprep.subr.mxu0 0.0
        %1139 = vmatpush1.xpose.msra.mxu0 0.0
        %1140 = vmatprep.subr.mxu0 0.0
        %1141 = vmatpush1.xpose.msra.mxu0 0.0
        %1142 = vmatprep.subr.mxu0 0.0
        %1143 = vmatpush1.xpose.msra.mxu0 0.0
        %1144 = vmatprep.subr.mxu0 0.0
        %1145 = vmatpush1.xpose.msra.mxu0 0.0
        %1146 = vmatprep.subr.mxu0 0.0
        %1147 = vmatpush1.xpose.msra.mxu0 0.0
        %1148 = vmatprep.subr.mxu0 0.0
        %1149 = vmatpush1.xpose.msra.mxu0 0.0
        %1150 = vmatprep.subr.mxu0 0.0
        %1151 = vmatpush1.xpose.msra.mxu0 0.0
        %1152 = vmatprep.subr.mxu0 0.0
        %1153 = vmatpush1.xpose.msra.mxu0 0.0
        %1154 = vmatprep.subr.mxu0 0.0
        %1155 = vmatpush1.xpose.msra.mxu0 0.0
        %1156 = vmatprep.subr.mxu0 0.0
        %1157 = vmatpush1.xpose.msra.mxu0 0.0
        %1158 = vmatprep.subr.mxu0 0.0
        %1159 = vmatpush1.xpose.msra.mxu0 0.0
        %1160 = vmatprep.subr.mxu0 0.0
        %1161 = vmatpush1.xpose.msra.mxu0 0.0
        %1162 = vmatprep.subr.mxu0 0.0
        %1163 = vmatpush1.xpose.msra.mxu0 0.0
        %1164 = vmatprep.subr.mxu0 0.0
        %1165 = vmatpush1.xpose.msra.mxu0 0.0
        %1166 = vmatprep.subr.mxu0 0.0
        %1167 = vmatpush1.xpose.msra.mxu0 0.0
        %1168 = vmatprep.subr.mxu0 0.0
        %1169 = vmatpush1.xpose.msra.mxu0 0.0
        %1170 = vmatprep.subr.mxu0 0.0
        %1171 = vmatpush1.xpose.msra.mxu0 0.0
        %1172 = vmatprep.subr.mxu0 0.0
        %1173 = vmatpush1.xpose.msra.mxu0 0.0
        %1174 = vmatprep.subr.mxu0 0.0
        %1175 = vmatpush1.xpose.msra.mxu0 0.0
        %1176 = vmatprep.subr.mxu0 0.0
        %1177 = vmatpush1.xpose.msra.mxu0 0.0
        %1178 = vmatprep.subr.mxu0 0.0
        %1179 = vmatpush1.xpose.msra.mxu0 0.0
        %1180 = vmatprep.subr.mxu0 0.0
        %1181 = vmatpush1.xpose.msra.mxu0 0.0
        %1182 = vmatprep.subr.mxu0 0.0
        %1183 = vmatpush1.xpose.msra.mxu0 0.0
        %1184 = vmatprep.subr.mxu0 0.0
        %1185 = vmatpush1.xpose.msra.mxu0 0.0
        %1186 = vmatprep.subr.mxu0 0.0
        %1187 = vmatpush1.xpose.msra.mxu0 0.0
        %1188 = vmatprep.subr.mxu0 0.0
        %1189 = vmatpush1.xpose.msra.mxu0 0.0
        %1190 = vmatprep.subr.mxu0 0.0
        %1191 = vmatpush1.xpose.msra.mxu0 0.0
        %1192 = vmatprep.subr.mxu0 0.0
        %1193 = vmatpush1.xpose.msra.mxu0 0.0
        %1194 = vmatprep.subr.mxu0 0.0
        %1195 = vmatpush1.xpose.msra.mxu0 0.0
        %1196 = vmatprep.subr.mxu0 0.0
        %1197 = vmatpush1.xpose.msra.mxu0 0.0
        %1198 = vmatprep.mubr.f32.mxu0 0.0
        %1199 = vmatmul.mubr.f32.gmra.mrb[0].mxu0 %v545
        %v1200 = vpop.f32.mrb[0].mxu0
        %v1201 = vadd.f32 0.0, %v1200
        %v1202 = vpop.f32.mrb[0].mxu0
        %1203 = vdwg.mxu0
        %v1205 = vsel %vm543, %v523, 0
        %1207 = vmatprep.subr.mxu0 0.0
        %1208 = vmatpush1.xpose.msra.mxu0 %v1205
        %1209 = vmatprep.subr.mxu0 0.0
        %1210 = vmatpush1.xpose.msra.mxu0 0.0
        %1211 = vmatprep.subr.mxu0 0.0
        %1212 = vmatpush1.xpose.msra.mxu0 0.0
        %1213 = vmatprep.subr.mxu0 0.0
        %1214 = vmatpush1.xpose.msra.mxu0 0.0
        %1215 = vmatprep.subr.mxu0 0.0
        %1216 = vmatpush1.xpose.msra.mxu0 0.0
        %1217 = vmatprep.subr.mxu0 0.0
        %1218 = vmatpush1.xpose.msra.mxu0 0.0
        %1219 = vmatprep.subr.mxu0 0.0
        %1220 = vmatpush1.xpose.msra.mxu0 0.0
        %1221 = vmatprep.subr.mxu0 0.0
        %1222 = vmatpush1.xpose.msra.mxu0 0.0
        %1223 = vmatprep.subr.mxu0 0.0
        %1224 = vmatpush1.xpose.msra.mxu0 0.0
        %1225 = vmatprep.subr.mxu0 0.0
        %1226 = vmatpush1.xpose.msra.mxu0 0.0
        %1227 = vmatprep.subr.mxu0 0.0
        %1228 = vmatpush1.xpose.msra.mxu0 0.0
        %1229 = vmatprep.subr.mxu0 0.0
        %1230 = vmatpush1.xpose.msra.mxu0 0.0
        %1231 = vmatprep.subr.mxu0 0.0
        %1232 = vmatpush1.xpose.msra.mxu0 0.0
        %1233 = vmatprep.subr.mxu0 0.0
        %1234 = vmatpush1.xpose.msra.mxu0 0.0
        %1235 = vmatprep.subr.mxu0 0.0
        %1236 = vmatpush1.xpose.msra.mxu0 0.0
        %1237 = vmatprep.subr.mxu0 0.0
        %1238 = vmatpush1.xpose.msra.mxu0 0.0
        %1239 = vmatprep.subr.mxu0 0.0
        %1240 = vmatpush1.xpose.msra.mxu0 0.0
        %1241 = vmatprep.subr.mxu0 0.0
        %1242 = vmatpush1.xpose.msra.mxu0 0.0
        %1243 = vmatprep.subr.mxu0 0.0
        %1244 = vmatpush1.xpose.msra.mxu0 0.0
        %1245 = vmatprep.subr.mxu0 0.0
        %1246 = vmatpush1.xpose.msra.mxu0 0.0
        %1247 = vmatprep.subr.mxu0 0.0
        %1248 = vmatpush1.xpose.msra.mxu0 0.0
        %1249 = vmatprep.subr.mxu0 0.0
        %1250 = vmatpush1.xpose.msra.mxu0 0.0
        %1251 = vmatprep.subr.mxu0 0.0
        %1252 = vmatpush1.xpose.msra.mxu0 0.0
        %1253 = vmatprep.subr.mxu0 0.0
        %1254 = vmatpush1.xpose.msra.mxu0 0.0
        %1255 = vmatprep.subr.mxu0 0.0
        %1256 = vmatpush1.xpose.msra.mxu0 0.0
        %1257 = vmatprep.subr.mxu0 0.0
        %1258 = vmatpush1.xpose.msra.mxu0 0.0
        %1259 = vmatprep.subr.mxu0 0.0
        %1260 = vmatpush1.xpose.msra.mxu0 0.0
        %1261 = vmatprep.subr.mxu0 0.0
        %1262 = vmatpush1.xpose.msra.mxu0 0.0
        %1263 = vmatprep.subr.mxu0 0.0
        %1264 = vmatpush1.xpose.msra.mxu0 0.0
        %1265 = vmatprep.subr.mxu0 0.0
        %1266 = vmatpush1.xpose.msra.mxu0 0.0
        %1267 = vmatprep.subr.mxu0 0.0
        %1268 = vmatpush1.xpose.msra.mxu0 0.0
        %1269 = vmatprep.subr.mxu0 0.0
        %1270 = vmatpush1.xpose.msra.mxu0 0.0
        %1271 = vmatprep.mubr.f32.mxu0 0.0
        %1272 = vmatmul.mubr.f32.gmra.mrb[0].mxu0 %v545
        %v1273 = vpop.f32.mrb[0].mxu0
        %v1274 = vadd.f32 0.0, %v1273
        %v1275 = vpop.f32.mrb[0].mxu0
        %1276 = vdwg.mxu0
        %v1278 = vsel %vm543, %v524, 0
        %1280 = vmatprep.subr.mxu0 0.0
        %1281 = vmatpush1.xpose.msra.mxu0 %v1278
        %1282 = vmatprep.subr.mxu0 0.0
        %1283 = vmatpush1.xpose.msra.mxu0 0.0
        %1284 = vmatprep.subr.mxu0 0.0
        %1285 = vmatpush1.xpose.msra.mxu0 0.0
        %1286 = vmatprep.subr.mxu0 0.0
        %1287 = vmatpush1.xpose.msra.mxu0 0.0
        %1288 = vmatprep.subr.mxu0 0.0
        %1289 = vmatpush1.xpose.msra.mxu0 0.0
        %1290 = vmatprep.subr.mxu0 0.0
        %1291 = vmatpush1.xpose.msra.mxu0 0.0
        %1292 = vmatprep.subr.mxu0 0.0
        %1293 = vmatpush1.xpose.msra.mxu0 0.0
        %1294 = vmatprep.subr.mxu0 0.0
        %1295 = vmatpush1.xpose.msra.mxu0 0.0
        %1296 = vmatprep.subr.mxu0 0.0
        %1297 = vmatpush1.xpose.msra.mxu0 0.0
        %1298 = vmatprep.subr.mxu0 0.0
        %1299 = vmatpush1.xpose.msra.mxu0 0.0
        %1300 = vmatprep.subr.mxu0 0.0
        %1301 = vmatpush1.xpose.msra.mxu0 0.0
        %1302 = vmatprep.subr.mxu0 0.0
        %1303 = vmatpush1.xpose.msra.mxu0 0.0
        %1304 = vmatprep.subr.mxu0 0.0
        %1305 = vmatpush1.xpose.msra.mxu0 0.0
        %1306 = vmatprep.subr.mxu0 0.0
        %1307 = vmatpush1.xpose.msra.mxu0 0.0
        %1308 = vmatprep.subr.mxu0 0.0
        %1309 = vmatpush1.xpose.msra.mxu0 0.0
        %1310 = vmatprep.subr.mxu0 0.0
        %1311 = vmatpush1.xpose.msra.mxu0 0.0
        %1312 = vmatprep.subr.mxu0 0.0
        %1313 = vmatpush1.xpose.msra.mxu0 0.0
        %1314 = vmatprep.subr.mxu0 0.0
        %1315 = vmatpush1.xpose.msra.mxu0 0.0
        %1316 = vmatprep.subr.mxu0 0.0
        %1317 = vmatpush1.xpose.msra.mxu0 0.0
        %1318 = vmatprep.subr.mxu0 0.0
        %1319 = vmatpush1.xpose.msra.mxu0 0.0
        %1320 = vmatprep.subr.mxu0 0.0
        %1321 = vmatpush1.xpose.msra.mxu0 0.0
        %1322 = vmatprep.subr.mxu0 0.0
        %1323 = vmatpush1.xpose.msra.mxu0 0.0
        %1324 = vmatprep.subr.mxu0 0.0
        %1325 = vmatpush1.xpose.msra.mxu0 0.0
        %1326 = vmatprep.subr.mxu0 0.0
        %1327 = vmatpush1.xpose.msra.mxu0 0.0
        %1328 = vmatprep.subr.mxu0 0.0
        %1329 = vmatpush1.xpose.msra.mxu0 0.0
        %1330 = vmatprep.subr.mxu0 0.0
        %1331 = vmatpush1.xpose.msra.mxu0 0.0
        %1332 = vmatprep.subr.mxu0 0.0
        %1333 = vmatpush1.xpose.msra.mxu0 0.0
        %1334 = vmatprep.subr.mxu0 0.0
        %1335 = vmatpush1.xpose.msra.mxu0 0.0
        %1336 = vmatprep.subr.mxu0 0.0
        %1337 = vmatpush1.xpose.msra.mxu0 0.0
        %1338 = vmatprep.subr.mxu0 0.0
        %1339 = vmatpush1.xpose.msra.mxu0 0.0
        %1340 = vmatprep.subr.mxu0 0.0
        %1341 = vmatpush1.xpose.msra.mxu0 0.0
        %1342 = vmatprep.subr.mxu0 0.0
        %1343 = vmatpush1.xpose.msra.mxu0 0.0
        %1344 = vmatprep.mubr.f32.mxu0 0.0
        %1345 = vmatmul.mubr.f32.gmra.mrb[0].mxu0 %v545
        %v1346 = vpop.f32.mrb[0].mxu0
        %v1347 = vadd.f32 0.0, %v1346
        %v1348 = vpop.f32.mrb[0].mxu0
        %1349 = vdwg.mxu0
        %v1351 = vsel %vm543, %v525, 0
        %1353 = vmatprep.subr.mxu0 0.0
        %1354 = vmatpush1.xpose.msra.mxu0 %v1351
        %1355 = vmatprep.subr.mxu0 0.0
        %1356 = vmatpush1.xpose.msra.mxu0 0.0
        %1357 = vmatprep.subr.mxu0 0.0
        %1358 = vmatpush1.xpose.msra.mxu0 0.0
        %1359 = vmatprep.subr.mxu0 0.0
        %1360 = vmatpush1.xpose.msra.mxu0 0.0
        %1361 = vmatprep.subr.mxu0 0.0
        %1362 = vmatpush1.xpose.msra.mxu0 0.0
        %1363 = vmatprep.subr.mxu0 0.0
        %1364 = vmatpush1.xpose.msra.mxu0 0.0
        %1365 = vmatprep.subr.mxu0 0.0
        %1366 = vmatpush1.xpose.msra.mxu0 0.0
        %1367 = vmatprep.subr.mxu0 0.0
        %1368 = vmatpush1.xpose.msra.mxu0 0.0
        %1369 = vmatprep.subr.mxu0 0.0
        %1370 = vmatpush1.xpose.msra.mxu0 0.0
        %1371 = vmatprep.subr.mxu0 0.0
        %1372 = vmatpush1.xpose.msra.mxu0 0.0
        %1373 = vmatprep.subr.mxu0 0.0
        %1374 = vmatpush1.xpose.msra.mxu0 0.0
        %1375 = vmatprep.subr.mxu0 0.0
        %1376 = vmatpush1.xpose.msra.mxu0 0.0
        %1377 = vmatprep.subr.mxu0 0.0
        %1378 = vmatpush1.xpose.msra.mxu0 0.0
        %1379 = vmatprep.subr.mxu0 0.0
        %1380 = vmatpush1.xpose.msra.mxu0 0.0
        %1381 = vmatprep.subr.mxu0 0.0
        %1382 = vmatpush1.xpose.msra.mxu0 0.0
        %1383 = vmatprep.subr.mxu0 0.0
        %1384 = vmatpush1.xpose.msra.mxu0 0.0
        %1385 = vmatprep.subr.mxu0 0.0
        %1386 = vmatpush1.xpose.msra.mxu0 0.0
        %1387 = vmatprep.subr.mxu0 0.0
        %1388 = vmatpush1.xpose.msra.mxu0 0.0
        %1389 = vmatprep.subr.mxu0 0.0
        %1390 = vmatpush1.xpose.msra.mxu0 0.0
        %1391 = vmatprep.subr.mxu0 0.0
        %1392 = vmatpush1.xpose.msra.mxu0 0.0
        %1393 = vmatprep.subr.mxu0 0.0
        %1394 = vmatpush1.xpose.msra.mxu0 0.0
        %1395 = vmatprep.subr.mxu0 0.0
        %1396 = vmatpush1.xpose.msra.mxu0 0.0
        %1397 = vmatprep.subr.mxu0 0.0
        %1398 = vmatpush1.xpose.msra.mxu0 0.0
        %1399 = vmatprep.subr.mxu0 0.0
        %1400 = vmatpush1.xpose.msra.mxu0 0.0
        %1401 = vmatprep.subr.mxu0 0.0
        %1402 = vmatpush1.xpose.msra.mxu0 0.0
        %1403 = vmatprep.subr.mxu0 0.0
        %1404 = vmatpush1.xpose.msra.mxu0 0.0
        %1405 = vmatprep.subr.mxu0 0.0
        %1406 = vmatpush1.xpose.msra.mxu0 0.0
        %1407 = vmatprep.subr.mxu0 0.0
        %1408 = vmatpush1.xpose.msra.mxu0 0.0
        %1409 = vmatprep.subr.mxu0 0.0
        %1410 = vmatpush1.xpose.msra.mxu0 0.0
        %1411 = vmatprep.subr.mxu0 0.0
        %1412 = vmatpush1.xpose.msra.mxu0 0.0
        %1413 = vmatprep.subr.mxu0 0.0
        %1414 = vmatpush1.xpose.msra.mxu0 0.0
        %1415 = vmatprep.subr.mxu0 0.0
        %1416 = vmatpush1.xpose.msra.mxu0 0.0
        %1417 = vmatprep.mubr.f32.mxu0 0.0
        %1418 = vmatmul.mubr.f32.gmra.mrb[0].mxu0 %v545
        %v1419 = vpop.f32.mrb[0].mxu0
        %v1420 = vadd.f32 0.0, %v1419
        %v1421 = vpop.f32.mrb[0].mxu0
        %1422 = vdwg.mxu0
        %vm1423 = vcmask 64512
        %v1425 = vsel %vm1423, %v617, 0
        %v1428 = vsel %vm1423, %v909, 0
        %1430 = vmatprep.subr.mxu0 0.0
        %1431 = vmatpush1.xpose.msra.mxu0 %v1428
        %1432 = vmatprep.subr.mxu0 0.0
        %1433 = vmatpush1.xpose.msra.mxu0 0.0
        %1434 = vmatprep.subr.mxu0 0.0
        %1435 = vmatpush1.xpose.msra.mxu0 0.0
        %1436 = vmatprep.subr.mxu0 0.0
        %1437 = vmatpush1.xpose.msra.mxu0 0.0
        %1438 = vmatprep.subr.mxu0 0.0
        %1439 = vmatpush1.xpose.msra.mxu0 0.0
        %1440 = vmatprep.subr.mxu0 0.0
        %1441 = vmatpush1.xpose.msra.mxu0 0.0
        %1442 = vmatprep.subr.mxu0 0.0
        %1443 = vmatpush1.xpose.msra.mxu0 0.0
        %1444 = vmatprep.subr.mxu0 0.0
        %1445 = vmatpush1.xpose.msra.mxu0 0.0
        %1446 = vmatprep.subr.mxu0 0.0
        %1447 = vmatpush1.xpose.msra.mxu0 0.0
        %1448 = vmatprep.subr.mxu0 0.0
        %1449 = vmatpush1.xpose.msra.mxu0 0.0
        %1450 = vmatprep.subr.mxu0 0.0
        %1451 = vmatpush1.xpose.msra.mxu0 0.0
        %1452 = vmatprep.subr.mxu0 0.0
        %1453 = vmatpush1.xpose.msra.mxu0 0.0
        %1454 = vmatprep.subr.mxu0 0.0
        %1455 = vmatpush1.xpose.msra.mxu0 0.0
        %1456 = vmatprep.subr.mxu0 0.0
        %1457 = vmatpush1.xpose.msra.mxu0 0.0
        %1458 = vmatprep.subr.mxu0 0.0
        %1459 = vmatpush1.xpose.msra.mxu0 0.0
        %1460 = vmatprep.subr.mxu0 0.0
        %1461 = vmatpush1.xpose.msra.mxu0 0.0
        %1462 = vmatprep.subr.mxu0 0.0
        %1463 = vmatpush1.xpose.msra.mxu0 0.0
        %1464 = vmatprep.subr.mxu0 0.0
        %1465 = vmatpush1.xpose.msra.mxu0 0.0
        %1466 = vmatprep.subr.mxu0 0.0
        %1467 = vmatpush1.xpose.msra.mxu0 0.0
        %1468 = vmatprep.subr.mxu0 0.0
        %1469 = vmatpush1.xpose.msra.mxu0 0.0
        %1470 = vmatprep.subr.mxu0 0.0
        %1471 = vmatpush1.xpose.msra.mxu0 0.0
        %1472 = vmatprep.subr.mxu0 0.0
        %1473 = vmatpush1.xpose.msra.mxu0 0.0
        %1474 = vmatprep.subr.mxu0 0.0
        %1475 = vmatpush1.xpose.msra.mxu0 0.0
        %1476 = vmatprep.subr.mxu0 0.0
        %1477 = vmatpush1.xpose.msra.mxu0 0.0
        %1478 = vmatprep.subr.mxu0 0.0
        %1479 = vmatpush1.xpose.msra.mxu0 0.0
        %1480 = vmatprep.subr.mxu0 0.0
        %1481 = vmatpush1.xpose.msra.mxu0 0.0
        %1482 = vmatprep.subr.mxu0 0.0
        %1483 = vmatpush1.xpose.msra.mxu0 0.0
        %1484 = vmatprep.subr.mxu0 0.0
        %1485 = vmatpush1.xpose.msra.mxu0 0.0
        %1486 = vmatprep.subr.mxu0 0.0
        %1487 = vmatpush1.xpose.msra.mxu0 0.0
        %1488 = vmatprep.subr.mxu0 0.0
        %1489 = vmatpush1.xpose.msra.mxu0 0.0
        %1490 = vmatprep.subr.mxu0 0.0
        %1491 = vmatpush1.xpose.msra.mxu0 0.0
        %1492 = vmatprep.subr.mxu0 0.0
        %1493 = vmatpush1.xpose.msra.mxu0 0.0
        %1494 = vmatprep.mubr.f32.mxu0 0.0
        %1495 = vmatmul.mubr.f32.gmra.mrb[0].mxu0 %v1425
        %v1496 = vpop.f32.mrb[0].mxu0
        %v1497 = vadd.f32 0.0, %v1496
        %v1498 = vpop.f32.mrb[0].mxu0
        %1499 = vdwg.mxu0
        %v1501 = vsel %vm1423, %v690, 0
        %v1504 = vsel %vm1423, %v982, 0
        %1506 = vmatprep.subr.mxu0 0.0
        %1507 = vmatpush1.xpose.msra.mxu0 %v1504
        %1508 = vmatprep.subr.mxu0 0.0
        %1509 = vmatpush1.xpose.msra.mxu0 0.0
        %1510 = vmatprep.subr.mxu0 0.0
        %1511 = vmatpush1.xpose.msra.mxu0 0.0
        %1512 = vmatprep.subr.mxu0 0.0
        %1513 = vmatpush1.xpose.msra.mxu0 0.0
        %1514 = vmatprep.subr.mxu0 0.0
        %1515 = vmatpush1.xpose.msra.mxu0 0.0
        %1516 = vmatprep.subr.mxu0 0.0
        %1517 = vmatpush1.xpose.msra.mxu0 0.0
        %1518 = vmatprep.subr.mxu0 0.0
        %1519 = vmatpush1.xpose.msra.mxu0 0.0
        %1520 = vmatprep.subr.mxu0 0.0
        %1521 = vmatpush1.xpose.msra.mxu0 0.0
        %1522 = vmatprep.subr.mxu0 0.0
        %1523 = vmatpush1.xpose.msra.mxu0 0.0
        %1524 = vmatprep.subr.mxu0 0.0
        %1525 = vmatpush1.xpose.msra.mxu0 0.0
        %1526 = vmatprep.subr.mxu0 0.0
        %1527 = vmatpush1.xpose.msra.mxu0 0.0
        %1528 = vmatprep.subr.mxu0 0.0
        %1529 = vmatpush1.xpose.msra.mxu0 0.0
        %1530 = vmatprep.subr.mxu0 0.0
        %1531 = vmatpush1.xpose.msra.mxu0 0.0
        %1532 = vmatprep.subr.mxu0 0.0
        %1533 = vmatpush1.xpose.msra.mxu0 0.0
        %1534 = vmatprep.subr.mxu0 0.0
        %1535 = vmatpush1.xpose.msra.mxu0 0.0
        %1536 = vmatprep.subr.mxu0 0.0
        %1537 = vmatpush1.xpose.msra.mxu0 0.0
        %1538 = vmatprep.subr.mxu0 0.0
        %1539 = vmatpush1.xpose.msra.mxu0 0.0
        %1540 = vmatprep.subr.mxu0 0.0
        %1541 = vmatpush1.xpose.msra.mxu0 0.0
        %1542 = vmatprep.subr.mxu0 0.0
        %1543 = vmatpush1.xpose.msra.mxu0 0.0
        %1544 = vmatprep.subr.mxu0 0.0
        %1545 = vmatpush1.xpose.msra.mxu0 0.0
        %1546 = vmatprep.subr.mxu0 0.0
        %1547 = vmatpush1.xpose.msra.mxu0 0.0
        %1548 = vmatprep.subr.mxu0 0.0
        %1549 = vmatpush1.xpose.msra.mxu0 0.0
        %1550 = vmatprep.subr.mxu0 0.0
        %1551 = vmatpush1.xpose.msra.mxu0 0.0
        %1552 = vmatprep.subr.mxu0 0.0
        %1553 = vmatpush1.xpose.msra.mxu0 0.0
        %1554 = vmatprep.subr.mxu0 0.0
        %1555 = vmatpush1.xpose.msra.mxu0 0.0
        %1556 = vmatprep.subr.mxu0 0.0
        %1557 = vmatpush1.xpose.msra.mxu0 0.0
        %1558 = vmatprep.subr.mxu0 0.0
        %1559 = vmatpush1.xpose.msra.mxu0 0.0
        %1560 = vmatprep.subr.mxu0 0.0
        %1561 = vmatpush1.xpose.msra.mxu0 0.0
        %1562 = vmatprep.subr.mxu0 0.0
        %1563 = vmatpush1.xpose.msra.mxu0 0.0
        %1564 = vmatprep.subr.mxu0 0.0
        %1565 = vmatpush1.xpose.msra.mxu0 0.0
        %1566 = vmatprep.subr.mxu0 0.0
        %1567 = vmatpush1.xpose.msra.mxu0 0.0
        %1568 = vmatprep.subr.mxu0 0.0
        %1569 = vmatpush1.xpose.msra.mxu0 0.0
        %1570 = vmatprep.mubr.f32.mxu0 0.0
        %1571 = vmatmul.mubr.f32.gmra.mrb[0].mxu0 %v1501
        %v1572 = vpop.f32.mrb[0].mxu0
        %v1573 = vadd.f32 0.0, %v1572
        %v1574 = vpop.f32.mrb[0].mxu0
        %1575 = vdwg.mxu0
        %v1577 = vsel %vm1423, %v763, 0
        %v1580 = vsel %vm1423, %v1055, 0
        %1582 = vmatprep.subr.mxu0 0.0
        %1583 = vmatpush1.xpose.msra.mxu0 %v1580
        %1584 = vmatprep.subr.mxu0 0.0
        %1585 = vmatpush1.xpose.msra.mxu0 0.0
        %1586 = vmatprep.subr.mxu0 0.0
        %1587 = vmatpush1.xpose.msra.mxu0 0.0
        %1588 = vmatprep.subr.mxu0 0.0
        %1589 = vmatpush1.xpose.msra.mxu0 0.0
        %1590 = vmatprep.subr.mxu0 0.0
        %1591 = vmatpush1.xpose.msra.mxu0 0.0
        %1592 = vmatprep.subr.mxu0 0.0
        %1593 = vmatpush1.xpose.msra.mxu0 0.0
        %1594 = vmatprep.subr.mxu0 0.0
        %1595 = vmatpush1.xpose.msra.mxu0 0.0
        %1596 = vmatprep.subr.mxu0 0.0
        %1597 = vmatpush1.xpose.msra.mxu0 0.0
        %1598 = vmatprep.subr.mxu0 0.0
        %1599 = vmatpush1.xpose.msra.mxu0 0.0
        %1600 = vmatprep.subr.mxu0 0.0
        %1601 = vmatpush1.xpose.msra.mxu0 0.0
        %1602 = vmatprep.subr.mxu0 0.0
        %1603 = vmatpush1.xpose.msra.mxu0 0.0
        %1604 = vmatprep.subr.mxu0 0.0
        %1605 = vmatpush1.xpose.msra.mxu0 0.0
        %1606 = vmatprep.subr.mxu0 0.0
        %1607 = vmatpush1.xpose.msra.mxu0 0.0
        %1608 = vmatprep.subr.mxu0 0.0
        %1609 = vmatpush1.xpose.msra.mxu0 0.0
        %1610 = vmatprep.subr.mxu0 0.0
        %1611 = vmatpush1.xpose.msra.mxu0 0.0
        %1612 = vmatprep.subr.mxu0 0.0
        %1613 = vmatpush1.xpose.msra.mxu0 0.0
        %1614 = vmatprep.subr.mxu0 0.0
        %1615 = vmatpush1.xpose.msra.mxu0 0.0
        %1616 = vmatprep.subr.mxu0 0.0
        %1617 = vmatpush1.xpose.msra.mxu0 0.0
        %1618 = vmatprep.subr.mxu0 0.0
        %1619 = vmatpush1.xpose.msra.mxu0 0.0
        %1620 = vmatprep.subr.mxu0 0.0
        %1621 = vmatpush1.xpose.msra.mxu0 0.0
        %1622 = vmatprep.subr.mxu0 0.0
        %1623 = vmatpush1.xpose.msra.mxu0 0.0
        %1624 = vmatprep.subr.mxu0 0.0
        %1625 = vmatpush1.xpose.msra.mxu0 0.0
        %1626 = vmatprep.subr.mxu0 0.0
        %1627 = vmatpush1.xpose.msra.mxu0 0.0
        %1628 = vmatprep.subr.mxu0 0.0
        %1629 = vmatpush1.xpose.msra.mxu0 0.0
        %1630 = vmatprep.subr.mxu0 0.0
        %1631 = vmatpush1.xpose.msra.mxu0 0.0
        %1632 = vmatprep.subr.mxu0 0.0
        %1633 = vmatpush1.xpose.msra.mxu0 0.0
        %1634 = vmatprep.subr.mxu0 0.0
        %1635 = vmatpush1.xpose.msra.mxu0 0.0
        %1636 = vmatprep.subr.mxu0 0.0
        %1637 = vmatpush1.xpose.msra.mxu0 0.0
        %1638 = vmatprep.subr.mxu0 0.0
        %1639 = vmatpush1.xpose.msra.mxu0 0.0
        %1640 = vmatprep.subr.mxu0 0.0
        %1641 = vmatpush1.xpose.msra.mxu0 0.0
        %1642 = vmatprep.subr.mxu0 0.0
        %1643 = vmatpush1.xpose.msra.mxu0 0.0
        %1644 = vmatprep.subr.mxu0 0.0
        %1645 = vmatpush1.xpose.msra.mxu0 0.0
        %1646 = vmatprep.mubr.f32.mxu0 0.0
        %1647 = vmatmul.mubr.f32.gmra.mrb[0].mxu0 %v1577
        %v1648 = vpop.f32.mrb[0].mxu0
        %v1649 = vadd.f32 0.0, %v1648
        %v1650 = vpop.f32.mrb[0].mxu0
        %1651 = vdwg.mxu0
        %v1653 = vsel %vm1423, %v836, 0
        %v1656 = vsel %vm1423, %v1128, 0
        %1658 = vmatprep.subr.mxu0 0.0
        %1659 = vmatpush1.xpose.msra.mxu0 %v1656
        %1660 = vmatprep.subr.mxu0 0.0
        %1661 = vmatpush1.xpose.msra.mxu0 0.0
        %1662 = vmatprep.subr.mxu0 0.0
        %1663 = vmatpush1.xpose.msra.mxu0 0.0
        %1664 = vmatprep.subr.mxu0 0.0
        %1665 = vmatpush1.xpose.msra.mxu0 0.0
        %1666 = vmatprep.subr.mxu0 0.0
        %1667 = vmatpush1.xpose.msra.mxu0 0.0
        %1668 = vmatprep.subr.mxu0 0.0
        %1669 = vmatpush1.xpose.msra.mxu0 0.0
        %1670 = vmatprep.subr.mxu0 0.0
        %1671 = vmatpush1.xpose.msra.mxu0 0.0
        %1672 = vmatprep.subr.mxu0 0.0
        %1673 = vmatpush1.xpose.msra.mxu0 0.0
        %1674 = vmatprep.subr.mxu0 0.0
        %1675 = vmatpush1.xpose.msra.mxu0 0.0
        %1676 = vmatprep.subr.mxu0 0.0
        %1677 = vmatpush1.xpose.msra.mxu0 0.0
        %1678 = vmatprep.subr.mxu0 0.0
        %1679 = vmatpush1.xpose.msra.mxu0 0.0
        %1680 = vmatprep.subr.mxu0 0.0
        %1681 = vmatpush1.xpose.msra.mxu0 0.0
        %1682 = vmatprep.subr.mxu0 0.0
        %1683 = vmatpush1.xpose.msra.mxu0 0.0
        %1684 = vmatprep.subr.mxu0 0.0
        %1685 = vmatpush1.xpose.msra.mxu0 0.0
        %1686 = vmatprep.subr.mxu0 0.0
        %1687 = vmatpush1.xpose.msra.mxu0 0.0
        %1688 = vmatprep.subr.mxu0 0.0
        %1689 = vmatpush1.xpose.msra.mxu0 0.0
        %1690 = vmatprep.subr.mxu0 0.0
        %1691 = vmatpush1.xpose.msra.mxu0 0.0
        %1692 = vmatprep.subr.mxu0 0.0
        %1693 = vmatpush1.xpose.msra.mxu0 0.0
        %1694 = vmatprep.subr.mxu0 0.0
        %1695 = vmatpush1.xpose.msra.mxu0 0.0
        %1696 = vmatprep.subr.mxu0 0.0
        %1697 = vmatpush1.xpose.msra.mxu0 0.0
        %1698 = vmatprep.subr.mxu0 0.0
        %1699 = vmatpush1.xpose.msra.mxu0 0.0
        %1700 = vmatprep.subr.mxu0 0.0
        %1701 = vmatpush1.xpose.msra.mxu0 0.0
        %1702 = vmatprep.subr.mxu0 0.0
        %1703 = vmatpush1.xpose.msra.mxu0 0.0
        %1704 = vmatprep.subr.mxu0 0.0
        %1705 = vmatpush1.xpose.msra.mxu0 0.0
        %1706 = vmatprep.subr.mxu0 0.0
        %1707 = vmatpush1.xpose.msra.mxu0 0.0
        %1708 = vmatprep.subr.mxu0 0.0
        %1709 = vmatpush1.xpose.msra.mxu0 0.0
        %1710 = vmatprep.subr.mxu0 0.0
        %1711 = vmatpush1.xpose.msra.mxu0 0.0
        %1712 = vmatprep.subr.mxu0 0.0
        %1713 = vmatpush1.xpose.msra.mxu0 0.0
        %1714 = vmatprep.subr.mxu0 0.0
        %1715 = vmatpush1.xpose.msra.mxu0 0.0
        %1716 = vmatprep.subr.mxu0 0.0
        %1717 = vmatpush1.xpose.msra.mxu0 0.0
        %1718 = vmatprep.subr.mxu0 0.0
        %1719 = vmatpush1.xpose.msra.mxu0 0.0
        %1720 = vmatprep.subr.mxu0 0.0
        %1721 = vmatpush1.xpose.msra.mxu0 0.0
        %1722 = vmatprep.mubr.f32.mxu0 0.0
        %1723 = vmatmul.mubr.f32.gmra.mrb[0].mxu0 %v1653
        %v1724 = vpop.f32.mrb[0].mxu0
        %v1725 = vadd.f32 0.0, %v1724
        %v1726 = vpop.f32.mrb[0].mxu0
        %1727 = vdwg.mxu0
        %vm1728 = vcmp.eq.f32.partialorder %v513, 0.0
        %v1729 = vsel %vm1728, 1, 0
        %vm1730 = vcmp.eq.s32.totalorder %v1729, 1
        %v1731 = vsel %vm1730, -1e+30, %v1497
        %v1732 = vsel %vm1730, -1e+30, %v1573
        %v1733 = vsel %vm1730, -1e+30, %v1649
        %v1734 = vsel %vm1730, -1e+30, %v1725
        %v1735 = vsel %vm1423, %v1731, -inf
        %1736 = vmax.xlane.f32.xlu0 %v1735
        %v1737 = vpop.xlane.xlu0 %1736
        %v1738 = vsel %vm1423, %v1732, -inf
        %1739 = vmax.xlane.f32.xlu0 %v1738
        %v1740 = vpop.xlane.xlu0 %1739
        %v1741 = vsel %vm1423, %v1733, -inf
        %1742 = vmax.xlane.f32.xlu0 %v1741
        %v1743 = vpop.xlane.xlu0 %1742
        %v1744 = vsel %vm1423, %v1734, -inf
        %1745 = vmax.xlane.f32.xlu0 %v1744
        %v1746 = vpop.xlane.xlu0 %1745
        %v1747 = vsub.f32 %v1731, %v1737
        %v1748 = vsub.f32 %v1732, %v1740
        %v1749 = vsub.f32 %v1733, %v1743
        %v1750 = vsub.f32 %v1734, %v1746
        %v1751 = vmul.f32 %v1747, 1.442695
        %v1752 = vpow.pop %v1751
        %v1753 = vmul.f32 %v1748, 1.442695
        %v1754 = vpow.pop %v1753
        %v1755 = vmul.f32 %v1749, 1.442695
        %v1756 = vpow.pop %v1755
        %v1757 = vmul.f32 %v1750, 1.442695
        %v1758 = vpow.pop %v1757
        %v1759 = vsel %vm1423, %v1752, 0.0
        %1760 = vadd.xlane.f32.xlu0 %v1759
        %v1761 = vpop.xlane.xlu0 %1760
        %v1762 = vsel %vm1423, %v1754, 0.0
        %1763 = vadd.xlane.f32.xlu0 %v1762
        %v1764 = vpop.xlane.xlu0 %1763
        %v1765 = vsel %vm1423, %v1756, 0.0
        %1766 = vadd.xlane.f32.xlu0 %v1765
        %v1767 = vpop.xlane.xlu0 %1766
        %v1768 = vsel %vm1423, %v1758, 0.0
        %1769 = vadd.xlane.f32.xlu0 %v1768
        %v1770 = vpop.xlane.xlu0 %1769
        %v1771 = vrcp.pop %v1761
        %v1772 = vrcp.pop %v1764
        %v1773 = vrcp.pop %v1767
        %v1774 = vrcp.pop %v1770
        %v1775 = vmul.f32 %v1752, %v1771
        %v1776 = vmul.f32 %v1754, %v1772
        %v1777 = vmul.f32 %v1756, %v1773
        %v1778 = vmul.f32 %v1758, %v1774
        %v1780 = vsel %vm1423, %v1775, 0
        %1782 = vmatprep.subr.mxu0 0.0
        %1783 = vmatpush1.msra.mxu0 %v1201
        %1784 = vmatprep.subr.mxu0 0.0
        %1785 = vmatpush1.msra.mxu0 0.0
        %1786 = vmatprep.subr.mxu0 0.0
        %1787 = vmatpush1.msra.mxu0 0.0
        %1788 = vmatprep.subr.mxu0 0.0
        %1789 = vmatpush1.msra.mxu0 0.0
        %1790 = vmatprep.subr.mxu0 0.0
        %1791 = vmatpush1.msra.mxu0 0.0
        %1792 = vmatprep.subr.mxu0 0.0
        %1793 = vmatpush1.msra.mxu0 0.0
        %1794 = vmatprep.subr.mxu0 0.0
        %1795 = vmatpush1.msra.mxu0 0.0
        %1796 = vmatprep.subr.mxu0 0.0
        %1797 = vmatpush1.msra.mxu0 0.0
        %1798 = vmatprep.subr.mxu0 0.0
        %1799 = vmatpush1.msra.mxu0 0.0
        %1800 = vmatprep.subr.mxu0 0.0
        %1801 = vmatpush1.msra.mxu0 0.0
        %1802 = vmatprep.subr.mxu0 0.0
        %1803 = vmatpush1.msra.mxu0 0.0
        %1804 = vmatprep.subr.mxu0 0.0
        %1805 = vmatpush1.msra.mxu0 0.0
        %1806 = vmatprep.subr.mxu0 0.0
        %1807 = vmatpush1.msra.mxu0 0.0
        %1808 = vmatprep.subr.mxu0 0.0
        %1809 = vmatpush1.msra.mxu0 0.0
        %1810 = vmatprep.subr.mxu0 0.0
        %1811 = vmatpush1.msra.mxu0 0.0
        %1812 = vmatprep.subr.mxu0 0.0
        %1813 = vmatpush1.msra.mxu0 0.0
        %1814 = vmatprep.subr.mxu0 0.0
        %1815 = vmatpush1.msra.mxu0 0.0
        %1816 = vmatprep.subr.mxu0 0.0
        %1817 = vmatpush1.msra.mxu0 0.0
        %1818 = vmatprep.subr.mxu0 0.0
        %1819 = vmatpush1.msra.mxu0 0.0
        %1820 = vmatprep.subr.mxu0 0.0
        %1821 = vmatpush1.msra.mxu0 0.0
        %1822 = vmatprep.subr.mxu0 0.0
        %1823 = vmatpush1.msra.mxu0 0.0
        %1824 = vmatprep.subr.mxu0 0.0
        %1825 = vmatpush1.msra.mxu0 0.0
        %1826 = vmatprep.subr.mxu0 0.0
        %1827 = vmatpush1.msra.mxu0 0.0
        %1828 = vmatprep.subr.mxu0 0.0
        %1829 = vmatpush1.msra.mxu0 0.0
        %1830 = vmatprep.subr.mxu0 0.0
        %1831 = vmatpush1.msra.mxu0 0.0
        %1832 = vmatprep.subr.mxu0 0.0
        %1833 = vmatpush1.msra.mxu0 0.0
        %1834 = vmatprep.subr.mxu0 0.0
        %1835 = vmatpush1.msra.mxu0 0.0
        %1836 = vmatprep.subr.mxu0 0.0
        %1837 = vmatpush1.msra.mxu0 0.0
        %1838 = vmatprep.subr.mxu0 0.0
        %1839 = vmatpush1.msra.mxu0 0.0
        %1840 = vmatprep.subr.mxu0 0.0
        %1841 = vmatpush1.msra.mxu0 0.0
        %1842 = vmatprep.subr.mxu0 0.0
        %1843 = vmatpush1.msra.mxu0 0.0
        %1844 = vmatprep.subr.mxu0 0.0
        %1845 = vmatpush1.msra.mxu0 0.0
        %1846 = vmatprep.mubr.f32.mxu0 0.0
        %1847 = vmatmul.mubr.f32.gmra.mrb[0].mxu0 %v1780
        %v1848 = vpop.f32.mrb[0].mxu0
        %v1849 = vadd.f32 0.0, %v1848
        %v1850 = vpop.f32.mrb[0].mxu0
        %1851 = vdwg.mxu0
        %v1853 = vsel %vm1423, %v1776, 0
        %1855 = vmatprep.subr.mxu0 0.0
        %1856 = vmatpush1.msra.mxu0 %v1274
        %1857 = vmatprep.subr.mxu0 0.0
        %1858 = vmatpush1.msra.mxu0 0.0
        %1859 = vmatprep.subr.mxu0 0.0
        %1860 = vmatpush1.msra.mxu0 0.0
        %1861 = vmatprep.subr.mxu0 0.0
        %1862 = vmatpush1.msra.mxu0 0.0
        %1863 = vmatprep.subr.mxu0 0.0
        %1864 = vmatpush1.msra.mxu0 0.0
        %1865 = vmatprep.subr.mxu0 0.0
        %1866 = vmatpush1.msra.mxu0 0.0
        %1867 = vmatprep.subr.mxu0 0.0
        %1868 = vmatpush1.msra.mxu0 0.0
        %1869 = vmatprep.subr.mxu0 0.0
        %1870 = vmatpush1.msra.mxu0 0.0
        %1871 = vmatprep.subr.mxu0 0.0
        %1872 = vmatpush1.msra.mxu0 0.0
        %1873 = vmatprep.subr.mxu0 0.0
        %1874 = vmatpush1.msra.mxu0 0.0
        %1875 = vmatprep.subr.mxu0 0.0
        %1876 = vmatpush1.msra.mxu0 0.0
        %1877 = vmatprep.subr.mxu0 0.0
        %1878 = vmatpush1.msra.mxu0 0.0
        %1879 = vmatprep.subr.mxu0 0.0
        %1880 = vmatpush1.msra.mxu0 0.0
        %1881 = vmatprep.subr.mxu0 0.0
        %1882 = vmatpush1.msra.mxu0 0.0
        %1883 = vmatprep.subr.mxu0 0.0
        %1884 = vmatpush1.msra.mxu0 0.0
        %1885 = vmatprep.subr.mxu0 0.0
        %1886 = vmatpush1.msra.mxu0 0.0
        %1887 = vmatprep.subr.mxu0 0.0
        %1888 = vmatpush1.msra.mxu0 0.0
        %1889 = vmatprep.subr.mxu0 0.0
        %1890 = vmatpush1.msra.mxu0 0.0
        %1891 = vmatprep.subr.mxu0 0.0
        %1892 = vmatpush1.msra.mxu0 0.0
        %1893 = vmatprep.subr.mxu0 0.0
        %1894 = vmatpush1.msra.mxu0 0.0
        %1895 = vmatprep.subr.mxu0 0.0
        %1896 = vmatpush1.msra.mxu0 0.0
        %1897 = vmatprep.subr.mxu0 0.0
        %1898 = vmatpush1.msra.mxu0 0.0
        %1899 = vmatprep.subr.mxu0 0.0
        %1900 = vmatpush1.msra.mxu0 0.0
        %1901 = vmatprep.subr.mxu0 0.0
        %1902 = vmatpush1.msra.mxu0 0.0
        %1903 = vmatprep.subr.mxu0 0.0
        %1904 = vmatpush1.msra.mxu0 0.0
        %1905 = vmatprep.subr.mxu0 0.0
        %1906 = vmatpush1.msra.mxu0 0.0
        %1907 = vmatprep.subr.mxu0 0.0
        %1908 = vmatpush1.msra.mxu0 0.0
        %1909 = vmatprep.subr.mxu0 0.0
        %1910 = vmatpush1.msra.mxu0 0.0
        %1911 = vmatprep.subr.mxu0 0.0
        %1912 = vmatpush1.msra.mxu0 0.0
        %1913 = vmatprep.subr.mxu0 0.0
        %1914 = vmatpush1.msra.mxu0 0.0
        %1915 = vmatprep.subr.mxu0 0.0
        %1916 = vmatpush1.msra.mxu0 0.0
        %1917 = vmatprep.subr.mxu0 0.0
        %1918 = vmatpush1.msra.mxu0 0.0
        %1919 = vmatprep.mubr.f32.mxu0 0.0
        %1920 = vmatmul.mubr.f32.gmra.mrb[0].mxu0 %v1853
        %v1921 = vpop.f32.mrb[0].mxu0
        %v1922 = vadd.f32 0.0, %v1921
        %v1923 = vpop.f32.mrb[0].mxu0
        %1924 = vdwg.mxu0
        %v1926 = vsel %vm1423, %v1777, 0
        %1928 = vmatprep.subr.mxu0 0.0
        %1929 = vmatpush1.msra.mxu0 %v1347
        %1930 = vmatprep.subr.mxu0 0.0
        %1931 = vmatpush1.msra.mxu0 0.0
        %1932 = vmatprep.subr.mxu0 0.0
        %1933 = vmatpush1.msra.mxu0 0.0
        %1934 = vmatprep.subr.mxu0 0.0
        %1935 = vmatpush1.msra.mxu0 0.0
        %1936 = vmatprep.subr.mxu0 0.0
        %1937 = vmatpush1.msra.mxu0 0.0
        %1938 = vmatprep.subr.mxu0 0.0
        %1939 = vmatpush1.msra.mxu0 0.0
        %1940 = vmatprep.subr.mxu0 0.0
        %1941 = vmatpush1.msra.mxu0 0.0
        %1942 = vmatprep.subr.mxu0 0.0
        %1943 = vmatpush1.msra.mxu0 0.0
        %1944 = vmatprep.subr.mxu0 0.0
        %1945 = vmatpush1.msra.mxu0 0.0
        %1946 = vmatprep.subr.mxu0 0.0
        %1947 = vmatpush1.msra.mxu0 0.0
        %1948 = vmatprep.subr.mxu0 0.0
        %1949 = vmatpush1.msra.mxu0 0.0
        %1950 = vmatprep.subr.mxu0 0.0
        %1951 = vmatpush1.msra.mxu0 0.0
        %1952 = vmatprep.subr.mxu0 0.0
        %1953 = vmatpush1.msra.mxu0 0.0
        %1954 = vmatprep.subr.mxu0 0.0
        %1955 = vmatpush1.msra.mxu0 0.0
        %1956 = vmatprep.subr.mxu0 0.0
        %1957 = vmatpush1.msra.mxu0 0.0
        %1958 = vmatprep.subr.mxu0 0.0
        %1959 = vmatpush1.msra.mxu0 0.0
        %1960 = vmatprep.subr.mxu0 0.0
        %1961 = vmatpush1.msra.mxu0 0.0
        %1962 = vmatprep.subr.mxu0 0.0
        %1963 = vmatpush1.msra.mxu0 0.0
        %1964 = vmatprep.subr.mxu0 0.0
        %1965 = vmatpush1.msra.mxu0 0.0
        %1966 = vmatprep.subr.mxu0 0.0
        %1967 = vmatpush1.msra.mxu0 0.0
        %1968 = vmatprep.subr.mxu0 0.0
        %1969 = vmatpush1.msra.mxu0 0.0
        %1970 = vmatprep.subr.mxu0 0.0
        %1971 = vmatpush1.msra.mxu0 0.0
        %1972 = vmatprep.subr.mxu0 0.0
        %1973 = vmatpush1.msra.mxu0 0.0
        %1974 = vmatprep.subr.mxu0 0.0
        %1975 = vmatpush1.msra.mxu0 0.0
        %1976 = vmatprep.subr.mxu0 0.0
        %1977 = vmatpush1.msra.mxu0 0.0
        %1978 = vmatprep.subr.mxu0 0.0
        %1979 = vmatpush1.msra.mxu0 0.0
        %1980 = vmatprep.subr.mxu0 0.0
        %1981 = vmatpush1.msra.mxu0 0.0
        %1982 = vmatprep.subr.mxu0 0.0
        %1983 = vmatpush1.msra.mxu0 0.0
        %1984 = vmatprep.subr.mxu0 0.0
        %1985 = vmatpush1.msra.mxu0 0.0
        %1986 = vmatprep.subr.mxu0 0.0
        %1987 = vmatpush1.msra.mxu0 0.0
        %1988 = vmatprep.subr.mxu0 0.0
        %1989 = vmatpush1.msra.mxu0 0.0
        %1990 = vmatprep.subr.mxu0 0.0
        %1991 = vmatpush1.msra.mxu0 0.0
        %1992 = vmatprep.mubr.f32.mxu0 0.0
        %1993 = vmatmul.mubr.f32.gmra.mrb[0].mxu0 %v1926
        %v1994 = vpop.f32.mrb[0].mxu0
        %v1995 = vadd.f32 0.0, %v1994
        %v1996 = vpop.f32.mrb[0].mxu0
        %1997 = vdwg.mxu0
        %v1999 = vsel %vm1423, %v1778, 0
        %2001 = vmatprep.subr.mxu0 0.0
        %2002 = vmatpush1.msra.mxu0 %v1420
        %2003 = vmatprep.subr.mxu0 0.0
        %2004 = vmatpush1.msra.mxu0 0.0
        %2005 = vmatprep.subr.mxu0 0.0
        %2006 = vmatpush1.msra.mxu0 0.0
        %2007 = vmatprep.subr.mxu0 0.0
        %2008 = vmatpush1.msra.mxu0 0.0
        %2009 = vmatprep.subr.mxu0 0.0
        %2010 = vmatpush1.msra.mxu0 0.0
        %2011 = vmatprep.subr.mxu0 0.0
        %2012 = vmatpush1.msra.mxu0 0.0
        %2013 = vmatprep.subr.mxu0 0.0
        %2014 = vmatpush1.msra.mxu0 0.0
        %2015 = vmatprep.subr.mxu0 0.0
        %2016 = vmatpush1.msra.mxu0 0.0
        %2017 = vmatprep.subr.mxu0 0.0
        %2018 = vmatpush1.msra.mxu0 0.0
        %2019 = vmatprep.subr.mxu0 0.0
        %2020 = vmatpush1.msra.mxu0 0.0
        %2021 = vmatprep.subr.mxu0 0.0
        %2022 = vmatpush1.msra.mxu0 0.0
        %2023 = vmatprep.subr.mxu0 0.0
        %2024 = vmatpush1.msra.mxu0 0.0
        %2025 = vmatprep.subr.mxu0 0.0
        %2026 = vmatpush1.msra.mxu0 0.0
        %2027 = vmatprep.subr.mxu0 0.0
        %2028 = vmatpush1.msra.mxu0 0.0
        %2029 = vmatprep.subr.mxu0 0.0
        %2030 = vmatpush1.msra.mxu0 0.0
        %2031 = vmatprep.subr.mxu0 0.0
        %2032 = vmatpush1.msra.mxu0 0.0
        %2033 = vmatprep.subr.mxu0 0.0
        %2034 = vmatpush1.msra.mxu0 0.0
        %2035 = vmatprep.subr.mxu0 0.0
        %2036 = vmatpush1.msra.mxu0 0.0
        %2037 = vmatprep.subr.mxu0 0.0
        %2038 = vmatpush1.msra.mxu0 0.0
        %2039 = vmatprep.subr.mxu0 0.0
        %2040 = vmatpush1.msra.mxu0 0.0
        %2041 = vmatprep.subr.mxu0 0.0
        %2042 = vmatpush1.msra.mxu0 0.0
        %2043 = vmatprep.subr.mxu0 0.0
        %2044 = vmatpush1.msra.mxu0 0.0
        %2045 = vmatprep.subr.mxu0 0.0
        %2046 = vmatpush1.msra.mxu0 0.0
        %2047 = vmatprep.subr.mxu0 0.0
        %2048 = vmatpush1.msra.mxu0 0.0
        %2049 = vmatprep.subr.mxu0 0.0
        %2050 = vmatpush1.msra.mxu0 0.0
        %2051 = vmatprep.subr.mxu0 0.0
        %2052 = vmatpush1.msra.mxu0 0.0
        %2053 = vmatprep.subr.mxu0 0.0
        %2054 = vmatpush1.msra.mxu0 0.0
        %2055 = vmatprep.subr.mxu0 0.0
        %2056 = vmatpush1.msra.mxu0 0.0
        %2057 = vmatprep.subr.mxu0 0.0
        %2058 = vmatpush1.msra.mxu0 0.0
        %2059 = vmatprep.subr.mxu0 0.0
        %2060 = vmatpush1.msra.mxu0 0.0
        %2061 = vmatprep.subr.mxu0 0.0
        %2062 = vmatpush1.msra.mxu0 0.0
        %2063 = vmatprep.subr.mxu0 0.0
        %2064 = vmatpush1.msra.mxu0 0.0
        %2065 = vmatprep.mubr.f32.mxu0 0.0
        %2066 = vmatmul.mubr.f32.gmra.mrb[0].mxu0 %v1999
        %v2067 = vpop.f32.mrb[0].mxu0
        %v2068 = vadd.f32 0.0, %v2067
        %v2069 = vpop.f32.mrb[0].mxu0
        %2070 = vdwg.mxu0
        %v2072 = vsel %vm1423, %v1849, 0
        %v2075 = vsel %vm1423, %v526, 0
        %v2078 = vsel %vm1423, %v527, 0
        %v2081 = vsel %vm1423, %v528, 0
        %v2084 = vsel %vm1423, %v529, 0
        %2086 = vmatprep.subr.mxu0 0.0
        %2087 = vmatpush1.xpose.msra.mxu0 %v2075
        %2088 = vmatprep.subr.mxu0 0.0
        %2089 = vmatpush1.xpose.msra.mxu0 %v2078
        %2090 = vmatprep.subr.mxu0 0.0
        %2091 = vmatpush1.xpose.msra.mxu0 %v2081
        %2092 = vmatprep.subr.mxu0 0.0
        %2093 = vmatpush1.xpose.msra.mxu0 %v2084
        %2094 = vmatprep.subr.mxu0 0.0
        %2095 = vmatpush1.xpose.msra.mxu0 0.0
        %2096 = vmatprep.subr.mxu0 0.0
        %2097 = vmatpush1.xpose.msra.mxu0 0.0
        %2098 = vmatprep.subr.mxu0 0.0
        %2099 = vmatpush1.xpose.msra.mxu0 0.0
        %2100 = vmatprep.subr.mxu0 0.0
        %2101 = vmatpush1.xpose.msra.mxu0 0.0
        %2102 = vmatprep.subr.mxu0 0.0
        %2103 = vmatpush1.xpose.msra.mxu0 0.0
        %2104 = vmatprep.subr.mxu0 0.0
        %2105 = vmatpush1.xpose.msra.mxu0 0.0
        %2106 = vmatprep.subr.mxu0 0.0
        %2107 = vmatpush1.xpose.msra.mxu0 0.0
        %2108 = vmatprep.subr.mxu0 0.0
        %2109 = vmatpush1.xpose.msra.mxu0 0.0
        %2110 = vmatprep.subr.mxu0 0.0
        %2111 = vmatpush1.xpose.msra.mxu0 0.0
        %2112 = vmatprep.subr.mxu0 0.0
        %2113 = vmatpush1.xpose.msra.mxu0 0.0
        %2114 = vmatprep.subr.mxu0 0.0
        %2115 = vmatpush1.xpose.msra.mxu0 0.0
        %2116 = vmatprep.subr.mxu0 0.0
        %2117 = vmatpush1.xpose.msra.mxu0 0.0
        %2118 = vmatprep.subr.mxu0 0.0
        %2119 = vmatpush1.xpose.msra.mxu0 0.0
        %2120 = vmatprep.subr.mxu0 0.0
        %2121 = vmatpush1.xpose.msra.mxu0 0.0
        %2122 = vmatprep.subr.mxu0 0.0
        %2123 = vmatpush1.xpose.msra.mxu0 0.0
        %2124 = vmatprep.subr.mxu0 0.0
        %2125 = vmatpush1.xpose.msra.mxu0 0.0
        %2126 = vmatprep.subr.mxu0 0.0
        %2127 = vmatpush1.xpose.msra.mxu0 0.0
        %2128 = vmatprep.subr.mxu0 0.0
        %2129 = vmatpush1.xpose.msra.mxu0 0.0
        %2130 = vmatprep.subr.mxu0 0.0
        %2131 = vmatpush1.xpose.msra.mxu0 0.0
        %2132 = vmatprep.subr.mxu0 0.0
        %2133 = vmatpush1.xpose.msra.mxu0 0.0
        %2134 = vmatprep.subr.mxu0 0.0
        %2135 = vmatpush1.xpose.msra.mxu0 0.0
        %2136 = vmatprep.subr.mxu0 0.0
        %2137 = vmatpush1.xpose.msra.mxu0 0.0
        %2138 = vmatprep.subr.mxu0 0.0
        %2139 = vmatpush1.xpose.msra.mxu0 0.0
        %2140 = vmatprep.subr.mxu0 0.0
        %2141 = vmatpush1.xpose.msra.mxu0 0.0
        %2142 = vmatprep.subr.mxu0 0.0
        %2143 = vmatpush1.xpose.msra.mxu0 0.0
        %2144 = vmatprep.subr.mxu0 0.0
        %2145 = vmatpush1.xpose.msra.mxu0 0.0
        %2146 = vmatprep.subr.mxu0 0.0
        %2147 = vmatpush1.xpose.msra.mxu0 0.0
        %2148 = vmatprep.subr.mxu0 0.0
        %2149 = vmatpush1.xpose.msra.mxu0 0.0
        %2150 = vmatprep.mubr.f32.mxu0 0.0
        %2151 = vmatmul.mubr.f32.gmra.mrb[0].mxu0 %v2072
        %v2152 = vpop.f32.mrb[0].mxu0
        %v2153 = vadd.f32 0.0, %v2152
        %v2154 = vpop.f32.mrb[0].mxu0
        %2155 = vdwg.mxu0
        %v2157 = vsel %vm1423, %v1922, 0
        %v2160 = vsel %vm1423, %v530, 0
        %v2163 = vsel %vm1423, %v531, 0
        %v2166 = vsel %vm1423, %v532, 0
        %v2169 = vsel %vm1423, %v533, 0
        %2171 = vmatprep.subr.mxu0 0.0
        %2172 = vmatpush1.xpose.msra.mxu0 %v2160
        %2173 = vmatprep.subr.mxu0 0.0
        %2174 = vmatpush1.xpose.msra.mxu0 %v2163
        %2175 = vmatprep.subr.mxu0 0.0
        %2176 = vmatpush1.xpose.msra.mxu0 %v2166
        %2177 = vmatprep.subr.mxu0 0.0
        %2178 = vmatpush1.xpose.msra.mxu0 %v2169
        %2179 = vmatprep.subr.mxu0 0.0
        %2180 = vmatpush1.xpose.msra.mxu0 0.0
        %2181 = vmatprep.subr.mxu0 0.0
        %2182 = vmatpush1.xpose.msra.mxu0 0.0
        %2183 = vmatprep.subr.mxu0 0.0
        %2184 = vmatpush1.xpose.msra.mxu0 0.0
        %2185 = vmatprep.subr.mxu0 0.0
        %2186 = vmatpush1.xpose.msra.mxu0 0.0
        %2187 = vmatprep.subr.mxu0 0.0
        %2188 = vmatpush1.xpose.msra.mxu0 0.0
        %2189 = vmatprep.subr.mxu0 0.0
        %2190 = vmatpush1.xpose.msra.mxu0 0.0
        %2191 = vmatprep.subr.mxu0 0.0
        %2192 = vmatpush1.xpose.msra.mxu0 0.0
        %2193 = vmatprep.subr.mxu0 0.0
        %2194 = vmatpush1.xpose.msra.mxu0 0.0
        %2195 = vmatprep.subr.mxu0 0.0
        %2196 = vmatpush1.xpose.msra.mxu0 0.0
        %2197 = vmatprep.subr.mxu0 0.0
        %2198 = vmatpush1.xpose.msra.mxu0 0.0
        %2199 = vmatprep.subr.mxu0 0.0
        %2200 = vmatpush1.xpose.msra.mxu0 0.0
        %2201 = vmatprep.subr.mxu0 0.0
        %2202 = vmatpush1.xpose.msra.mxu0 0.0
        %2203 = vmatprep.subr.mxu0 0.0
        %2204 = vmatpush1.xpose.msra.mxu0 0.0
        %2205 = vmatprep.subr.mxu0 0.0
        %2206 = vmatpush1.xpose.msra.mxu0 0.0
        %2207 = vmatprep.subr.mxu0 0.0
        %2208 = vmatpush1.xpose.msra.mxu0 0.0
        %2209 = vmatprep.subr.mxu0 0.0
        %2210 = vmatpush1.xpose.msra.mxu0 0.0
        %2211 = vmatprep.subr.mxu0 0.0
        %2212 = vmatpush1.xpose.msra.mxu0 0.0
        %2213 = vmatprep.subr.mxu0 0.0
        %2214 = vmatpush1.xpose.msra.mxu0 0.0
        %2215 = vmatprep.subr.mxu0 0.0
        %2216 = vmatpush1.xpose.msra.mxu0 0.0
        %2217 = vmatprep.subr.mxu0 0.0
        %2218 = vmatpush1.xpose.msra.mxu0 0.0
        %2219 = vmatprep.subr.mxu0 0.0
        %2220 = vmatpush1.xpose.msra.mxu0 0.0
        %2221 = vmatprep.subr.mxu0 0.0
        %2222 = vmatpush1.xpose.msra.mxu0 0.0
        %2223 = vmatprep.subr.mxu0 0.0
        %2224 = vmatpush1.xpose.msra.mxu0 0.0
        %2225 = vmatprep.subr.mxu0 0.0
        %2226 = vmatpush1.xpose.msra.mxu0 0.0
        %2227 = vmatprep.subr.mxu0 0.0
        %2228 = vmatpush1.xpose.msra.mxu0 0.0
        %2229 = vmatprep.subr.mxu0 0.0
        %2230 = vmatpush1.xpose.msra.mxu0 0.0
        %2231 = vmatprep.subr.mxu0 0.0
        %2232 = vmatpush1.xpose.msra.mxu0 0.0
        %2233 = vmatprep.subr.mxu0 0.0
        %2234 = vmatpush1.xpose.msra.mxu0 0.0
        %2235 = vmatprep.mubr.f32.mxu0 0.0
        %2236 = vmatmul.mubr.f32.gmra.mrb[0].mxu0 %v2157
        %v2237 = vpop.f32.mrb[0].mxu0
        %v2238 = vadd.f32 0.0, %v2237
        %v2239 = vpop.f32.mrb[0].mxu0
        %2240 = vdwg.mxu0
        %v2242 = vsel %vm1423, %v1995, 0
        %v2245 = vsel %vm1423, %v534, 0
        %v2248 = vsel %vm1423, %v535, 0
        %v2251 = vsel %vm1423, %v536, 0
        %v2254 = vsel %vm1423, %v537, 0
        %2256 = vmatprep.subr.mxu0 0.0
        %2257 = vmatpush1.xpose.msra.mxu0 %v2245
        %2258 = vmatprep.subr.mxu0 0.0
        %2259 = vmatpush1.xpose.msra.mxu0 %v2248
        %2260 = vmatprep.subr.mxu0 0.0
        %2261 = vmatpush1.xpose.msra.mxu0 %v2251
        %2262 = vmatprep.subr.mxu0 0.0
        %2263 = vmatpush1.xpose.msra.mxu0 %v2254
        %2264 = vmatprep.subr.mxu0 0.0
        %2265 = vmatpush1.xpose.msra.mxu0 0.0
        %2266 = vmatprep.subr.mxu0 0.0
        %2267 = vmatpush1.xpose.msra.mxu0 0.0
        %2268 = vmatprep.subr.mxu0 0.0
        %2269 = vmatpush1.xpose.msra.mxu0 0.0
        %2270 = vmatprep.subr.mxu0 0.0
        %2271 = vmatpush1.xpose.msra.mxu0 0.0
        %2272 = vmatprep.subr.mxu0 0.0
        %2273 = vmatpush1.xpose.msra.mxu0 0.0
        %2274 = vmatprep.subr.mxu0 0.0
        %2275 = vmatpush1.xpose.msra.mxu0 0.0
        %2276 = vmatprep.subr.mxu0 0.0
        %2277 = vmatpush1.xpose.msra.mxu0 0.0
        %2278 = vmatprep.subr.mxu0 0.0
        %2279 = vmatpush1.xpose.msra.mxu0 0.0
        %2280 = vmatprep.subr.mxu0 0.0
        %2281 = vmatpush1.xpose.msra.mxu0 0.0
        %2282 = vmatprep.subr.mxu0 0.0
        %2283 = vmatpush1.xpose.msra.mxu0 0.0
        %2284 = vmatprep.subr.mxu0 0.0
        %2285 = vmatpush1.xpose.msra.mxu0 0.0
        %2286 = vmatprep.subr.mxu0 0.0
        %2287 = vmatpush1.xpose.msra.mxu0 0.0
        %2288 = vmatprep.subr.mxu0 0.0
        %2289 = vmatpush1.xpose.msra.mxu0 0.0
        %2290 = vmatprep.subr.mxu0 0.0
        %2291 = vmatpush1.xpose.msra.mxu0 0.0
        %2292 = vmatprep.subr.mxu0 0.0
        %2293 = vmatpush1.xpose.msra.mxu0 0.0
        %2294 = vmatprep.subr.mxu0 0.0
        %2295 = vmatpush1.xpose.msra.mxu0 0.0
        %2296 = vmatprep.subr.mxu0 0.0
        %2297 = vmatpush1.xpose.msra.mxu0 0.0
        %2298 = vmatprep.subr.mxu0 0.0
        %2299 = vmatpush1.xpose.msra.mxu0 0.0
        %2300 = vmatprep.subr.mxu0 0.0
        %2301 = vmatpush1.xpose.msra.mxu0 0.0
        %2302 = vmatprep.subr.mxu0 0.0
        %2303 = vmatpush1.xpose.msra.mxu0 0.0
        %2304 = vmatprep.subr.mxu0 0.0
        %2305 = vmatpush1.xpose.msra.mxu0 0.0
        %2306 = vmatprep.subr.mxu0 0.0
        %2307 = vmatpush1.xpose.msra.mxu0 0.0
        %2308 = vmatprep.subr.mxu0 0.0
        %2309 = vmatpush1.xpose.msra.mxu0 0.0
        %2310 = vmatprep.subr.mxu0 0.0
        %2311 = vmatpush1.xpose.msra.mxu0 0.0
        %2312 = vmatprep.subr.mxu0 0.0
        %2313 = vmatpush1.xpose.msra.mxu0 0.0
        %2314 = vmatprep.subr.mxu0 0.0
        %2315 = vmatpush1.xpose.msra.mxu0 0.0
        %2316 = vmatprep.subr.mxu0 0.0
        %2317 = vmatpush1.xpose.msra.mxu0 0.0
        %2318 = vmatprep.subr.mxu0 0.0
        %2319 = vmatpush1.xpose.msra.mxu0 0.0
        %2320 = vmatprep.mubr.f32.mxu0 0.0
        %2321 = vmatmul.mubr.f32.gmra.mrb[0].mxu0 %v2242
        %v2322 = vpop.f32.mrb[0].mxu0
        %v2323 = vadd.f32 0.0, %v2322
        %v2324 = vpop.f32.mrb[0].mxu0
        %2325 = vdwg.mxu0
        %v2327 = vsel %vm1423, %v2068, 0
        %v2330 = vsel %vm1423, %v538, 0
        %v2333 = vsel %vm1423, %v539, 0
        %v2336 = vsel %vm1423, %v540, 0
        %v2339 = vsel %vm1423, %v541, 0
        %2341 = vmatprep.subr.mxu0 0.0
        %2342 = vmatpush1.xpose.msra.mxu0 %v2330
        %2343 = vmatprep.subr.mxu0 0.0
        %2344 = vmatpush1.xpose.msra.mxu0 %v2333
        %2345 = vmatprep.subr.mxu0 0.0
        %2346 = vmatpush1.xpose.msra.mxu0 %v2336
        %2347 = vmatprep.subr.mxu0 0.0
        %2348 = vmatpush1.xpose.msra.mxu0 %v2339
        %2349 = vmatprep.subr.mxu0 0.0
        %2350 = vmatpush1.xpose.msra.mxu0 0.0
        %2351 = vmatprep.subr.mxu0 0.0
        %2352 = vmatpush1.xpose.msra.mxu0 0.0
        %2353 = vmatprep.subr.mxu0 0.0
        %2354 = vmatpush1.xpose.msra.mxu0 0.0
        %2355 = vmatprep.subr.mxu0 0.0
        %2356 = vmatpush1.xpose.msra.mxu0 0.0
        %2357 = vmatprep.subr.mxu0 0.0
        %2358 = vmatpush1.xpose.msra.mxu0 0.0
        %2359 = vmatprep.subr.mxu0 0.0
        %2360 = vmatpush1.xpose.msra.mxu0 0.0
        %2361 = vmatprep.subr.mxu0 0.0
        %2362 = vmatpush1.xpose.msra.mxu0 0.0
        %2363 = vmatprep.subr.mxu0 0.0
        %2364 = vmatpush1.xpose.msra.mxu0 0.0
        %2365 = vmatprep.subr.mxu0 0.0
        %2366 = vmatpush1.xpose.msra.mxu0 0.0
        %2367 = vmatprep.subr.mxu0 0.0
        %2368 = vmatpush1.xpose.msra.mxu0 0.0
        %2369 = vmatprep.subr.mxu0 0.0
        %2370 = vmatpush1.xpose.msra.mxu0 0.0
        %2371 = vmatprep.subr.mxu0 0.0
        %2372 = vmatpush1.xpose.msra.mxu0 0.0
        %2373 = vmatprep.subr.mxu0 0.0
        %2374 = vmatpush1.xpose.msra.mxu0 0.0
        %2375 = vmatprep.subr.mxu0 0.0
        %2376 = vmatpush1.xpose.msra.mxu0 0.0
        %2377 = vmatprep.subr.mxu0 0.0
        %2378 = vmatpush1.xpose.msra.mxu0 0.0
        %2379 = vmatprep.subr.mxu0 0.0
        %2380 = vmatpush1.xpose.msra.mxu0 0.0
        %2381 = vmatprep.subr.mxu0 0.0
        %2382 = vmatpush1.xpose.msra.mxu0 0.0
        %2383 = vmatprep.subr.mxu0 0.0
        %2384 = vmatpush1.xpose.msra.mxu0 0.0
        %2385 = vmatprep.subr.mxu0 0.0
        %2386 = vmatpush1.xpose.msra.mxu0 0.0
        %2387 = vmatprep.subr.mxu0 0.0
        %2388 = vmatpush1.xpose.msra.mxu0 0.0
        %2389 = vmatprep.subr.mxu0 0.0
        %2390 = vmatpush1.xpose.msra.mxu0 0.0
        %2391 = vmatprep.subr.mxu0 0.0
        %2392 = vmatpush1.xpose.msra.mxu0 0.0
        %2393 = vmatprep.subr.mxu0 0.0
        %2394 = vmatpush1.xpose.msra.mxu0 0.0
        %2395 = vmatprep.subr.mxu0 0.0
        %2396 = vmatpush1.xpose.msra.mxu0 0.0
        %2397 = vmatprep.subr.mxu0 0.0
        %2398 = vmatpush1.xpose.msra.mxu0 0.0
        %2399 = vmatprep.subr.mxu0 0.0
        %2400 = vmatpush1.xpose.msra.mxu0 0.0
        %2401 = vmatprep.subr.mxu0 0.0
        %2402 = vmatpush1.xpose.msra.mxu0 0.0
        %2403 = vmatprep.subr.mxu0 0.0
        %2404 = vmatpush1.xpose.msra.mxu0 0.0
        %2405 = vmatprep.mubr.f32.mxu0 0.0
        %2406 = vmatmul.mubr.f32.gmra.mrb[0].mxu0 %v2327
        %v2407 = vpop.f32.mrb[0].mxu0
        %v2408 = vadd.f32 0.0, %v2407
        %v2409 = vpop.f32.mrb[0].mxu0
        %2410 = vdwg.mxu0
        %v2411 = vsel %vm543, %v2153, 0.0
        %v2412 = vsel %vm543, %v2238, 0.0
        %v2413 = vadd.f32 %v2411, %v2412
        %v2414 = vsel %vm543, %v2323, 0.0
        %v2415 = vadd.f32 %v2413, %v2414
        %v2416 = vsel %vm543, %v2408, 0.0
        %v2417 = vadd.f32 %v2415, %v2416
        %v2419 = vlaneseq
        %v2420 = vshrl.u32 %v2419, 7
        %v2421 = vsub.s32 0, %v2420
        %v2422 = vrot.slane %v542, %v2421
        %v2424 = vadd.f32 %v2417, %v2422
        %v2425 = vadd.f32 %v510, %v2424
        %v2426 = vld [vmem:[%s13] sm:$0x7]
        %v2427 = vld [vmem:[%s14] sm:$0x7]
        %v2428 = vsel %vm543, %v2425, 0.0
        %2429 = vadd.xlane.f32.xlu0 %v2428
        %v2430 = vpop.xlane.xlu0 %2429
        %v2431 = vrcp.pop 32.0
        %v2432 = vmul.f32 %v2430, %v2431
        %v2433 = vsub.f32 %v2425, %v2432
        %v2434 = vmul.f32 %v2433, %v2433
        %v2435 = vsel %vm543, %v2434, 0.0
        %2436 = vadd.xlane.f32.xlu0 %v2435
        %v2437 = vpop.xlane.xlu0 %2436
        %v2438 = vmul.f32 %v2437, %v2431
        %v2439 = vadd.f32 %v2438, 1e-05
        %v2440 = vrsqrt.pop %v2439
        %v2441 = vmul.f32 %v2433, %v2440
        %v2442 = vlaneseq
        %v2443 = vshrl.u32 %v2442, 7
        %v2444 = vsub.s32 0, %v2443
        %v2445 = vrot.slane %v2426, %v2444
        %v2446 = vmul.f32 %v2441, %v2445
        %v2447 = vlaneseq
        %v2448 = vshrl.u32 %v2447, 7
        %v2449 = vsub.s32 0, %v2448
        %v2450 = vrot.slane %v2427, %v2449
        %v2451 = vadd.f32 %v2446, %v2450
        %v2452 = vld [vmem:[%s6] sm:$0xff]
        %v2453 = vld [vmem:[%s6 + $0x8] sm:$0xff]
        %v2454 = vld [vmem:[%s6 + $0x10] sm:$0xff]
        %v2455 = vld [vmem:[%s6 + $0x18] sm:$0xff]
        %v2456 = vld [vmem:[%s6 + $0x20] sm:$0xff]
        %v2457 = vld [vmem:[%s6 + $0x28] sm:$0xff]
        %v2458 = vld [vmem:[%s6 + $0x30] sm:$0xff]
        %v2459 = vld [vmem:[%s6 + $0x38] sm:$0xff]
        %v2460 = vld [vmem:[%s6 + $0x40] sm:$0xff]
        %v2461 = vld [vmem:[%s6 + $0x48] sm:$0xff]
        %v2462 = vld [vmem:[%s6 + $0x50] sm:$0xff]
        %v2463 = vld [vmem:[%s6 + $0x58] sm:$0xff]
        %v2464 = vld [vmem:[%s7] sm:$0xff]
        %v2465 = vld [vmem:[%s7 + $0x8] sm:$0xff]
        %v2466 = vld [vmem:[%s7 + $0x10] sm:$0xff]
        %v2467 = vld [vmem:[%s7 + $0x18] sm:$0xff]
        %v2468 = vld [vmem:[%s7 + $0x20] sm:$0xff]
        %v2469 = vld [vmem:[%s7 + $0x28] sm:$0xff]
        %v2470 = vld [vmem:[%s7 + $0x30] sm:$0xff]
        %v2471 = vld [vmem:[%s7 + $0x38] sm:$0xff]
        %v2472 = vld [vmem:[%s7 + $0x40] sm:$0xff]
        %v2473 = vld [vmem:[%s7 + $0x48] sm:$0xff]
        %v2474 = vld [vmem:[%s7 + $0x50] sm:$0xff]
        %v2475 = vld [vmem:[%s7 + $0x58] sm:$0xff]
        %v2476 = vld [vmem:[%s7 + $0x60] sm:$0xff]
        %v2477 = vld [vmem:[%s7 + $0x68] sm:$0xff]
        %v2478 = vld [vmem:[%s7 + $0x70] sm:$0xff]
        %v2479 = vld [vmem:[%s7 + $0x78] sm:$0xff]
        %v2480 = vld [vmem:[%s8] sm:$0x1]
        %v2482 = vsel %vm543, %v2451, 0
        %v2485 = vsel %vm543, %v2452, 0
        %2487 = vmatprep.subr.mxu0 0.0
        %2488 = vmatpush1.xpose.msra.mxu0 %v2485
        %2489 = vmatprep.subr.mxu0 0.0
        %2490 = vmatpush1.xpose.msra.mxu0 0.0
        %2491 = vmatprep.subr.mxu0 0.0
        %2492 = vmatpush1.xpose.msra.mxu0 0.0
        %2493 = vmatprep.subr.mxu0 0.0
        %2494 = vmatpush1.xpose.msra.mxu0 0.0
        %2495 = vmatprep.subr.mxu0 0.0
        %2496 = vmatpush1.xpose.msra.mxu0 0.0
        %2497 = vmatprep.subr.mxu0 0.0
        %2498 = vmatpush1.xpose.msra.mxu0 0.0
        %2499 = vmatprep.subr.mxu0 0.0
        %2500 = vmatpush1.xpose.msra.mxu0 0.0
        %2501 = vmatprep.subr.mxu0 0.0
        %2502 = vmatpush1.xpose.msra.mxu0 0.0
        %2503 = vmatprep.subr.mxu0 0.0
        %2504 = vmatpush1.xpose.msra.mxu0 0.0
        %2505 = vmatprep.subr.mxu0 0.0
        %2506 = vmatpush1.xpose.msra.mxu0 0.0
        %2507 = vmatprep.subr.mxu0 0.0
        %2508 = vmatpush1.xpose.msra.mxu0 0.0
        %2509 = vmatprep.subr.mxu0 0.0
        %2510 = vmatpush1.xpose.msra.mxu0 0.0
        %2511 = vmatprep.subr.mxu0 0.0
        %2512 = vmatpush1.xpose.msra.mxu0 0.0
        %2513 = vmatprep.subr.mxu0 0.0
        %2514 = vmatpush1.xpose.msra.mxu0 0.0
        %2515 = vmatprep.subr.mxu0 0.0
        %2516 = vmatpush1.xpose.msra.mxu0 0.0
        %2517 = vmatprep.subr.mxu0 0.0
        %2518 = vmatpush1.xpose.msra.mxu0 0.0
        %2519 = vmatprep.subr.mxu0 0.0
        %2520 = vmatpush1.xpose.msra.mxu0 0.0
        %2521 = vmatprep.subr.mxu0 0.0
        %2522 = vmatpush1.xpose.msra.mxu0 0.0
        %2523 = vmatprep.subr.mxu0 0.0
        %2524 = vmatpush1.xpose.msra.mxu0 0.0
        %2525 = vmatprep.subr.mxu0 0.0
        %2526 = vmatpush1.xpose.msra.mxu0 0.0
        %2527 = vmatprep.subr.mxu0 0.0
        %2528 = vmatpush1.xpose.msra.mxu0 0.0
        %2529 = vmatprep.subr.mxu0 0.0
        %2530 = vmatpush1.xpose.msra.mxu0 0.0
        %2531 = vmatprep.subr.mxu0 0.0
        %2532 = vmatpush1.xpose.msra.mxu0 0.0
        %2533 = vmatprep.subr.mxu0 0.0
        %2534 = vmatpush1.xpose.msra.mxu0 0.0
        %2535 = vmatprep.subr.mxu0 0.0
        %2536 = vmatpush1.xpose.msra.mxu0 0.0
        %2537 = vmatprep.subr.mxu0 0.0
        %2538 = vmatpush1.xpose.msra.mxu0 0.0
        %2539 = vmatprep.subr.mxu0 0.0
        %2540 = vmatpush1.xpose.msra.mxu0 0.0
        %2541 = vmatprep.subr.mxu0 0.0
        %2542 = vmatpush1.xpose.msra.mxu0 0.0
        %2543 = vmatprep.subr.mxu0 0.0
        %2544 = vmatpush1.xpose.msra.mxu0 0.0
        %2545 = vmatprep.subr.mxu0 0.0
        %2546 = vmatpush1.xpose.msra.mxu0 0.0
        %2547 = vmatprep.subr.mxu0 0.0
        %2548 = vmatpush1.xpose.msra.mxu0 0.0
        %2549 = vmatprep.subr.mxu0 0.0
        %2550 = vmatpush1.xpose.msra.mxu0 0.0
        %2551 = vmatprep.mubr.f32.mxu0 0.0
        %2552 = vmatmul.mubr.f32.gmra.mrb[0].mxu0 %v2482
        %v2553 = vpop.f32.mrb[0].mxu0
        %v2554 = vadd.f32 0.0, %v2553
        %v2555 = vpop.f32.mrb[0].mxu0
        %2556 = vdwg.mxu0
        %v2558 = vsel %vm543, %v2453, 0
        %2560 = vmatprep.subr.mxu0 0.0
        %2561 = vmatpush1.xpose.msra.mxu0 %v2558
        %2562 = vmatprep.subr.mxu0 0.0
        %2563 = vmatpush1.xpose.msra.mxu0 0.0
        %2564 = vmatprep.subr.mxu0 0.0
        %2565 = vmatpush1.xpose.msra.mxu0 0.0
        %2566 = vmatprep.subr.mxu0 0.0
        %2567 = vmatpush1.xpose.msra.mxu0 0.0
        %2568 = vmatprep.subr.mxu0 0.0
        %2569 = vmatpush1.xpose.msra.mxu0 0.0
        %2570 = vmatprep.subr.mxu0 0.0
        %2571 = vmatpush1.xpose.msra.mxu0 0.0
        %2572 = vmatprep.subr.mxu0 0.0
        %2573 = vmatpush1.xpose.msra.mxu0 0.0
        %2574 = vmatprep.subr.mxu0 0.0
        %2575 = vmatpush1.xpose.msra.mxu0 0.0
        %2576 = vmatprep.subr.mxu0 0.0
        %2577 = vmatpush1.xpose.msra.mxu0 0.0
        %2578 = vmatprep.subr.mxu0 0.0
        %2579 = vmatpush1.xpose.msra.mxu0 0.0
        %2580 = vmatprep.subr.mxu0 0.0
        %2581 = vmatpush1.xpose.msra.mxu0 0.0
        %2582 = vmatprep.subr.mxu0 0.0
        %2583 = vmatpush1.xpose.msra.mxu0 0.0
        %2584 = vmatprep.subr.mxu0 0.0
        %2585 = vmatpush1.xpose.msra.mxu0 0.0
        %2586 = vmatprep.subr.mxu0 0.0
        %2587 = vmatpush1.xpose.msra.mxu0 0.0
        %2588 = vmatprep.subr.mxu0 0.0
        %2589 = vmatpush1.xpose.msra.mxu0 0.0
        %2590 = vmatprep.subr.mxu0 0.0
        %2591 = vmatpush1.xpose.msra.mxu0 0.0
        %2592 = vmatprep.subr.mxu0 0.0
        %2593 = vmatpush1.xpose.msra.mxu0 0.0
        %2594 = vmatprep.subr.mxu0 0.0
        %2595 = vmatpush1.xpose.msra.mxu0 0.0
        %2596 = vmatprep.subr.mxu0 0.0
        %2597 = vmatpush1.xpose.msra.mxu0 0.0
        %2598 = vmatprep.subr.mxu0 0.0
        %2599 = vmatpush1.xpose.msra.mxu0 0.0
        %2600 = vmatprep.subr.mxu0 0.0
        %2601 = vmatpush1.xpose.msra.mxu0 0.0
        %2602 = vmatprep.subr.mxu0 0.0
        %2603 = vmatpush1.xpose.msra.mxu0 0.0
        %2604 = vmatprep.subr.mxu0 0.0
        %2605 = vmatpush1.xpose.msra.mxu0 0.0
        %2606 = vmatprep.subr.mxu0 0.0
        %2607 = vmatpush1.xpose.msra.mxu0 0.0
        %2608 = vmatprep.subr.mxu0 0.0
        %2609 = vmatpush1.xpose.msra.mxu0 0.0
        %2610 = vmatprep.subr.mxu0 0.0
        %2611 = vmatpush1.xpose.msra.mxu0 0.0
        %2612 = vmatprep.subr.mxu0 0.0
        %2613 = vmatpush1.xpose.msra.mxu0 0.0
        %2614 = vmatprep.subr.mxu0 0.0
        %2615 = vmatpush1.xpose.msra.mxu0 0.0
        %2616 = vmatprep.subr.mxu0 0.0
        %2617 = vmatpush1.xpose.msra.mxu0 0.0
        %2618 = vmatprep.subr.mxu0 0.0
        %2619 = vmatpush1.xpose.msra.mxu0 0.0
        %2620 = vmatprep.subr.mxu0 0.0
        %2621 = vmatpush1.xpose.msra.mxu0 0.0
        %2622 = vmatprep.subr.mxu0 0.0
        %2623 = vmatpush1.xpose.msra.mxu0 0.0
        %2624 = vmatprep.mubr.f32.mxu0 0.0
        %2625 = vmatmul.mubr.f32.gmra.mrb[0].mxu0 %v2482
        %v2626 = vpop.f32.mrb[0].mxu0
        %v2627 = vadd.f32 0.0, %v2626
        %v2628 = vpop.f32.mrb[0].mxu0
        %2629 = vdwg.mxu0
        %v2631 = vsel %vm543, %v2454, 0
        %2633 = vmatprep.subr.mxu0 0.0
        %2634 = vmatpush1.xpose.msra.mxu0 %v2631
        %2635 = vmatprep.subr.mxu0 0.0
        %2636 = vmatpush1.xpose.msra.mxu0 0.0
        %2637 = vmatprep.subr.mxu0 0.0
        %2638 = vmatpush1.xpose.msra.mxu0 0.0
        %2639 = vmatprep.subr.mxu0 0.0
        %2640 = vmatpush1.xpose.msra.mxu0 0.0
        %2641 = vmatprep.subr.mxu0 0.0
        %2642 = vmatpush1.xpose.msra.mxu0 0.0
        %2643 = vmatprep.subr.mxu0 0.0
        %2644 = vmatpush1.xpose.msra.mxu0 0.0
        %2645 = vmatprep.subr.mxu0 0.0
        %2646 = vmatpush1.xpose.msra.mxu0 0.0
        %2647 = vmatprep.subr.mxu0 0.0
        %2648 = vmatpush1.xpose.msra.mxu0 0.0
        %2649 = vmatprep.subr.mxu0 0.0
        %2650 = vmatpush1.xpose.msra.mxu0 0.0
        %2651 = vmatprep.subr.mxu0 0.0
        %2652 = vmatpush1.xpose.msra.mxu0 0.0
        %2653 = vmatprep.subr.mxu0 0.0
        %2654 = vmatpush1.xpose.msra.mxu0 0.0
        %2655 = vmatprep.subr.mxu0 0.0
        %2656 = vmatpush1.xpose.msra.mxu0 0.0
        %2657 = vmatprep.subr.mxu0 0.0
        %2658 = vmatpush1.xpose.msra.mxu0 0.0
        %2659 = vmatprep.subr.mxu0 0.0
        %2660 = vmatpush1.xpose.msra.mxu0 0.0
        %2661 = vmatprep.subr.mxu0 0.0
        %2662 = vmatpush1.xpose.msra.mxu0 0.0
        %2663 = vmatprep.subr.mxu0 0.0
        %2664 = vmatpush1.xpose.msra.mxu0 0.0
        %2665 = vmatprep.subr.mxu0 0.0
        %2666 = vmatpush1.xpose.msra.mxu0 0.0
        %2667 = vmatprep.subr.mxu0 0.0
        %2668 = vmatpush1.xpose.msra.mxu0 0.0
        %2669 = vmatprep.subr.mxu0 0.0
        %2670 = vmatpush1.xpose.msra.mxu0 0.0
        %2671 = vmatprep.subr.mxu0 0.0
        %2672 = vmatpush1.xpose.msra.mxu0 0.0
        %2673 = vmatprep.subr.mxu0 0.0
        %2674 = vmatpush1.xpose.msra.mxu0 0.0
        %2675 = vmatprep.subr.mxu0 0.0
        %2676 = vmatpush1.xpose.msra.mxu0 0.0
        %2677 = vmatprep.subr.mxu0 0.0
        %2678 = vmatpush1.xpose.msra.mxu0 0.0
        %2679 = vmatprep.subr.mxu0 0.0
        %2680 = vmatpush1.xpose.msra.mxu0 0.0
        %2681 = vmatprep.subr.mxu0 0.0
        %2682 = vmatpush1.xpose.msra.mxu0 0.0
        %2683 = vmatprep.subr.mxu0 0.0
        %2684 = vmatpush1.xpose.msra.mxu0 0.0
        %2685 = vmatprep.subr.mxu0 0.0
        %2686 = vmatpush1.xpose.msra.mxu0 0.0
        %2687 = vmatprep.subr.mxu0 0.0
        %2688 = vmatpush1.xpose.msra.mxu0 0.0
        %2689 = vmatprep.subr.mxu0 0.0
        %2690 = vmatpush1.xpose.msra.mxu0 0.0
        %2691 = vmatprep.subr.mxu0 0.0
        %2692 = vmatpush1.xpose.msra.mxu0 0.0
        %2693 = vmatprep.subr.mxu0 0.0
        %2694 = vmatpush1.xpose.msra.mxu0 0.0
        %2695 = vmatprep.subr.mxu0 0.0
        %2696 = vmatpush1.xpose.msra.mxu0 0.0
        %2697 = vmatprep.mubr.f32.mxu0 0.0
        %2698 = vmatmul.mubr.f32.gmra.mrb[0].mxu0 %v2482
        %v2699 = vpop.f32.mrb[0].mxu0
        %v2700 = vadd.f32 0.0, %v2699
        %v2701 = vpop.f32.mrb[0].mxu0
        %2702 = vdwg.mxu0
        %v2704 = vsel %vm543, %v2455, 0
        %2706 = vmatprep.subr.mxu0 0.0
        %2707 = vmatpush1.xpose.msra.mxu0 %v2704
        %2708 = vmatprep.subr.mxu0 0.0
        %2709 = vmatpush1.xpose.msra.mxu0 0.0
        %2710 = vmatprep.subr.mxu0 0.0
        %2711 = vmatpush1.xpose.msra.mxu0 0.0
        %2712 = vmatprep.subr.mxu0 0.0
        %2713 = vmatpush1.xpose.msra.mxu0 0.0
        %2714 = vmatprep.subr.mxu0 0.0
        %2715 = vmatpush1.xpose.msra.mxu0 0.0
        %2716 = vmatprep.subr.mxu0 0.0
        %2717 = vmatpush1.xpose.msra.mxu0 0.0
        %2718 = vmatprep.subr.mxu0 0.0
        %2719 = vmatpush1.xpose.msra.mxu0 0.0
        %2720 = vmatprep.subr.mxu0 0.0
        %2721 = vmatpush1.xpose.msra.mxu0 0.0
        %2722 = vmatprep.subr.mxu0 0.0
        %2723 = vmatpush1.xpose.msra.mxu0 0.0
        %2724 = vmatprep.subr.mxu0 0.0
        %2725 = vmatpush1.xpose.msra.mxu0 0.0
        %2726 = vmatprep.subr.mxu0 0.0
        %2727 = vmatpush1.xpose.msra.mxu0 0.0
        %2728 = vmatprep.subr.mxu0 0.0
        %2729 = vmatpush1.xpose.msra.mxu0 0.0
        %2730 = vmatprep.subr.mxu0 0.0
        %2731 = vmatpush1.xpose.msra.mxu0 0.0
        %2732 = vmatprep.subr.mxu0 0.0
        %2733 = vmatpush1.xpose.msra.mxu0 0.0
        %2734 = vmatprep.subr.mxu0 0.0
        %2735 = vmatpush1.xpose.msra.mxu0 0.0
        %2736 = vmatprep.subr.mxu0 0.0
        %2737 = vmatpush1.xpose.msra.mxu0 0.0
        %2738 = vmatprep.subr.mxu0 0.0
        %2739 = vmatpush1.xpose.msra.mxu0 0.0
        %2740 = vmatprep.subr.mxu0 0.0
        %2741 = vmatpush1.xpose.msra.mxu0 0.0
        %2742 = vmatprep.subr.mxu0 0.0
        %2743 = vmatpush1.xpose.msra.mxu0 0.0
        %2744 = vmatprep.subr.mxu0 0.0
        %2745 = vmatpush1.xpose.msra.mxu0 0.0
        %2746 = vmatprep.subr.mxu0 0.0
        %2747 = vmatpush1.xpose.msra.mxu0 0.0
        %2748 = vmatprep.subr.mxu0 0.0
        %2749 = vmatpush1.xpose.msra.mxu0 0.0
        %2750 = vmatprep.subr.mxu0 0.0
        %2751 = vmatpush1.xpose.msra.mxu0 0.0
        %2752 = vmatprep.subr.mxu0 0.0
        %2753 = vmatpush1.xpose.msra.mxu0 0.0
        %2754 = vmatprep.subr.mxu0 0.0
        %2755 = vmatpush1.xpose.msra.mxu0 0.0
        %2756 = vmatprep.subr.mxu0 0.0
        %2757 = vmatpush1.xpose.msra.mxu0 0.0
        %2758 = vmatprep.subr.mxu0 0.0
        %2759 = vmatpush1.xpose.msra.mxu0 0.0
        %2760 = vmatprep.subr.mxu0 0.0
        %2761 = vmatpush1.xpose.msra.mxu0 0.0
        %2762 = vmatprep.subr.mxu0 0.0
        %2763 = vmatpush1.xpose.msra.mxu0 0.0
        %2764 = vmatprep.subr.mxu0 0.0
        %2765 = vmatpush1.xpose.msra.mxu0 0.0
        %2766 = vmatprep.subr.mxu0 0.0
        %2767 = vmatpush1.xpose.msra.mxu0 0.0
        %2768 = vmatprep.subr.mxu0 0.0
        %2769 = vmatpush1.xpose.msra.mxu0 0.0
        %2770 = vmatprep.mubr.f32.mxu0 0.0
        %2771 = vmatmul.mubr.f32.gmra.mrb[0].mxu0 %v2482
        %v2772 = vpop.f32.mrb[0].mxu0
        %v2773 = vadd.f32 0.0, %v2772
        %v2774 = vpop.f32.mrb[0].mxu0
        %2775 = vdwg.mxu0
        %v2777 = vsel %vm543, %v511, 0
        %v2780 = vsel %vm543, %v512, 0
        %v2783 = vsel %vm543, %v2456, 0
        %2785 = vmatprep.subr.mxu0 0.0
        %2786 = vmatpush1.xpose.msra.mxu0 %v2783
        %2787 = vmatprep.subr.mxu0 0.0
        %2788 = vmatpush1.xpose.msra.mxu0 0.0
        %2789 = vmatprep.subr.mxu0 0.0
        %2790 = vmatpush1.xpose.msra.mxu0 0.0
        %2791 = vmatprep.subr.mxu0 0.0
        %2792 = vmatpush1.xpose.msra.mxu0 0.0
        %2793 = vmatprep.subr.mxu0 0.0
        %2794 = vmatpush1.xpose.msra.mxu0 0.0
        %2795 = vmatprep.subr.mxu0 0.0
        %2796 = vmatpush1.xpose.msra.mxu0 0.0
        %2797 = vmatprep.subr.mxu0 0.0
        %2798 = vmatpush1.xpose.msra.mxu0 0.0
        %2799 = vmatprep.subr.mxu0 0.0
        %2800 = vmatpush1.xpose.msra.mxu0 0.0
        %2801 = vmatprep.subr.mxu0 0.0
        %2802 = vmatpush1.xpose.msra.mxu0 0.0
        %2803 = vmatprep.subr.mxu0 0.0
        %2804 = vmatpush1.xpose.msra.mxu0 0.0
        %2805 = vmatprep.subr.mxu0 0.0
        %2806 = vmatpush1.xpose.msra.mxu0 0.0
        %2807 = vmatprep.subr.mxu0 0.0
        %2808 = vmatpush1.xpose.msra.mxu0 0.0
        %2809 = vmatprep.subr.mxu0 0.0
        %2810 = vmatpush1.xpose.msra.mxu0 0.0
        %2811 = vmatprep.subr.mxu0 0.0
        %2812 = vmatpush1.xpose.msra.mxu0 0.0
        %2813 = vmatprep.subr.mxu0 0.0
        %2814 = vmatpush1.xpose.msra.mxu0 0.0
        %2815 = vmatprep.subr.mxu0 0.0
        %2816 = vmatpush1.xpose.msra.mxu0 0.0
        %2817 = vmatprep.subr.mxu0 0.0
        %2818 = vmatpush1.xpose.msra.mxu0 0.0
        %2819 = vmatprep.subr.mxu0 0.0
        %2820 = vmatpush1.xpose.msra.mxu0 0.0
        %2821 = vmatprep.subr.mxu0 0.0
        %2822 = vmatpush1.xpose.msra.mxu0 0.0
        %2823 = vmatprep.subr.mxu0 0.0
        %2824 = vmatpush1.xpose.msra.mxu0 0.0
        %2825 = vmatprep.subr.mxu0 0.0
        %2826 = vmatpush1.xpose.msra.mxu0 0.0
        %2827 = vmatprep.subr.mxu0 0.0
        %2828 = vmatpush1.xpose.msra.mxu0 0.0
        %2829 = vmatprep.subr.mxu0 0.0
        %2830 = vmatpush1.xpose.msra.mxu0 0.0
        %2831 = vmatprep.subr.mxu0 0.0
        %2832 = vmatpush1.xpose.msra.mxu0 0.0
        %2833 = vmatprep.subr.mxu0 0.0
        %2834 = vmatpush1.xpose.msra.mxu0 0.0
        %2835 = vmatprep.subr.mxu0 0.0
        %2836 = vmatpush1.xpose.msra.mxu0 0.0
        %2837 = vmatprep.subr.mxu0 0.0
        %2838 = vmatpush1.xpose.msra.mxu0 0.0
        %2839 = vmatprep.subr.mxu0 0.0
        %2840 = vmatpush1.xpose.msra.mxu0 0.0
        %2841 = vmatprep.subr.mxu0 0.0
        %2842 = vmatpush1.xpose.msra.mxu0 0.0
        %2843 = vmatprep.subr.mxu0 0.0
        %2844 = vmatpush1.xpose.msra.mxu0 0.0
        %2845 = vmatprep.subr.mxu0 0.0
        %2846 = vmatpush1.xpose.msra.mxu0 0.0
        %2847 = vmatprep.subr.mxu0 0.0
        %2848 = vmatpush1.xpose.msra.mxu0 0.0
        %2849 = vmatprep.mubr.f32.mxu0 0.0
        %2850 = vmatmul.mubr.f32.gmra.mrb[0].mxu0 %v2777
        %v2851 = vpop.f32.mrb[0].mxu0
        %v2852 = vadd.f32 0.0, %v2851
        %v2853 = vpop.f32.mrb[0].mxu0
        %2854 = vmatprep.mubr.f32.mxu0 0.0
        %2855 = vmatmul.mubr.f32.gmra.mrb[0].mxu0 %v2780
        %v2856 = vpop.f32.mrb[0].mxu0
        %v2857 = vadd.f32 0.0, %v2856
        %v2858 = vpop.f32.mrb[0].mxu0
        %2859 = vdwg.mxu0
        %v2861 = vsel %vm543, %v2457, 0
        %2863 = vmatprep.subr.mxu0 0.0
        %2864 = vmatpush1.xpose.msra.mxu0 %v2861
        %2865 = vmatprep.subr.mxu0 0.0
        %2866 = vmatpush1.xpose.msra.mxu0 0.0
        %2867 = vmatprep.subr.mxu0 0.0
        %2868 = vmatpush1.xpose.msra.mxu0 0.0
        %2869 = vmatprep.subr.mxu0 0.0
        %2870 = vmatpush1.xpose.msra.mxu0 0.0
        %2871 = vmatprep.subr.mxu0 0.0
        %2872 = vmatpush1.xpose.msra.mxu0 0.0
        %2873 = vmatprep.subr.mxu0 0.0
        %2874 = vmatpush1.xpose.msra.mxu0 0.0
        %2875 = vmatprep.subr.mxu0 0.0
        %2876 = vmatpush1.xpose.msra.mxu0 0.0
        %2877 = vmatprep.subr.mxu0 0.0
        %2878 = vmatpush1.xpose.msra.mxu0 0.0
        %2879 = vmatprep.subr.mxu0 0.0
        %2880 = vmatpush1.xpose.msra.mxu0 0.0
        %2881 = vmatprep.subr.mxu0 0.0
        %2882 = vmatpush1.xpose.msra.mxu0 0.0
        %2883 = vmatprep.subr.mxu0 0.0
        %2884 = vmatpush1.xpose.msra.mxu0 0.0
        %2885 = vmatprep.subr.mxu0 0.0
        %2886 = vmatpush1.xpose.msra.mxu0 0.0
        %2887 = vmatprep.subr.mxu0 0.0
        %2888 = vmatpush1.xpose.msra.mxu0 0.0
        %2889 = vmatprep.subr.mxu0 0.0
        %2890 = vmatpush1.xpose.msra.mxu0 0.0
        %2891 = vmatprep.subr.mxu0 0.0
        %2892 = vmatpush1.xpose.msra.mxu0 0.0
        %2893 = vmatprep.subr.mxu0 0.0
        %2894 = vmatpush1.xpose.msra.mxu0 0.0
        %2895 = vmatprep.subr.mxu0 0.0
        %2896 = vmatpush1.xpose.msra.mxu0 0.0
        %2897 = vmatprep.subr.mxu0 0.0
        %2898 = vmatpush1.xpose.msra.mxu0 0.0
        %2899 = vmatprep.subr.mxu0 0.0
        %2900 = vmatpush1.xpose.msra.mxu0 0.0
        %2901 = vmatprep.subr.mxu0 0.0
        %2902 = vmatpush1.xpose.msra.mxu0 0.0
        %2903 = vmatprep.subr.mxu0 0.0
        %2904 = vmatpush1.xpose.msra.mxu0 0.0
        %2905 = vmatprep.subr.mxu0 0.0
        %2906 = vmatpush1.xpose.msra.mxu0 0.0
        %2907 = vmatprep.subr.mxu0 0.0
        %2908 = vmatpush1.xpose.msra.mxu0 0.0
        %2909 = vmatprep.subr.mxu0 0.0
        %2910 = vmatpush1.xpose.msra.mxu0 0.0
        %2911 = vmatprep.subr.mxu0 0.0
        %2912 = vmatpush1.xpose.msra.mxu0 0.0
        %2913 = vmatprep.subr.mxu0 0.0
        %2914 = vmatpush1.xpose.msra.mxu0 0.0
        %2915 = vmatprep.subr.mxu0 0.0
        %2916 = vmatpush1.xpose.msra.mxu0 0.0
        %2917 = vmatprep.subr.mxu0 0.0
        %2918 = vmatpush1.xpose.msra.mxu0 0.0
        %2919 = vmatprep.subr.mxu0 0.0
        %2920 = vmatpush1.xpose.msra.mxu0 0.0
        %2921 = vmatprep.subr.mxu0 0.0
        %2922 = vmatpush1.xpose.msra.mxu0 0.0
        %2923 = vmatprep.subr.mxu0 0.0
        %2924 = vmatpush1.xpose.msra.mxu0 0.0
        %2925 = vmatprep.subr.mxu0 0.0
        %2926 = vmatpush1.xpose.msra.mxu0 0.0
        %2927 = vmatprep.mubr.f32.mxu0 0.0
        %2928 = vmatmul.mubr.f32.gmra.mrb[0].mxu0 %v2777
        %v2929 = vpop.f32.mrb[0].mxu0
        %v2930 = vadd.f32 0.0, %v2929
        %v2931 = vpop.f32.mrb[0].mxu0
        %2932 = vmatprep.mubr.f32.mxu0 0.0
        %2933 = vmatmul.mubr.f32.gmra.mrb[0].mxu0 %v2780
        %v2934 = vpop.f32.mrb[0].mxu0
        %v2935 = vadd.f32 0.0, %v2934
        %v2936 = vpop.f32.mrb[0].mxu0
        %2937 = vdwg.mxu0
        %v2939 = vsel %vm543, %v2458, 0
        %2941 = vmatprep.subr.mxu0 0.0
        %2942 = vmatpush1.xpose.msra.mxu0 %v2939
        %2943 = vmatprep.subr.mxu0 0.0
        %2944 = vmatpush1.xpose.msra.mxu0 0.0
        %2945 = vmatprep.subr.mxu0 0.0
        %2946 = vmatpush1.xpose.msra.mxu0 0.0
        %2947 = vmatprep.subr.mxu0 0.0
        %2948 = vmatpush1.xpose.msra.mxu0 0.0
        %2949 = vmatprep.subr.mxu0 0.0
        %2950 = vmatpush1.xpose.msra.mxu0 0.0
        %2951 = vmatprep.subr.mxu0 0.0
        %2952 = vmatpush1.xpose.msra.mxu0 0.0
        %2953 = vmatprep.subr.mxu0 0.0
        %2954 = vmatpush1.xpose.msra.mxu0 0.0
        %2955 = vmatprep.subr.mxu0 0.0
        %2956 = vmatpush1.xpose.msra.mxu0 0.0
        %2957 = vmatprep.subr.mxu0 0.0
        %2958 = vmatpush1.xpose.msra.mxu0 0.0
        %2959 = vmatprep.subr.mxu0 0.0
        %2960 = vmatpush1.xpose.msra.mxu0 0.0
        %2961 = vmatprep.subr.mxu0 0.0
        %2962 = vmatpush1.xpose.msra.mxu0 0.0
        %2963 = vmatprep.subr.mxu0 0.0
        %2964 = vmatpush1.xpose.msra.mxu0 0.0
        %2965 = vmatprep.subr.mxu0 0.0
        %2966 = vmatpush1.xpose.msra.mxu0 0.0
        %2967 = vmatprep.subr.mxu0 0.0
        %2968 = vmatpush1.xpose.msra.mxu0 0.0
        %2969 = vmatprep.subr.mxu0 0.0
        %2970 = vmatpush1.xpose.msra.mxu0 0.0
        %2971 = vmatprep.subr.mxu0 0.0
        %2972 = vmatpush1.xpose.msra.mxu0 0.0
        %2973 = vmatprep.subr.mxu0 0.0
        %2974 = vmatpush1.xpose.msra.mxu0 0.0
        %2975 = vmatprep.subr.mxu0 0.0
        %2976 = vmatpush1.xpose.msra.mxu0 0.0
        %2977 = vmatprep.subr.mxu0 0.0
        %2978 = vmatpush1.xpose.msra.mxu0 0.0
        %2979 = vmatprep.subr.mxu0 0.0
        %2980 = vmatpush1.xpose.msra.mxu0 0.0
        %2981 = vmatprep.subr.mxu0 0.0
        %2982 = vmatpush1.xpose.msra.mxu0 0.0
        %2983 = vmatprep.subr.mxu0 0.0
        %2984 = vmatpush1.xpose.msra.mxu0 0.0
        %2985 = vmatprep.subr.mxu0 0.0
        %2986 = vmatpush1.xpose.msra.mxu0 0.0
        %2987 = vmatprep.subr.mxu0 0.0
        %2988 = vmatpush1.xpose.msra.mxu0 0.0
        %2989 = vmatprep.subr.mxu0 0.0
        %2990 = vmatpush1.xpose.msra.mxu0 0.0
        %2991 = vmatprep.subr.mxu0 0.0
        %2992 = vmatpush1.xpose.msra.mxu0 0.0
        %2993 = vmatprep.subr.mxu0 0.0
        %2994 = vmatpush1.xpose.msra.mxu0 0.0
        %2995 = vmatprep.subr.mxu0 0.0
        %2996 = vmatpush1.xpose.msra.mxu0 0.0
        %2997 = vmatprep.subr.mxu0 0.0
        %2998 = vmatpush1.xpose.msra.mxu0 0.0
        %2999 = vmatprep.subr.mxu0 0.0
        %3000 = vmatpush1.xpose.msra.mxu0 0.0
        %3001 = vmatprep.subr.mxu0 0.0
        %3002 = vmatpush1.xpose.msra.mxu0 0.0
        %3003 = vmatprep.subr.mxu0 0.0
        %3004 = vmatpush1.xpose.msra.mxu0 0.0
        %3005 = vmatprep.mubr.f32.mxu0 0.0
        %3006 = vmatmul.mubr.f32.gmra.mrb[0].mxu0 %v2777
        %v3007 = vpop.f32.mrb[0].mxu0
        %v3008 = vadd.f32 0.0, %v3007
        %v3009 = vpop.f32.mrb[0].mxu0
        %3010 = vmatprep.mubr.f32.mxu0 0.0
        %3011 = vmatmul.mubr.f32.gmra.mrb[0].mxu0 %v2780
        %v3012 = vpop.f32.mrb[0].mxu0
        %v3013 = vadd.f32 0.0, %v3012
        %v3014 = vpop.f32.mrb[0].mxu0
        %3015 = vdwg.mxu0
        %v3017 = vsel %vm543, %v2459, 0
        %3019 = vmatprep.subr.mxu0 0.0
        %3020 = vmatpush1.xpose.msra.mxu0 %v3017
        %3021 = vmatprep.subr.mxu0 0.0
        %3022 = vmatpush1.xpose.msra.mxu0 0.0
        %3023 = vmatprep.subr.mxu0 0.0
        %3024 = vmatpush1.xpose.msra.mxu0 0.0
        %3025 = vmatprep.subr.mxu0 0.0
        %3026 = vmatpush1.xpose.msra.mxu0 0.0
        %3027 = vmatprep.subr.mxu0 0.0
        %3028 = vmatpush1.xpose.msra.mxu0 0.0
        %3029 = vmatprep.subr.mxu0 0.0
        %3030 = vmatpush1.xpose.msra.mxu0 0.0
        %3031 = vmatprep.subr.mxu0 0.0
        %3032 = vmatpush1.xpose.msra.mxu0 0.0
        %3033 = vmatprep.subr.mxu0 0.0
        %3034 = vmatpush1.xpose.msra.mxu0 0.0
        %3035 = vmatprep.subr.mxu0 0.0
        %3036 = vmatpush1.xpose.msra.mxu0 0.0
        %3037 = vmatprep.subr.mxu0 0.0
        %3038 = vmatpush1.xpose.msra.mxu0 0.0
        %3039 = vmatprep.subr.mxu0 0.0
        %3040 = vmatpush1.xpose.msra.mxu0 0.0
        %3041 = vmatprep.subr.mxu0 0.0
        %3042 = vmatpush1.xpose.msra.mxu0 0.0
        %3043 = vmatprep.subr.mxu0 0.0
        %3044 = vmatpush1.xpose.msra.mxu0 0.0
        %3045 = vmatprep.subr.mxu0 0.0
        %3046 = vmatpush1.xpose.msra.mxu0 0.0
        %3047 = vmatprep.subr.mxu0 0.0
        %3048 = vmatpush1.xpose.msra.mxu0 0.0
        %3049 = vmatprep.subr.mxu0 0.0
        %3050 = vmatpush1.xpose.msra.mxu0 0.0
        %3051 = vmatprep.subr.mxu0 0.0
        %3052 = vmatpush1.xpose.msra.mxu0 0.0
        %3053 = vmatprep.subr.mxu0 0.0
        %3054 = vmatpush1.xpose.msra.mxu0 0.0
        %3055 = vmatprep.subr.mxu0 0.0
        %3056 = vmatpush1.xpose.msra.mxu0 0.0
        %3057 = vmatprep.subr.mxu0 0.0
        %3058 = vmatpush1.xpose.msra.mxu0 0.0
        %3059 = vmatprep.subr.mxu0 0.0
        %3060 = vmatpush1.xpose.msra.mxu0 0.0
        %3061 = vmatprep.subr.mxu0 0.0
        %3062 = vmatpush1.xpose.msra.mxu0 0.0
        %3063 = vmatprep.subr.mxu0 0.0
        %3064 = vmatpush1.xpose.msra.mxu0 0.0
        %3065 = vmatprep.subr.mxu0 0.0
        %3066 = vmatpush1.xpose.msra.mxu0 0.0
        %3067 = vmatprep.subr.mxu0 0.0
        %3068 = vmatpush1.xpose.msra.mxu0 0.0
        %3069 = vmatprep.subr.mxu0 0.0
        %3070 = vmatpush1.xpose.msra.mxu0 0.0
        %3071 = vmatprep.subr.mxu0 0.0
        %3072 = vmatpush1.xpose.msra.mxu0 0.0
        %3073 = vmatprep.subr.mxu0 0.0
        %3074 = vmatpush1.xpose.msra.mxu0 0.0
        %3075 = vmatprep.subr.mxu0 0.0
        %3076 = vmatpush1.xpose.msra.mxu0 0.0
        %3077 = vmatprep.subr.mxu0 0.0
        %3078 = vmatpush1.xpose.msra.mxu0 0.0
        %3079 = vmatprep.subr.mxu0 0.0
        %3080 = vmatpush1.xpose.msra.mxu0 0.0
        %3081 = vmatprep.subr.mxu0 0.0
        %3082 = vmatpush1.xpose.msra.mxu0 0.0
        %3083 = vmatprep.mubr.f32.mxu0 0.0
        %3084 = vmatmul.mubr.f32.gmra.mrb[0].mxu0 %v2777
        %v3085 = vpop.f32.mrb[0].mxu0
        %v3086 = vadd.f32 0.0, %v3085
        %v3087 = vpop.f32.mrb[0].mxu0
        %3088 = vmatprep.mubr.f32.mxu0 0.0
        %3089 = vmatmul.mubr.f32.gmra.mrb[0].mxu0 %v2780
        %v3090 = vpop.f32.mrb[0].mxu0
        %v3091 = vadd.f32 0.0, %v3090
        %v3092 = vpop.f32.mrb[0].mxu0
        %3093 = vdwg.mxu0
        %v3095 = vsel %vm543, %v2460, 0
        %3097 = vmatprep.subr.mxu0 0.0
        %3098 = vmatpush1.xpose.msra.mxu0 %v3095
        %3099 = vmatprep.subr.mxu0 0.0
        %3100 = vmatpush1.xpose.msra.mxu0 0.0
        %3101 = vmatprep.subr.mxu0 0.0
        %3102 = vmatpush1.xpose.msra.mxu0 0.0
        %3103 = vmatprep.subr.mxu0 0.0
        %3104 = vmatpush1.xpose.msra.mxu0 0.0
        %3105 = vmatprep.subr.mxu0 0.0
        %3106 = vmatpush1.xpose.msra.mxu0 0.0
        %3107 = vmatprep.subr.mxu0 0.0
        %3108 = vmatpush1.xpose.msra.mxu0 0.0
        %3109 = vmatprep.subr.mxu0 0.0
        %3110 = vmatpush1.xpose.msra.mxu0 0.0
        %3111 = vmatprep.subr.mxu0 0.0
        %3112 = vmatpush1.xpose.msra.mxu0 0.0
        %3113 = vmatprep.subr.mxu0 0.0
        %3114 = vmatpush1.xpose.msra.mxu0 0.0
        %3115 = vmatprep.subr.mxu0 0.0
        %3116 = vmatpush1.xpose.msra.mxu0 0.0
        %3117 = vmatprep.subr.mxu0 0.0
        %3118 = vmatpush1.xpose.msra.mxu0 0.0
        %3119 = vmatprep.subr.mxu0 0.0
        %3120 = vmatpush1.xpose.msra.mxu0 0.0
        %3121 = vmatprep.subr.mxu0 0.0
        %3122 = vmatpush1.xpose.msra.mxu0 0.0
        %3123 = vmatprep.subr.mxu0 0.0
        %3124 = vmatpush1.xpose.msra.mxu0 0.0
        %3125 = vmatprep.subr.mxu0 0.0
        %3126 = vmatpush1.xpose.msra.mxu0 0.0
        %3127 = vmatprep.subr.mxu0 0.0
        %3128 = vmatpush1.xpose.msra.mxu0 0.0
        %3129 = vmatprep.subr.mxu0 0.0
        %3130 = vmatpush1.xpose.msra.mxu0 0.0
        %3131 = vmatprep.subr.mxu0 0.0
        %3132 = vmatpush1.xpose.msra.mxu0 0.0
        %3133 = vmatprep.subr.mxu0 0.0
        %3134 = vmatpush1.xpose.msra.mxu0 0.0
        %3135 = vmatprep.subr.mxu0 0.0
        %3136 = vmatpush1.xpose.msra.mxu0 0.0
        %3137 = vmatprep.subr.mxu0 0.0
        %3138 = vmatpush1.xpose.msra.mxu0 0.0
        %3139 = vmatprep.subr.mxu0 0.0
        %3140 = vmatpush1.xpose.msra.mxu0 0.0
        %3141 = vmatprep.subr.mxu0 0.0
        %3142 = vmatpush1.xpose.msra.mxu0 0.0
        %3143 = vmatprep.subr.mxu0 0.0
        %3144 = vmatpush1.xpose.msra.mxu0 0.0
        %3145 = vmatprep.subr.mxu0 0.0
        %3146 = vmatpush1.xpose.msra.mxu0 0.0
        %3147 = vmatprep.subr.mxu0 0.0
        %3148 = vmatpush1.xpose.msra.mxu0 0.0
        %3149 = vmatprep.subr.mxu0 0.0
        %3150 = vmatpush1.xpose.msra.mxu0 0.0
        %3151 = vmatprep.subr.mxu0 0.0
        %3152 = vmatpush1.xpose.msra.mxu0 0.0
        %3153 = vmatprep.subr.mxu0 0.0
        %3154 = vmatpush1.xpose.msra.mxu0 0.0
        %3155 = vmatprep.subr.mxu0 0.0
        %3156 = vmatpush1.xpose.msra.mxu0 0.0
        %3157 = vmatprep.subr.mxu0 0.0
        %3158 = vmatpush1.xpose.msra.mxu0 0.0
        %3159 = vmatprep.subr.mxu0 0.0
        %3160 = vmatpush1.xpose.msra.mxu0 0.0
        %3161 = vmatprep.mubr.f32.mxu0 0.0
        %3162 = vmatmul.mubr.f32.gmra.mrb[0].mxu0 %v2777
        %v3163 = vpop.f32.mrb[0].mxu0
        %v3164 = vadd.f32 0.0, %v3163
        %v3165 = vpop.f32.mrb[0].mxu0
        %3166 = vmatprep.mubr.f32.mxu0 0.0
        %3167 = vmatmul.mubr.f32.gmra.mrb[0].mxu0 %v2780
        %v3168 = vpop.f32.mrb[0].mxu0
        %v3169 = vadd.f32 0.0, %v3168
        %v3170 = vpop.f32.mrb[0].mxu0
        %3171 = vdwg.mxu0
        %v3173 = vsel %vm543, %v2461, 0
        %3175 = vmatprep.subr.mxu0 0.0
        %3176 = vmatpush1.xpose.msra.mxu0 %v3173
        %3177 = vmatprep.subr.mxu0 0.0
        %3178 = vmatpush1.xpose.msra.mxu0 0.0
        %3179 = vmatprep.subr.mxu0 0.0
        %3180 = vmatpush1.xpose.msra.mxu0 0.0
        %3181 = vmatprep.subr.mxu0 0.0
        %3182 = vmatpush1.xpose.msra.mxu0 0.0
        %3183 = vmatprep.subr.mxu0 0.0
        %3184 = vmatpush1.xpose.msra.mxu0 0.0
        %3185 = vmatprep.subr.mxu0 0.0
        %3186 = vmatpush1.xpose.msra.mxu0 0.0
        %3187 = vmatprep.subr.mxu0 0.0
        %3188 = vmatpush1.xpose.msra.mxu0 0.0
        %3189 = vmatprep.subr.mxu0 0.0
        %3190 = vmatpush1.xpose.msra.mxu0 0.0
        %3191 = vmatprep.subr.mxu0 0.0
        %3192 = vmatpush1.xpose.msra.mxu0 0.0
        %3193 = vmatprep.subr.mxu0 0.0
        %3194 = vmatpush1.xpose.msra.mxu0 0.0
        %3195 = vmatprep.subr.mxu0 0.0
        %3196 = vmatpush1.xpose.msra.mxu0 0.0
        %3197 = vmatprep.subr.mxu0 0.0
        %3198 = vmatpush1.xpose.msra.mxu0 0.0
        %3199 = vmatprep.subr.mxu0 0.0
        %3200 = vmatpush1.xpose.msra.mxu0 0.0
        %3201 = vmatprep.subr.mxu0 0.0
        %3202 = vmatpush1.xpose.msra.mxu0 0.0
        %3203 = vmatprep.subr.mxu0 0.0
        %3204 = vmatpush1.xpose.msra.mxu0 0.0
        %3205 = vmatprep.subr.mxu0 0.0
        %3206 = vmatpush1.xpose.msra.mxu0 0.0
        %3207 = vmatprep.subr.mxu0 0.0
        %3208 = vmatpush1.xpose.msra.mxu0 0.0
        %3209 = vmatprep.subr.mxu0 0.0
        %3210 = vmatpush1.xpose.msra.mxu0 0.0
        %3211 = vmatprep.subr.mxu0 0.0
        %3212 = vmatpush1.xpose.msra.mxu0 0.0
        %3213 = vmatprep.subr.mxu0 0.0
        %3214 = vmatpush1.xpose.msra.mxu0 0.0
        %3215 = vmatprep.subr.mxu0 0.0
        %3216 = vmatpush1.xpose.msra.mxu0 0.0
        %3217 = vmatprep.subr.mxu0 0.0
        %3218 = vmatpush1.xpose.msra.mxu0 0.0
        %3219 = vmatprep.subr.mxu0 0.0
        %3220 = vmatpush1.xpose.msra.mxu0 0.0
        %3221 = vmatprep.subr.mxu0 0.0
        %3222 = vmatpush1.xpose.msra.mxu0 0.0
        %3223 = vmatprep.subr.mxu0 0.0
        %3224 = vmatpush1.xpose.msra.mxu0 0.0
        %3225 = vmatprep.subr.mxu0 0.0
        %3226 = vmatpush1.xpose.msra.mxu0 0.0
        %3227 = vmatprep.subr.mxu0 0.0
        %3228 = vmatpush1.xpose.msra.mxu0 0.0
        %3229 = vmatprep.subr.mxu0 0.0
        %3230 = vmatpush1.xpose.msra.mxu0 0.0
        %3231 = vmatprep.subr.mxu0 0.0
        %3232 = vmatpush1.xpose.msra.mxu0 0.0
        %3233 = vmatprep.subr.mxu0 0.0
        %3234 = vmatpush1.xpose.msra.mxu0 0.0
        %3235 = vmatprep.subr.mxu0 0.0
        %3236 = vmatpush1.xpose.msra.mxu0 0.0
        %3237 = vmatprep.subr.mxu0 0.0
        %3238 = vmatpush1.xpose.msra.mxu0 0.0
        %3239 = vmatprep.mubr.f32.mxu0 0.0
        %3240 = vmatmul.mubr.f32.gmra.mrb[0].mxu0 %v2777
        %v3241 = vpop.f32.mrb[0].mxu0
        %v3242 = vadd.f32 0.0, %v3241
        %v3243 = vpop.f32.mrb[0].mxu0
        %3244 = vmatprep.mubr.f32.mxu0 0.0
        %3245 = vmatmul.mubr.f32.gmra.mrb[0].mxu0 %v2780
        %v3246 = vpop.f32.mrb[0].mxu0
        %v3247 = vadd.f32 0.0, %v3246
        %v3248 = vpop.f32.mrb[0].mxu0
        %3249 = vdwg.mxu0
        %v3251 = vsel %vm543, %v2462, 0
        %3253 = vmatprep.subr.mxu0 0.0
        %3254 = vmatpush1.xpose.msra.mxu0 %v3251
        %3255 = vmatprep.subr.mxu0 0.0
        %3256 = vmatpush1.xpose.msra.mxu0 0.0
        %3257 = vmatprep.subr.mxu0 0.0
        %3258 = vmatpush1.xpose.msra.mxu0 0.0
        %3259 = vmatprep.subr.mxu0 0.0
        %3260 = vmatpush1.xpose.msra.mxu0 0.0
        %3261 = vmatprep.subr.mxu0 0.0
        %3262 = vmatpush1.xpose.msra.mxu0 0.0
        %3263 = vmatprep.subr.mxu0 0.0
        %3264 = vmatpush1.xpose.msra.mxu0 0.0
        %3265 = vmatprep.subr.mxu0 0.0
        %3266 = vmatpush1.xpose.msra.mxu0 0.0
        %3267 = vmatprep.subr.mxu0 0.0
        %3268 = vmatpush1.xpose.msra.mxu0 0.0
        %3269 = vmatprep.subr.mxu0 0.0
        %3270 = vmatpush1.xpose.msra.mxu0 0.0
        %3271 = vmatprep.subr.mxu0 0.0
        %3272 = vmatpush1.xpose.msra.mxu0 0.0
        %3273 = vmatprep.subr.mxu0 0.0
        %3274 = vmatpush1.xpose.msra.mxu0 0.0
        %3275 = vmatprep.subr.mxu0 0.0
        %3276 = vmatpush1.xpose.msra.mxu0 0.0
        %3277 = vmatprep.subr.mxu0 0.0
        %3278 = vmatpush1.xpose.msra.mxu0 0.0
        %3279 = vmatprep.subr.mxu0 0.0
        %3280 = vmatpush1.xpose.msra.mxu0 0.0
        %3281 = vmatprep.subr.mxu0 0.0
        %3282 = vmatpush1.xpose.msra.mxu0 0.0
        %3283 = vmatprep.subr.mxu0 0.0
        %3284 = vmatpush1.xpose.msra.mxu0 0.0
        %3285 = vmatprep.subr.mxu0 0.0
        %3286 = vmatpush1.xpose.msra.mxu0 0.0
        %3287 = vmatprep.subr.mxu0 0.0
        %3288 = vmatpush1.xpose.msra.mxu0 0.0
        %3289 = vmatprep.subr.mxu0 0.0
        %3290 = vmatpush1.xpose.msra.mxu0 0.0
        %3291 = vmatprep.subr.mxu0 0.0
        %3292 = vmatpush1.xpose.msra.mxu0 0.0
        %3293 = vmatprep.subr.mxu0 0.0
        %3294 = vmatpush1.xpose.msra.mxu0 0.0
        %3295 = vmatprep.subr.mxu0 0.0
        %3296 = vmatpush1.xpose.msra.mxu0 0.0
        %3297 = vmatprep.subr.mxu0 0.0
        %3298 = vmatpush1.xpose.msra.mxu0 0.0
        %3299 = vmatprep.subr.mxu0 0.0
        %3300 = vmatpush1.xpose.msra.mxu0 0.0
        %3301 = vmatprep.subr.mxu0 0.0
        %3302 = vmatpush1.xpose.msra.mxu0 0.0
        %3303 = vmatprep.subr.mxu0 0.0
        %3304 = vmatpush1.xpose.msra.mxu0 0.0
        %3305 = vmatprep.subr.mxu0 0.0
        %3306 = vmatpush1.xpose.msra.mxu0 0.0
        %3307 = vmatprep.subr.mxu0 0.0
        %3308 = vmatpush1.xpose.msra.mxu0 0.0
        %3309 = vmatprep.subr.mxu0 0.0
        %3310 = vmatpush1.xpose.msra.mxu0 0.0
        %3311 = vmatprep.subr.mxu0 0.0
        %3312 = vmatpush1.xpose.msra.mxu0 0.0
        %3313 = vmatprep.subr.mxu0 0.0
        %3314 = vmatpush1.xpose.msra.mxu0 0.0
        %3315 = vmatprep.subr.mxu0 0.0
        %3316 = vmatpush1.xpose.msra.mxu0 0.0
        %3317 = vmatprep.mubr.f32.mxu0 0.0
        %3318 = vmatmul.mubr.f32.gmra.mrb[0].mxu0 %v2777
        %v3319 = vpop.f32.mrb[0].mxu0
        %v3320 = vadd.f32 0.0, %v3319
        %v3321 = vpop.f32.mrb[0].mxu0
        %3322 = vmatprep.mubr.f32.mxu0 0.0
        %3323 = vmatmul.mubr.f32.gmra.mrb[0].mxu0 %v2780
        %v3324 = vpop.f32.mrb[0].mxu0
        %v3325 = vadd.f32 0.0, %v3324
        %v3326 = vpop.f32.mrb[0].mxu0
        %3327 = vdwg.mxu0
        %v3329 = vsel %vm543, %v2463, 0
        %3331 = vmatprep.subr.mxu0 0.0
        %3332 = vmatpush1.xpose.msra.mxu0 %v3329
        %3333 = vmatprep.subr.mxu0 0.0
        %3334 = vmatpush1.xpose.msra.mxu0 0.0
        %3335 = vmatprep.subr.mxu0 0.0
        %3336 = vmatpush1.xpose.msra.mxu0 0.0
        %3337 = vmatprep.subr.mxu0 0.0
        %3338 = vmatpush1.xpose.msra.mxu0 0.0
        %3339 = vmatprep.subr.mxu0 0.0
        %3340 = vmatpush1.xpose.msra.mxu0 0.0
        %3341 = vmatprep.subr.mxu0 0.0
        %3342 = vmatpush1.xpose.msra.mxu0 0.0
        %3343 = vmatprep.subr.mxu0 0.0
        %3344 = vmatpush1.xpose.msra.mxu0 0.0
        %3345 = vmatprep.subr.mxu0 0.0
        %3346 = vmatpush1.xpose.msra.mxu0 0.0
        %3347 = vmatprep.subr.mxu0 0.0
        %3348 = vmatpush1.xpose.msra.mxu0 0.0
        %3349 = vmatprep.subr.mxu0 0.0
        %3350 = vmatpush1.xpose.msra.mxu0 0.0
        %3351 = vmatprep.subr.mxu0 0.0
        %3352 = vmatpush1.xpose.msra.mxu0 0.0
        %3353 = vmatprep.subr.mxu0 0.0
        %3354 = vmatpush1.xpose.msra.mxu0 0.0
        %3355 = vmatprep.subr.mxu0 0.0
        %3356 = vmatpush1.xpose.msra.mxu0 0.0
        %3357 = vmatprep.subr.mxu0 0.0
        %3358 = vmatpush1.xpose.msra.mxu0 0.0
        %3359 = vmatprep.subr.mxu0 0.0
        %3360 = vmatpush1.xpose.msra.mxu0 0.0
        %3361 = vmatprep.subr.mxu0 0.0
        %3362 = vmatpush1.xpose.msra.mxu0 0.0
        %3363 = vmatprep.subr.mxu0 0.0
        %3364 = vmatpush1.xpose.msra.mxu0 0.0
        %3365 = vmatprep.subr.mxu0 0.0
        %3366 = vmatpush1.xpose.msra.mxu0 0.0
        %3367 = vmatprep.subr.mxu0 0.0
        %3368 = vmatpush1.xpose.msra.mxu0 0.0
        %3369 = vmatprep.subr.mxu0 0.0
        %3370 = vmatpush1.xpose.msra.mxu0 0.0
        %3371 = vmatprep.subr.mxu0 0.0
        %3372 = vmatpush1.xpose.msra.mxu0 0.0
        %3373 = vmatprep.subr.mxu0 0.0
        %3374 = vmatpush1.xpose.msra.mxu0 0.0
        %3375 = vmatprep.subr.mxu0 0.0
        %3376 = vmatpush1.xpose.msra.mxu0 0.0
        %3377 = vmatprep.subr.mxu0 0.0
        %3378 = vmatpush1.xpose.msra.mxu0 0.0
        %3379 = vmatprep.subr.mxu0 0.0
        %3380 = vmatpush1.xpose.msra.mxu0 0.0
        %3381 = vmatprep.subr.mxu0 0.0
        %3382 = vmatpush1.xpose.msra.mxu0 0.0
        %3383 = vmatprep.subr.mxu0 0.0
        %3384 = vmatpush1.xpose.msra.mxu0 0.0
        %3385 = vmatprep.subr.mxu0 0.0
        %3386 = vmatpush1.xpose.msra.mxu0 0.0
        %3387 = vmatprep.subr.mxu0 0.0
        %3388 = vmatpush1.xpose.msra.mxu0 0.0
        %3389 = vmatprep.subr.mxu0 0.0
        %3390 = vmatpush1.xpose.msra.mxu0 0.0
        %3391 = vmatprep.subr.mxu0 0.0
        %3392 = vmatpush1.xpose.msra.mxu0 0.0
        %3393 = vmatprep.subr.mxu0 0.0
        %3394 = vmatpush1.xpose.msra.mxu0 0.0
        %3395 = vmatprep.mubr.f32.mxu0 0.0
        %3396 = vmatmul.mubr.f32.gmra.mrb[0].mxu0 %v2777
        %v3397 = vpop.f32.mrb[0].mxu0
        %v3398 = vadd.f32 0.0, %v3397
        %v3399 = vpop.f32.mrb[0].mxu0
        %3400 = vmatprep.mubr.f32.mxu0 0.0
        %3401 = vmatmul.mubr.f32.gmra.mrb[0].mxu0 %v2780
        %v3402 = vpop.f32.mrb[0].mxu0
        %v3403 = vadd.f32 0.0, %v3402
        %v3404 = vpop.f32.mrb[0].mxu0
        %3405 = vdwg.mxu0
        %v3407 = vsel %vm1423, %v2554, 0
        %v3410 = vsel %vm1423, %v2852, 0
        %v3413 = vsel %vm1423, %v2857, 0
        %3415 = vmatprep.subr.mxu0 0.0
        %3416 = vmatpush1.xpose.msra.mxu0 %v3410
        %3417 = vmatprep.subr.mxu0 0.0
        %3418 = vmatpush1.xpose.msra.mxu0 %v3413
        %3419 = vmatprep.subr.mxu0 0.0
        %3420 = vmatpush1.xpose.msra.mxu0 0.0
        %3421 = vmatprep.subr.mxu0 0.0
        %3422 = vmatpush1.xpose.msra.mxu0 0.0
        %3423 = vmatprep.subr.mxu0 0.0
        %3424 = vmatpush1.xpose.msra.mxu0 0.0
        %3425 = vmatprep.subr.mxu0 0.0
        %3426 = vmatpush1.xpose.msra.mxu0 0.0
        %3427 = vmatprep.subr.mxu0 0.0
        %3428 = vmatpush1.xpose.msra.mxu0 0.0
        %3429 = vmatprep.subr.mxu0 0.0
        %3430 = vmatpush1.xpose.msra.mxu0 0.0
        %3431 = vmatprep.subr.mxu0 0.0
        %3432 = vmatpush1.xpose.msra.mxu0 0.0
        %3433 = vmatprep.subr.mxu0 0.0
        %3434 = vmatpush1.xpose.msra.mxu0 0.0
        %3435 = vmatprep.subr.mxu0 0.0
        %3436 = vmatpush1.xpose.msra.mxu0 0.0
        %3437 = vmatprep.subr.mxu0 0.0
        %3438 = vmatpush1.xpose.msra.mxu0 0.0
        %3439 = vmatprep.subr.mxu0 0.0
        %3440 = vmatpush1.xpose.msra.mxu0 0.0
        %3441 = vmatprep.subr.mxu0 0.0
        %3442 = vmatpush1.xpose.msra.mxu0 0.0
        %3443 = vmatprep.subr.mxu0 0.0
        %3444 = vmatpush1.xpose.msra.mxu0 0.0
        %3445 = vmatprep.subr.mxu0 0.0
        %3446 = vmatpush1.xpose.msra.mxu0 0.0
        %3447 = vmatprep.subr.mxu0 0.0
        %3448 = vmatpush1.xpose.msra.mxu0 0.0
        %3449 = vmatprep.subr.mxu0 0.0
        %3450 = vmatpush1.xpose.msra.mxu0 0.0
        %3451 = vmatprep.subr.mxu0 0.0
        %3452 = vmatpush1.xpose.msra.mxu0 0.0
        %3453 = vmatprep.subr.mxu0 0.0
        %3454 = vmatpush1.xpose.msra.mxu0 0.0
        %3455 = vmatprep.subr.mxu0 0.0
        %3456 = vmatpush1.xpose.msra.mxu0 0.0
        %3457 = vmatprep.subr.mxu0 0.0
        %3458 = vmatpush1.xpose.msra.mxu0 0.0
        %3459 = vmatprep.subr.mxu0 0.0
        %3460 = vmatpush1.xpose.msra.mxu0 0.0
        %3461 = vmatprep.subr.mxu0 0.0
        %3462 = vmatpush1.xpose.msra.mxu0 0.0
        %3463 = vmatprep.subr.mxu0 0.0
        %3464 = vmatpush1.xpose.msra.mxu0 0.0
        %3465 = vmatprep.subr.mxu0 0.0
        %3466 = vmatpush1.xpose.msra.mxu0 0.0
        %3467 = vmatprep.subr.mxu0 0.0
        %3468 = vmatpush1.xpose.msra.mxu0 0.0
        %3469 = vmatprep.subr.mxu0 0.0
        %3470 = vmatpush1.xpose.msra.mxu0 0.0
        %3471 = vmatprep.subr.mxu0 0.0
        %3472 = vmatpush1.xpose.msra.mxu0 0.0
        %3473 = vmatprep.subr.mxu0 0.0
        %3474 = vmatpush1.xpose.msra.mxu0 0.0
        %3475 = vmatprep.subr.mxu0 0.0
        %3476 = vmatpush1.xpose.msra.mxu0 0.0
        %3477 = vmatprep.subr.mxu0 0.0
        %3478 = vmatpush1.xpose.msra.mxu0 0.0
        %3479 = vmatprep.mubr.f32.mxu0 0.0
        %3480 = vmatmul.mubr.f32.gmra.mrb[0].mxu0 %v3407
        %v3481 = vpop.f32.mrb[0].mxu0
        %v3482 = vadd.f32 0.0, %v3481
        %v3483 = vpop.f32.mrb[0].mxu0
        %3484 = vdwg.mxu0
        %v3486 = vsel %vm1423, %v2627, 0
        %v3489 = vsel %vm1423, %v2930, 0
        %v3492 = vsel %vm1423, %v2935, 0
        %3494 = vmatprep.subr.mxu0 0.0
        %3495 = vmatpush1.xpose.msra.mxu0 %v3489
        %3496 = vmatprep.subr.mxu0 0.0
        %3497 = vmatpush1.xpose.msra.mxu0 %v3492
        %3498 = vmatprep.subr.mxu0 0.0
        %3499 = vmatpush1.xpose.msra.mxu0 0.0
        %3500 = vmatprep.subr.mxu0 0.0
        %3501 = vmatpush1.xpose.msra.mxu0 0.0
        %3502 = vmatprep.subr.mxu0 0.0
        %3503 = vmatpush1.xpose.msra.mxu0 0.0
        %3504 = vmatprep.subr.mxu0 0.0
        %3505 = vmatpush1.xpose.msra.mxu0 0.0
        %3506 = vmatprep.subr.mxu0 0.0
        %3507 = vmatpush1.xpose.msra.mxu0 0.0
        %3508 = vmatprep.subr.mxu0 0.0
        %3509 = vmatpush1.xpose.msra.mxu0 0.0
        %3510 = vmatprep.subr.mxu0 0.0
        %3511 = vmatpush1.xpose.msra.mxu0 0.0
        %3512 = vmatprep.subr.mxu0 0.0
        %3513 = vmatpush1.xpose.msra.mxu0 0.0
        %3514 = vmatprep.subr.mxu0 0.0
        %3515 = vmatpush1.xpose.msra.mxu0 0.0
        %3516 = vmatprep.subr.mxu0 0.0
        %3517 = vmatpush1.xpose.msra.mxu0 0.0
        %3518 = vmatprep.subr.mxu0 0.0
        %3519 = vmatpush1.xpose.msra.mxu0 0.0
        %3520 = vmatprep.subr.mxu0 0.0
        %3521 = vmatpush1.xpose.msra.mxu0 0.0
        %3522 = vmatprep.subr.mxu0 0.0
        %3523 = vmatpush1.xpose.msra.mxu0 0.0
        %3524 = vmatprep.subr.mxu0 0.0
        %3525 = vmatpush1.xpose.msra.mxu0 0.0
        %3526 = vmatprep.subr.mxu0 0.0
        %3527 = vmatpush1.xpose.msra.mxu0 0.0
        %3528 = vmatprep.subr.mxu0 0.0
        %3529 = vmatpush1.xpose.msra.mxu0 0.0
        %3530 = vmatprep.subr.mxu0 0.0
        %3531 = vmatpush1.xpose.msra.mxu0 0.0
        %3532 = vmatprep.subr.mxu0 0.0
        %3533 = vmatpush1.xpose.msra.mxu0 0.0
        %3534 = vmatprep.subr.mxu0 0.0
        %3535 = vmatpush1.xpose.msra.mxu0 0.0
        %3536 = vmatprep.subr.mxu0 0.0
        %3537 = vmatpush1.xpose.msra.mxu0 0.0
        %3538 = vmatprep.subr.mxu0 0.0
        %3539 = vmatpush1.xpose.msra.mxu0 0.0
        %3540 = vmatprep.subr.mxu0 0.0
        %3541 = vmatpush1.xpose.msra.mxu0 0.0
        %3542 = vmatprep.subr.mxu0 0.0
        %3543 = vmatpush1.xpose.msra.mxu0 0.0
        %3544 = vmatprep.subr.mxu0 0.0
        %3545 = vmatpush1.xpose.msra.mxu0 0.0
        %3546 = vmatprep.subr.mxu0 0.0
        %3547 = vmatpush1.xpose.msra.mxu0 0.0
        %3548 = vmatprep.subr.mxu0 0.0
        %3549 = vmatpush1.xpose.msra.mxu0 0.0
        %3550 = vmatprep.subr.mxu0 0.0
        %3551 = vmatpush1.xpose.msra.mxu0 0.0
        %3552 = vmatprep.subr.mxu0 0.0
        %3553 = vmatpush1.xpose.msra.mxu0 0.0
        %3554 = vmatprep.subr.mxu0 0.0
        %3555 = vmatpush1.xpose.msra.mxu0 0.0
        %3556 = vmatprep.subr.mxu0 0.0
        %3557 = vmatpush1.xpose.msra.mxu0 0.0
        %3558 = vmatprep.mubr.f32.mxu0 0.0
        %3559 = vmatmul.mubr.f32.gmra.mrb[0].mxu0 %v3486
        %v3560 = vpop.f32.mrb[0].mxu0
        %v3561 = vadd.f32 0.0, %v3560
        %v3562 = vpop.f32.mrb[0].mxu0
        %3563 = vdwg.mxu0
        %v3565 = vsel %vm1423, %v2700, 0
        %v3568 = vsel %vm1423, %v3008, 0
        %v3571 = vsel %vm1423, %v3013, 0
        %3573 = vmatprep.subr.mxu0 0.0
        %3574 = vmatpush1.xpose.msra.mxu0 %v3568
        %3575 = vmatprep.subr.mxu0 0.0
        %3576 = vmatpush1.xpose.msra.mxu0 %v3571
        %3577 = vmatprep.subr.mxu0 0.0
        %3578 = vmatpush1.xpose.msra.mxu0 0.0
        %3579 = vmatprep.subr.mxu0 0.0
        %3580 = vmatpush1.xpose.msra.mxu0 0.0
        %3581 = vmatprep.subr.mxu0 0.0
        %3582 = vmatpush1.xpose.msra.mxu0 0.0
        %3583 = vmatprep.subr.mxu0 0.0
        %3584 = vmatpush1.xpose.msra.mxu0 0.0
        %3585 = vmatprep.subr.mxu0 0.0
        %3586 = vmatpush1.xpose.msra.mxu0 0.0
        %3587 = vmatprep.subr.mxu0 0.0
        %3588 = vmatpush1.xpose.msra.mxu0 0.0
        %3589 = vmatprep.subr.mxu0 0.0
        %3590 = vmatpush1.xpose.msra.mxu0 0.0
        %3591 = vmatprep.subr.mxu0 0.0
        %3592 = vmatpush1.xpose.msra.mxu0 0.0
        %3593 = vmatprep.subr.mxu0 0.0
        %3594 = vmatpush1.xpose.msra.mxu0 0.0
        %3595 = vmatprep.subr.mxu0 0.0
        %3596 = vmatpush1.xpose.msra.mxu0 0.0
        %3597 = vmatprep.subr.mxu0 0.0
        %3598 = vmatpush1.xpose.msra.mxu0 0.0
        %3599 = vmatprep.subr.mxu0 0.0
        %3600 = vmatpush1.xpose.msra.mxu0 0.0
        %3601 = vmatprep.subr.mxu0 0.0
        %3602 = vmatpush1.xpose.msra.mxu0 0.0
        %3603 = vmatprep.subr.mxu0 0.0
        %3604 = vmatpush1.xpose.msra.mxu0 0.0
        %3605 = vmatprep.subr.mxu0 0.0
        %3606 = vmatpush1.xpose.msra.mxu0 0.0
        %3607 = vmatprep.subr.mxu0 0.0
        %3608 = vmatpush1.xpose.msra.mxu0 0.0
        %3609 = vmatprep.subr.mxu0 0.0
        %3610 = vmatpush1.xpose.msra.mxu0 0.0
        %3611 = vmatprep.subr.mxu0 0.0
        %3612 = vmatpush1.xpose.msra.mxu0 0.0
        %3613 = vmatprep.subr.mxu0 0.0
        %3614 = vmatpush1.xpose.msra.mxu0 0.0
        %3615 = vmatprep.subr.mxu0 0.0
        %3616 = vmatpush1.xpose.msra.mxu0 0.0
        %3617 = vmatprep.subr.mxu0 0.0
        %3618 = vmatpush1.xpose.msra.mxu0 0.0
        %3619 = vmatprep.subr.mxu0 0.0
        %3620 = vmatpush1.xpose.msra.mxu0 0.0
        %3621 = vmatprep.subr.mxu0 0.0
        %3622 = vmatpush1.xpose.msra.mxu0 0.0
        %3623 = vmatprep.subr.mxu0 0.0
        %3624 = vmatpush1.xpose.msra.mxu0 0.0
        %3625 = vmatprep.subr.mxu0 0.0
        %3626 = vmatpush1.xpose.msra.mxu0 0.0
        %3627 = vmatprep.subr.mxu0 0.0
        %3628 = vmatpush1.xpose.msra.mxu0 0.0
        %3629 = vmatprep.subr.mxu0 0.0
        %3630 = vmatpush1.xpose.msra.mxu0 0.0
        %3631 = vmatprep.subr.mxu0 0.0
        %3632 = vmatpush1.xpose.msra.mxu0 0.0
        %3633 = vmatprep.subr.mxu0 0.0
        %3634 = vmatpush1.xpose.msra.mxu0 0.0
        %3635 = vmatprep.subr.mxu0 0.0
        %3636 = vmatpush1.xpose.msra.mxu0 0.0
        %3637 = vmatprep.mubr.f32.mxu0 0.0
        %3638 = vmatmul.mubr.f32.gmra.mrb[0].mxu0 %v3565
        %v3639 = vpop.f32.mrb[0].mxu0
        %v3640 = vadd.f32 0.0, %v3639
        %v3641 = vpop.f32.mrb[0].mxu0
        %3642 = vdwg.mxu0
        %v3644 = vsel %vm1423, %v2773, 0
        %v3647 = vsel %vm1423, %v3086, 0
        %v3650 = vsel %vm1423, %v3091, 0
        %3652 = vmatprep.subr.mxu0 0.0
        %3653 = vmatpush1.xpose.msra.mxu0 %v3647
        %3654 = vmatprep.subr.mxu0 0.0
        %3655 = vmatpush1.xpose.msra.mxu0 %v3650
        %3656 = vmatprep.subr.mxu0 0.0
        %3657 = vmatpush1.xpose.msra.mxu0 0.0
        %3658 = vmatprep.subr.mxu0 0.0
        %3659 = vmatpush1.xpose.msra.mxu0 0.0
        %3660 = vmatprep.subr.mxu0 0.0
        %3661 = vmatpush1.xpose.msra.mxu0 0.0
        %3662 = vmatprep.subr.mxu0 0.0
        %3663 = vmatpush1.xpose.msra.mxu0 0.0
        %3664 = vmatprep.subr.mxu0 0.0
        %3665 = vmatpush1.xpose.msra.mxu0 0.0
        %3666 = vmatprep.subr.mxu0 0.0
        %3667 = vmatpush1.xpose.msra.mxu0 0.0
        %3668 = vmatprep.subr.mxu0 0.0
        %3669 = vmatpush1.xpose.msra.mxu0 0.0
        %3670 = vmatprep.subr.mxu0 0.0
        %3671 = vmatpush1.xpose.msra.mxu0 0.0
        %3672 = vmatprep.subr.mxu0 0.0
        %3673 = vmatpush1.xpose.msra.mxu0 0.0
        %3674 = vmatprep.subr.mxu0 0.0
        %3675 = vmatpush1.xpose.msra.mxu0 0.0
        %3676 = vmatprep.subr.mxu0 0.0
        %3677 = vmatpush1.xpose.msra.mxu0 0.0
        %3678 = vmatprep.subr.mxu0 0.0
        %3679 = vmatpush1.xpose.msra.mxu0 0.0
        %3680 = vmatprep.subr.mxu0 0.0
        %3681 = vmatpush1.xpose.msra.mxu0 0.0
        %3682 = vmatprep.subr.mxu0 0.0
        %3683 = vmatpush1.xpose.msra.mxu0 0.0
        %3684 = vmatprep.subr.mxu0 0.0
        %3685 = vmatpush1.xpose.msra.mxu0 0.0
        %3686 = vmatprep.subr.mxu0 0.0
        %3687 = vmatpush1.xpose.msra.mxu0 0.0
        %3688 = vmatprep.subr.mxu0 0.0
        %3689 = vmatpush1.xpose.msra.mxu0 0.0
        %3690 = vmatprep.subr.mxu0 0.0
        %3691 = vmatpush1.xpose.msra.mxu0 0.0
        %3692 = vmatprep.subr.mxu0 0.0
        %3693 = vmatpush1.xpose.msra.mxu0 0.0
        %3694 = vmatprep.subr.mxu0 0.0
        %3695 = vmatpush1.xpose.msra.mxu0 0.0
        %3696 = vmatprep.subr.mxu0 0.0
        %3697 = vmatpush1.xpose.msra.mxu0 0.0
        %3698 = vmatprep.subr.mxu0 0.0
        %3699 = vmatpush1.xpose.msra.mxu0 0.0
        %3700 = vmatprep.subr.mxu0 0.0
        %3701 = vmatpush1.xpose.msra.mxu0 0.0
        %3702 = vmatprep.subr.mxu0 0.0
        %3703 = vmatpush1.xpose.msra.mxu0 0.0
        %3704 = vmatprep.subr.mxu0 0.0
        %3705 = vmatpush1.xpose.msra.mxu0 0.0
        %3706 = vmatprep.subr.mxu0 0.0
        %3707 = vmatpush1.xpose.msra.mxu0 0.0
        %3708 = vmatprep.subr.mxu0 0.0
        %3709 = vmatpush1.xpose.msra.mxu0 0.0
        %3710 = vmatprep.subr.mxu0 0.0
        %3711 = vmatpush1.xpose.msra.mxu0 0.0
        %3712 = vmatprep.subr.mxu0 0.0
        %3713 = vmatpush1.xpose.msra.mxu0 0.0
        %3714 = vmatprep.subr.mxu0 0.0
        %3715 = vmatpush1.xpose.msra.mxu0 0.0
        %3716 = vmatprep.mubr.f32.mxu0 0.0
        %3717 = vmatmul.mubr.f32.gmra.mrb[0].mxu0 %v3644
        %v3718 = vpop.f32.mrb[0].mxu0
        %v3719 = vadd.f32 0.0, %v3718
        %v3720 = vpop.f32.mrb[0].mxu0
        %3721 = vdwg.mxu0
        %vm3722 = vcmask 130048
        %v3723 = vsel %vm3722, %v3482, -inf
        %3724 = vmax.xlane.f32.xlu0 %v3723
        %v3725 = vpop.xlane.xlu0 %3724
        %v3726 = vsel %vm3722, %v3561, -inf
        %3727 = vmax.xlane.f32.xlu0 %v3726
        %v3728 = vpop.xlane.xlu0 %3727
        %v3729 = vsel %vm3722, %v3640, -inf
        %3730 = vmax.xlane.f32.xlu0 %v3729
        %v3731 = vpop.xlane.xlu0 %3730
        %v3732 = vsel %vm3722, %v3719, -inf
        %3733 = vmax.xlane.f32.xlu0 %v3732
        %v3734 = vpop.xlane.xlu0 %3733
        %v3735 = vsub.f32 %v3482, %v3725
        %v3736 = vsub.f32 %v3561, %v3728
        %v3737 = vsub.f32 %v3640, %v3731
        %v3738 = vsub.f32 %v3719, %v3734
        %v3739 = vmul.f32 %v3735, 1.442695
        %v3740 = vpow.pop %v3739
        %v3741 = vmul.f32 %v3736, 1.442695
        %v3742 = vpow.pop %v3741
        %v3743 = vmul.f32 %v3737, 1.442695
        %v3744 = vpow.pop %v3743
        %v3745 = vmul.f32 %v3738, 1.442695
        %v3746 = vpow.pop %v3745
        %v3747 = vsel %vm3722, %v3740, 0.0
        %3748 = vadd.xlane.f32.xlu0 %v3747
        %v3749 = vpop.xlane.xlu0 %3748
        %v3750 = vsel %vm3722, %v3742, 0.0
        %3751 = vadd.xlane.f32.xlu0 %v3750
        %v3752 = vpop.xlane.xlu0 %3751
        %v3753 = vsel %vm3722, %v3744, 0.0
        %3754 = vadd.xlane.f32.xlu0 %v3753
        %v3755 = vpop.xlane.xlu0 %3754
        %v3756 = vsel %vm3722, %v3746, 0.0
        %3757 = vadd.xlane.f32.xlu0 %v3756
        %v3758 = vpop.xlane.xlu0 %3757
        %v3759 = vrcp.pop %v3749
        %v3760 = vrcp.pop %v3752
        %v3761 = vrcp.pop %v3755
        %v3762 = vrcp.pop %v3758
        %v3763 = vmul.f32 %v3740, %v3759
        %v3764 = vmul.f32 %v3742, %v3760
        %v3765 = vmul.f32 %v3744, %v3761
        %v3766 = vmul.f32 %v3746, %v3762
        %v3768 = vsel %vm3722, %v3763, 0
        %3770 = vmatprep.subr.mxu0 0.0
        %3771 = vmatpush1.msra.mxu0 %v3164
        %3772 = vmatprep.subr.mxu0 0.0
        %3773 = vmatpush1.msra.mxu0 %v3169
        %3774 = vmatprep.subr.mxu0 0.0
        %3775 = vmatpush1.msra.mxu0 0.0
        %3776 = vmatprep.subr.mxu0 0.0
        %3777 = vmatpush1.msra.mxu0 0.0
        %3778 = vmatprep.subr.mxu0 0.0
        %3779 = vmatpush1.msra.mxu0 0.0
        %3780 = vmatprep.subr.mxu0 0.0
        %3781 = vmatpush1.msra.mxu0 0.0
        %3782 = vmatprep.subr.mxu0 0.0
        %3783 = vmatpush1.msra.mxu0 0.0
        %3784 = vmatprep.subr.mxu0 0.0
        %3785 = vmatpush1.msra.mxu0 0.0
        %3786 = vmatprep.subr.mxu0 0.0
        %3787 = vmatpush1.msra.mxu0 0.0
        %3788 = vmatprep.subr.mxu0 0.0
        %3789 = vmatpush1.msra.mxu0 0.0
        %3790 = vmatprep.subr.mxu0 0.0
        %3791 = vmatpush1.msra.mxu0 0.0
        %3792 = vmatprep.subr.mxu0 0.0
        %3793 = vmatpush1.msra.mxu0 0.0
        %3794 = vmatprep.subr.mxu0 0.0
        %3795 = vmatpush1.msra.mxu0 0.0
        %3796 = vmatprep.subr.mxu0 0.0
        %3797 = vmatpush1.msra.mxu0 0.0
        %3798 = vmatprep.subr.mxu0 0.0
        %3799 = vmatpush1.msra.mxu0 0.0
        %3800 = vmatprep.subr.mxu0 0.0
        %3801 = vmatpush1.msra.mxu0 0.0
        %3802 = vmatprep.subr.mxu0 0.0
        %3803 = vmatpush1.msra.mxu0 0.0
        %3804 = vmatprep.subr.mxu0 0.0
        %3805 = vmatpush1.msra.mxu0 0.0
        %3806 = vmatprep.subr.mxu0 0.0
        %3807 = vmatpush1.msra.mxu0 0.0
        %3808 = vmatprep.subr.mxu0 0.0
        %3809 = vmatpush1.msra.mxu0 0.0
        %3810 = vmatprep.subr.mxu0 0.0
        %3811 = vmatpush1.msra.mxu0 0.0
        %3812 = vmatprep.subr.mxu0 0.0
        %3813 = vmatpush1.msra.mxu0 0.0
        %3814 = vmatprep.subr.mxu0 0.0
        %3815 = vmatpush1.msra.mxu0 0.0
        %3816 = vmatprep.subr.mxu0 0.0
        %3817 = vmatpush1.msra.mxu0 0.0
        %3818 = vmatprep.subr.mxu0 0.0
        %3819 = vmatpush1.msra.mxu0 0.0
        %3820 = vmatprep.subr.mxu0 0.0
        %3821 = vmatpush1.msra.mxu0 0.0
        %3822 = vmatprep.subr.mxu0 0.0
        %3823 = vmatpush1.msra.mxu0 0.0
        %3824 = vmatprep.subr.mxu0 0.0
        %3825 = vmatpush1.msra.mxu0 0.0
        %3826 = vmatprep.subr.mxu0 0.0
        %3827 = vmatpush1.msra.mxu0 0.0
        %3828 = vmatprep.subr.mxu0 0.0
        %3829 = vmatpush1.msra.mxu0 0.0
        %3830 = vmatprep.subr.mxu0 0.0
        %3831 = vmatpush1.msra.mxu0 0.0
        %3832 = vmatprep.subr.mxu0 0.0
        %3833 = vmatpush1.msra.mxu0 0.0
        %3834 = vmatprep.mubr.f32.mxu0 0.0
        %3835 = vmatmul.mubr.f32.gmra.mrb[0].mxu0 %v3768
        %v3836 = vpop.f32.mrb[0].mxu0
        %v3837 = vadd.f32 0.0, %v3836
        %v3838 = vpop.f32.mrb[0].mxu0
        %3839 = vdwg.mxu0
        %v3841 = vsel %vm3722, %v3764, 0
        %3843 = vmatprep.subr.mxu0 0.0
        %3844 = vmatpush1.msra.mxu0 %v3242
        %3845 = vmatprep.subr.mxu0 0.0
        %3846 = vmatpush1.msra.mxu0 %v3247
        %3847 = vmatprep.subr.mxu0 0.0
        %3848 = vmatpush1.msra.mxu0 0.0
        %3849 = vmatprep.subr.mxu0 0.0
        %3850 = vmatpush1.msra.mxu0 0.0
        %3851 = vmatprep.subr.mxu0 0.0
        %3852 = vmatpush1.msra.mxu0 0.0
        %3853 = vmatprep.subr.mxu0 0.0
        %3854 = vmatpush1.msra.mxu0 0.0
        %3855 = vmatprep.subr.mxu0 0.0
        %3856 = vmatpush1.msra.mxu0 0.0
        %3857 = vmatprep.subr.mxu0 0.0
        %3858 = vmatpush1.msra.mxu0 0.0
        %3859 = vmatprep.subr.mxu0 0.0
        %3860 = vmatpush1.msra.mxu0 0.0
        %3861 = vmatprep.subr.mxu0 0.0
        %3862 = vmatpush1.msra.mxu0 0.0
        %3863 = vmatprep.subr.mxu0 0.0
        %3864 = vmatpush1.msra.mxu0 0.0
        %3865 = vmatprep.subr.mxu0 0.0
        %3866 = vmatpush1.msra.mxu0 0.0
        %3867 = vmatprep.subr.mxu0 0.0
        %3868 = vmatpush1.msra.mxu0 0.0
        %3869 = vmatprep.subr.mxu0 0.0
        %3870 = vmatpush1.msra.mxu0 0.0
        %3871 = vmatprep.subr.mxu0 0.0
        %3872 = vmatpush1.msra.mxu0 0.0
        %3873 = vmatprep.subr.mxu0 0.0
        %3874 = vmatpush1.msra.mxu0 0.0
        %3875 = vmatprep.subr.mxu0 0.0
        %3876 = vmatpush1.msra.mxu0 0.0
        %3877 = vmatprep.subr.mxu0 0.0
        %3878 = vmatpush1.msra.mxu0 0.0
        %3879 = vmatprep.subr.mxu0 0.0
        %3880 = vmatpush1.msra.mxu0 0.0
        %3881 = vmatprep.subr.mxu0 0.0
        %3882 = vmatpush1.msra.mxu0 0.0
        %3883 = vmatprep.subr.mxu0 0.0
        %3884 = vmatpush1.msra.mxu0 0.0
        %3885 = vmatprep.subr.mxu0 0.0
        %3886 = vmatpush1.msra.mxu0 0.0
        %3887 = vmatprep.subr.mxu0 0.0
        %3888 = vmatpush1.msra.mxu0 0.0
        %3889 = vmatprep.subr.mxu0 0.0
        %3890 = vmatpush1.msra.mxu0 0.0
        %3891 = vmatprep.subr.mxu0 0.0
        %3892 = vmatpush1.msra.mxu0 0.0
        %3893 = vmatprep.subr.mxu0 0.0
        %3894 = vmatpush1.msra.mxu0 0.0
        %3895 = vmatprep.subr.mxu0 0.0
        %3896 = vmatpush1.msra.mxu0 0.0
        %3897 = vmatprep.subr.mxu0 0.0
        %3898 = vmatpush1.msra.mxu0 0.0
        %3899 = vmatprep.subr.mxu0 0.0
        %3900 = vmatpush1.msra.mxu0 0.0
        %3901 = vmatprep.subr.mxu0 0.0
        %3902 = vmatpush1.msra.mxu0 0.0
        %3903 = vmatprep.subr.mxu0 0.0
        %3904 = vmatpush1.msra.mxu0 0.0
        %3905 = vmatprep.subr.mxu0 0.0
        %3906 = vmatpush1.msra.mxu0 0.0
        %3907 = vmatprep.mubr.f32.mxu0 0.0
        %3908 = vmatmul.mubr.f32.gmra.mrb[0].mxu0 %v3841
        %v3909 = vpop.f32.mrb[0].mxu0
        %v3910 = vadd.f32 0.0, %v3909
        %v3911 = vpop.f32.mrb[0].mxu0
        %3912 = vdwg.mxu0
        %v3914 = vsel %vm3722, %v3765, 0
        %3916 = vmatprep.subr.mxu0 0.0
        %3917 = vmatpush1.msra.mxu0 %v3320
        %3918 = vmatprep.subr.mxu0 0.0
        %3919 = vmatpush1.msra.mxu0 %v3325
        %3920 = vmatprep.subr.mxu0 0.0
        %3921 = vmatpush1.msra.mxu0 0.0
        %3922 = vmatprep.subr.mxu0 0.0
        %3923 = vmatpush1.msra.mxu0 0.0
        %3924 = vmatprep.subr.mxu0 0.0
        %3925 = vmatpush1.msra.mxu0 0.0
        %3926 = vmatprep.subr.mxu0 0.0
        %3927 = vmatpush1.msra.mxu0 0.0
        %3928 = vmatprep.subr.mxu0 0.0
        %3929 = vmatpush1.msra.mxu0 0.0
        %3930 = vmatprep.subr.mxu0 0.0
        %3931 = vmatpush1.msra.mxu0 0.0
        %3932 = vmatprep.subr.mxu0 0.0
        %3933 = vmatpush1.msra.mxu0 0.0
        %3934 = vmatprep.subr.mxu0 0.0
        %3935 = vmatpush1.msra.mxu0 0.0
        %3936 = vmatprep.subr.mxu0 0.0
        %3937 = vmatpush1.msra.mxu0 0.0
        %3938 = vmatprep.subr.mxu0 0.0
        %3939 = vmatpush1.msra.mxu0 0.0
        %3940 = vmatprep.subr.mxu0 0.0
        %3941 = vmatpush1.msra.mxu0 0.0
        %3942 = vmatprep.subr.mxu0 0.0
        %3943 = vmatpush1.msra.mxu0 0.0
        %3944 = vmatprep.subr.mxu0 0.0
        %3945 = vmatpush1.msra.mxu0 0.0
        %3946 = vmatprep.subr.mxu0 0.0
        %3947 = vmatpush1.msra.mxu0 0.0
        %3948 = vmatprep.subr.mxu0 0.0
        %3949 = vmatpush1.msra.mxu0 0.0
        %3950 = vmatprep.subr.mxu0 0.0
        %3951 = vmatpush1.msra.mxu0 0.0
        %3952 = vmatprep.subr.mxu0 0.0
        %3953 = vmatpush1.msra.mxu0 0.0
        %3954 = vmatprep.subr.mxu0 0.0
        %3955 = vmatpush1.msra.mxu0 0.0
        %3956 = vmatprep.subr.mxu0 0.0
        %3957 = vmatpush1.msra.mxu0 0.0
        %3958 = vmatprep.subr.mxu0 0.0
        %3959 = vmatpush1.msra.mxu0 0.0
        %3960 = vmatprep.subr.mxu0 0.0
        %3961 = vmatpush1.msra.mxu0 0.0
        %3962 = vmatprep.subr.mxu0 0.0
        %3963 = vmatpush1.msra.mxu0 0.0
        %3964 = vmatprep.subr.mxu0 0.0
        %3965 = vmatpush1.msra.mxu0 0.0
        %3966 = vmatprep.subr.mxu0 0.0
        %3967 = vmatpush1.msra.mxu0 0.0
        %3968 = vmatprep.subr.mxu0 0.0
        %3969 = vmatpush1.msra.mxu0 0.0
        %3970 = vmatprep.subr.mxu0 0.0
        %3971 = vmatpush1.msra.mxu0 0.0
        %3972 = vmatprep.subr.mxu0 0.0
        %3973 = vmatpush1.msra.mxu0 0.0
        %3974 = vmatprep.subr.mxu0 0.0
        %3975 = vmatpush1.msra.mxu0 0.0
        %3976 = vmatprep.subr.mxu0 0.0
        %3977 = vmatpush1.msra.mxu0 0.0
        %3978 = vmatprep.subr.mxu0 0.0
        %3979 = vmatpush1.msra.mxu0 0.0
        %3980 = vmatprep.mubr.f32.mxu0 0.0
        %3981 = vmatmul.mubr.f32.gmra.mrb[0].mxu0 %v3914
        %v3982 = vpop.f32.mrb[0].mxu0
        %v3983 = vadd.f32 0.0, %v3982
        %v3984 = vpop.f32.mrb[0].mxu0
        %3985 = vdwg.mxu0
        %v3987 = vsel %vm3722, %v3766, 0
        %3989 = vmatprep.subr.mxu0 0.0
        %3990 = vmatpush1.msra.mxu0 %v3398
        %3991 = vmatprep.subr.mxu0 0.0
        %3992 = vmatpush1.msra.mxu0 %v3403
        %3993 = vmatprep.subr.mxu0 0.0
        %3994 = vmatpush1.msra.mxu0 0.0
        %3995 = vmatprep.subr.mxu0 0.0
        %3996 = vmatpush1.msra.mxu0 0.0
        %3997 = vmatprep.subr.mxu0 0.0
        %3998 = vmatpush1.msra.mxu0 0.0
        %3999 = vmatprep.subr.mxu0 0.0
        %4000 = vmatpush1.msra.mxu0 0.0
        %4001 = vmatprep.subr.mxu0 0.0
        %4002 = vmatpush1.msra.mxu0 0.0
        %4003 = vmatprep.subr.mxu0 0.0
        %4004 = vmatpush1.msra.mxu0 0.0
        %4005 = vmatprep.subr.mxu0 0.0
        %4006 = vmatpush1.msra.mxu0 0.0
        %4007 = vmatprep.subr.mxu0 0.0
        %4008 = vmatpush1.msra.mxu0 0.0
        %4009 = vmatprep.subr.mxu0 0.0
        %4010 = vmatpush1.msra.mxu0 0.0
        %4011 = vmatprep.subr.mxu0 0.0
        %4012 = vmatpush1.msra.mxu0 0.0
        %4013 = vmatprep.subr.mxu0 0.0
        %4014 = vmatpush1.msra.mxu0 0.0
        %4015 = vmatprep.subr.mxu0 0.0
        %4016 = vmatpush1.msra.mxu0 0.0
        %4017 = vmatprep.subr.mxu0 0.0
        %4018 = vmatpush1.msra.mxu0 0.0
        %4019 = vmatprep.subr.mxu0 0.0
        %4020 = vmatpush1.msra.mxu0 0.0
        %4021 = vmatprep.subr.mxu0 0.0
        %4022 = vmatpush1.msra.mxu0 0.0
        %4023 = vmatprep.subr.mxu0 0.0
        %4024 = vmatpush1.msra.mxu0 0.0
        %4025 = vmatprep.subr.mxu0 0.0
        %4026 = vmatpush1.msra.mxu0 0.0
        %4027 = vmatprep.subr.mxu0 0.0
        %4028 = vmatpush1.msra.mxu0 0.0
        %4029 = vmatprep.subr.mxu0 0.0
        %4030 = vmatpush1.msra.mxu0 0.0
        %4031 = vmatprep.subr.mxu0 0.0
        %4032 = vmatpush1.msra.mxu0 0.0
        %4033 = vmatprep.subr.mxu0 0.0
        %4034 = vmatpush1.msra.mxu0 0.0
        %4035 = vmatprep.subr.mxu0 0.0
        %4036 = vmatpush1.msra.mxu0 0.0
        %4037 = vmatprep.subr.mxu0 0.0
        %4038 = vmatpush1.msra.mxu0 0.0
        %4039 = vmatprep.subr.mxu0 0.0
        %4040 = vmatpush1.msra.mxu0 0.0
        %4041 = vmatprep.subr.mxu0 0.0
        %4042 = vmatpush1.msra.mxu0 0.0
        %4043 = vmatprep.subr.mxu0 0.0
        %4044 = vmatpush1.msra.mxu0 0.0
        %4045 = vmatprep.subr.mxu0 0.0
        %4046 = vmatpush1.msra.mxu0 0.0
        %4047 = vmatprep.subr.mxu0 0.0
        %4048 = vmatpush1.msra.mxu0 0.0
        %4049 = vmatprep.subr.mxu0 0.0
        %4050 = vmatpush1.msra.mxu0 0.0
        %4051 = vmatprep.subr.mxu0 0.0
        %4052 = vmatpush1.msra.mxu0 0.0
        %4053 = vmatprep.mubr.f32.mxu0 0.0
        %4054 = vmatmul.mubr.f32.gmra.mrb[0].mxu0 %v3987
        %v4055 = vpop.f32.mrb[0].mxu0
        %v4056 = vadd.f32 0.0, %v4055
        %v4057 = vpop.f32.mrb[0].mxu0
        %4058 = vdwg.mxu0
        %v4060 = vsel %vm1423, %v3837, 0
        %v4063 = vsel %vm1423, %v2464, 0
        %v4066 = vsel %vm1423, %v2465, 0
        %v4069 = vsel %vm1423, %v2466, 0
        %v4072 = vsel %vm1423, %v2467, 0
        %4074 = vmatprep.subr.mxu0 0.0
        %4075 = vmatpush1.xpose.msra.mxu0 %v4063
        %4076 = vmatprep.subr.mxu0 0.0
        %4077 = vmatpush1.xpose.msra.mxu0 %v4066
        %4078 = vmatprep.subr.mxu0 0.0
        %4079 = vmatpush1.xpose.msra.mxu0 %v4069
        %4080 = vmatprep.subr.mxu0 0.0
        %4081 = vmatpush1.xpose.msra.mxu0 %v4072
        %4082 = vmatprep.subr.mxu0 0.0
        %4083 = vmatpush1.xpose.msra.mxu0 0.0
        %4084 = vmatprep.subr.mxu0 0.0
        %4085 = vmatpush1.xpose.msra.mxu0 0.0
        %4086 = vmatprep.subr.mxu0 0.0
        %4087 = vmatpush1.xpose.msra.mxu0 0.0
        %4088 = vmatprep.subr.mxu0 0.0
        %4089 = vmatpush1.xpose.msra.mxu0 0.0
        %4090 = vmatprep.subr.mxu0 0.0
        %4091 = vmatpush1.xpose.msra.mxu0 0.0
        %4092 = vmatprep.subr.mxu0 0.0
        %4093 = vmatpush1.xpose.msra.mxu0 0.0
        %4094 = vmatprep.subr.mxu0 0.0
        %4095 = vmatpush1.xpose.msra.mxu0 0.0
        %4096 = vmatprep.subr.mxu0 0.0
        %4097 = vmatpush1.xpose.msra.mxu0 0.0
        %4098 = vmatprep.subr.mxu0 0.0
        %4099 = vmatpush1.xpose.msra.mxu0 0.0
        %4100 = vmatprep.subr.mxu0 0.0
        %4101 = vmatpush1.xpose.msra.mxu0 0.0
        %4102 = vmatprep.subr.mxu0 0.0
        %4103 = vmatpush1.xpose.msra.mxu0 0.0
        %4104 = vmatprep.subr.mxu0 0.0
        %4105 = vmatpush1.xpose.msra.mxu0 0.0
        %4106 = vmatprep.subr.mxu0 0.0
        %4107 = vmatpush1.xpose.msra.mxu0 0.0
        %4108 = vmatprep.subr.mxu0 0.0
        %4109 = vmatpush1.xpose.msra.mxu0 0.0
        %4110 = vmatprep.subr.mxu0 0.0
        %4111 = vmatpush1.xpose.msra.mxu0 0.0
        %4112 = vmatprep.subr.mxu0 0.0
        %4113 = vmatpush1.xpose.msra.mxu0 0.0
        %4114 = vmatprep.subr.mxu0 0.0
        %4115 = vmatpush1.xpose.msra.mxu0 0.0
        %4116 = vmatprep.subr.mxu0 0.0
        %4117 = vmatpush1.xpose.msra.mxu0 0.0
        %4118 = vmatprep.subr.mxu0 0.0
        %4119 = vmatpush1.xpose.msra.mxu0 0.0
        %4120 = vmatprep.subr.mxu0 0.0
        %4121 = vmatpush1.xpose.msra.mxu0 0.0
        %4122 = vmatprep.subr.mxu0 0.0
        %4123 = vmatpush1.xpose.msra.mxu0 0.0
        %4124 = vmatprep.subr.mxu0 0.0
        %4125 = vmatpush1.xpose.msra.mxu0 0.0
        %4126 = vmatprep.subr.mxu0 0.0
        %4127 = vmatpush1.xpose.msra.mxu0 0.0
        %4128 = vmatprep.subr.mxu0 0.0
        %4129 = vmatpush1.xpose.msra.mxu0 0.0
        %4130 = vmatprep.subr.mxu0 0.0
        %4131 = vmatpush1.xpose.msra.mxu0 0.0
        %4132 = vmatprep.subr.mxu0 0.0
        %4133 = vmatpush1.xpose.msra.mxu0 0.0
        %4134 = vmatprep.subr.mxu0 0.0
        %4135 = vmatpush1.xpose.msra.mxu0 0.0
        %4136 = vmatprep.subr.mxu0 0.0
        %4137 = vmatpush1.xpose.msra.mxu0 0.0
        %4138 = vmatprep.mubr.f32.mxu0 0.0
        %4139 = vmatmul.mubr.f32.gmra.mrb[0].mxu0 %v4060
        %v4140 = vpop.f32.mrb[0].mxu0
        %v4141 = vadd.f32 0.0, %v4140
        %v4142 = vpop.f32.mrb[0].mxu0
        %4143 = vdwg.mxu0
        %v4145 = vsel %vm1423, %v3910, 0
        %v4148 = vsel %vm1423, %v2468, 0
        %v4151 = vsel %vm1423, %v2469, 0
        %v4154 = vsel %vm1423, %v2470, 0
        %v4157 = vsel %vm1423, %v2471, 0
        %4159 = vmatprep.subr.mxu0 0.0
        %4160 = vmatpush1.xpose.msra.mxu0 %v4148
        %4161 = vmatprep.subr.mxu0 0.0
        %4162 = vmatpush1.xpose.msra.mxu0 %v4151
        %4163 = vmatprep.subr.mxu0 0.0
        %4164 = vmatpush1.xpose.msra.mxu0 %v4154
        %4165 = vmatprep.subr.mxu0 0.0
        %4166 = vmatpush1.xpose.msra.mxu0 %v4157
        %4167 = vmatprep.subr.mxu0 0.0
        %4168 = vmatpush1.xpose.msra.mxu0 0.0
        %4169 = vmatprep.subr.mxu0 0.0
        %4170 = vmatpush1.xpose.msra.mxu0 0.0
        %4171 = vmatprep.subr.mxu0 0.0
        %4172 = vmatpush1.xpose.msra.mxu0 0.0
        %4173 = vmatprep.subr.mxu0 0.0
        %4174 = vmatpush1.xpose.msra.mxu0 0.0
        %4175 = vmatprep.subr.mxu0 0.0
        %4176 = vmatpush1.xpose.msra.mxu0 0.0
        %4177 = vmatprep.subr.mxu0 0.0
        %4178 = vmatpush1.xpose.msra.mxu0 0.0
        %4179 = vmatprep.subr.mxu0 0.0
        %4180 = vmatpush1.xpose.msra.mxu0 0.0
        %4181 = vmatprep.subr.mxu0 0.0
        %4182 = vmatpush1.xpose.msra.mxu0 0.0
        %4183 = vmatprep.subr.mxu0 0.0
        %4184 = vmatpush1.xpose.msra.mxu0 0.0
        %4185 = vmatprep.subr.mxu0 0.0
        %4186 = vmatpush1.xpose.msra.mxu0 0.0
        %4187 = vmatprep.subr.mxu0 0.0
        %4188 = vmatpush1.xpose.msra.mxu0 0.0
        %4189 = vmatprep.subr.mxu0 0.0
        %4190 = vmatpush1.xpose.msra.mxu0 0.0
        %4191 = vmatprep.subr.mxu0 0.0
        %4192 = vmatpush1.xpose.msra.mxu0 0.0
        %4193 = vmatprep.subr.mxu0 0.0
        %4194 = vmatpush1.xpose.msra.mxu0 0.0
        %4195 = vmatprep.subr.mxu0 0.0
        %4196 = vmatpush1.xpose.msra.mxu0 0.0
        %4197 = vmatprep.subr.mxu0 0.0
        %4198 = vmatpush1.xpose.msra.mxu0 0.0
        %4199 = vmatprep.subr.mxu0 0.0
        %4200 = vmatpush1.xpose.msra.mxu0 0.0
        %4201 = vmatprep.subr.mxu0 0.0
        %4202 = vmatpush1.xpose.msra.mxu0 0.0
        %4203 = vmatprep.subr.mxu0 0.0
        %4204 = vmatpush1.xpose.msra.mxu0 0.0
        %4205 = vmatprep.subr.mxu0 0.0
        %4206 = vmatpush1.xpose.msra.mxu0 0.0
        %4207 = vmatprep.subr.mxu0 0.0
        %4208 = vmatpush1.xpose.msra.mxu0 0.0
        %4209 = vmatprep.subr.mxu0 0.0
        %4210 = vmatpush1.xpose.msra.mxu0 0.0
        %4211 = vmatprep.subr.mxu0 0.0
        %4212 = vmatpush1.xpose.msra.mxu0 0.0
        %4213 = vmatprep.subr.mxu0 0.0
        %4214 = vmatpush1.xpose.msra.mxu0 0.0
        %4215 = vmatprep.subr.mxu0 0.0
        %4216 = vmatpush1.xpose.msra.mxu0 0.0
        %4217 = vmatprep.subr.mxu0 0.0
        %4218 = vmatpush1.xpose.msra.mxu0 0.0
        %4219 = vmatprep.subr.mxu0 0.0
        %4220 = vmatpush1.xpose.msra.mxu0 0.0
        %4221 = vmatprep.subr.mxu0 0.0
        %4222 = vmatpush1.xpose.msra.mxu0 0.0
        %4223 = vmatprep.mubr.f32.mxu0 0.0
        %4224 = vmatmul.mubr.f32.gmra.mrb[0].mxu0 %v4145
        %v4225 = vpop.f32.mrb[0].mxu0
        %v4226 = vadd.f32 0.0, %v4225
        %v4227 = vpop.f32.mrb[0].mxu0
        %4228 = vdwg.mxu0
        %v4230 = vsel %vm1423, %v3983, 0
        %v4233 = vsel %vm1423, %v2472, 0
        %v4236 = vsel %vm1423, %v2473, 0
        %v4239 = vsel %vm1423, %v2474, 0
        %v4242 = vsel %vm1423, %v2475, 0
        %4244 = vmatprep.subr.mxu0 0.0
        %4245 = vmatpush1.xpose.msra.mxu0 %v4233
        %4246 = vmatprep.subr.mxu0 0.0
        %4247 = vmatpush1.xpose.msra.mxu0 %v4236
        %4248 = vmatprep.subr.mxu0 0.0
        %4249 = vmatpush1.xpose.msra.mxu0 %v4239
        %4250 = vmatprep.subr.mxu0 0.0
        %4251 = vmatpush1.xpose.msra.mxu0 %v4242
        %4252 = vmatprep.subr.mxu0 0.0
        %4253 = vmatpush1.xpose.msra.mxu0 0.0
        %4254 = vmatprep.subr.mxu0 0.0
        %4255 = vmatpush1.xpose.msra.mxu0 0.0
        %4256 = vmatprep.subr.mxu0 0.0
        %4257 = vmatpush1.xpose.msra.mxu0 0.0
        %4258 = vmatprep.subr.mxu0 0.0
        %4259 = vmatpush1.xpose.msra.mxu0 0.0
        %4260 = vmatprep.subr.mxu0 0.0
        %4261 = vmatpush1.xpose.msra.mxu0 0.0
        %4262 = vmatprep.subr.mxu0 0.0
        %4263 = vmatpush1.xpose.msra.mxu0 0.0
        %4264 = vmatprep.subr.mxu0 0.0
        %4265 = vmatpush1.xpose.msra.mxu0 0.0
        %4266 = vmatprep.subr.mxu0 0.0
        %4267 = vmatpush1.xpose.msra.mxu0 0.0
        %4268 = vmatprep.subr.mxu0 0.0
        %4269 = vmatpush1.xpose.msra.mxu0 0.0
        %4270 = vmatprep.subr.mxu0 0.0
        %4271 = vmatpush1.xpose.msra.mxu0 0.0
        %4272 = vmatprep.subr.mxu0 0.0
        %4273 = vmatpush1.xpose.msra.mxu0 0.0
        %4274 = vmatprep.subr.mxu0 0.0
        %4275 = vmatpush1.xpose.msra.mxu0 0.0
        %4276 = vmatprep.subr.mxu0 0.0
        %4277 = vmatpush1.xpose.msra.mxu0 0.0
        %4278 = vmatprep.subr.mxu0 0.0
        %4279 = vmatpush1.xpose.msra.mxu0 0.0
        %4280 = vmatprep.subr.mxu0 0.0
        %4281 = vmatpush1.xpose.msra.mxu0 0.0
        %4282 = vmatprep.subr.mxu0 0.0
        %4283 = vmatpush1.xpose.msra.mxu0 0.0
        %4284 = vmatprep.subr.mxu0 0.0
        %4285 = vmatpush1.xpose.msra.mxu0 0.0
        %4286 = vmatprep.subr.mxu0 0.0
        %4287 = vmatpush1.xpose.msra.mxu0 0.0
        %4288 = vmatprep.subr.mxu0 0.0
        %4289 = vmatpush1.xpose.msra.mxu0 0.0
        %4290 = vmatprep.subr.mxu0 0.0
        %4291 = vmatpush1.xpose.msra.mxu0 0.0
        %4292 = vmatprep.subr.mxu0 0.0
        %4293 = vmatpush1.xpose.msra.mxu0 0.0
        %4294 = vmatprep.subr.mxu0 0.0
        %4295 = vmatpush1.xpose.msra.mxu0 0.0
        %4296 = vmatprep.subr.mxu0 0.0
        %4297 = vmatpush1.xpose.msra.mxu0 0.0
        %4298 = vmatprep.subr.mxu0 0.0
        %4299 = vmatpush1.xpose.msra.mxu0 0.0
        %4300 = vmatprep.subr.mxu0 0.0
        %4301 = vmatpush1.xpose.msra.mxu0 0.0
        %4302 = vmatprep.subr.mxu0 0.0
        %4303 = vmatpush1.xpose.msra.mxu0 0.0
        %4304 = vmatprep.subr.mxu0 0.0
        %4305 = vmatpush1.xpose.msra.mxu0 0.0
        %4306 = vmatprep.subr.mxu0 0.0
        %4307 = vmatpush1.xpose.msra.mxu0 0.0
        %4308 = vmatprep.mubr.f32.mxu0 0.0
        %4309 = vmatmul.mubr.f32.gmra.mrb[0].mxu0 %v4230
        %v4310 = vpop.f32.mrb[0].mxu0
        %v4311 = vadd.f32 0.0, %v4310
        %v4312 = vpop.f32.mrb[0].mxu0
        %4313 = vdwg.mxu0
        %v4315 = vsel %vm1423, %v4056, 0
        %v4318 = vsel %vm1423, %v2476, 0
        %v4321 = vsel %vm1423, %v2477, 0
        %v4324 = vsel %vm1423, %v2478, 0
        %v4327 = vsel %vm1423, %v2479, 0
        %4329 = vmatprep.subr.mxu0 0.0
        %4330 = vmatpush1.xpose.msra.mxu0 %v4318
        %4331 = vmatprep.subr.mxu0 0.0
        %4332 = vmatpush1.xpose.msra.mxu0 %v4321
        %4333 = vmatprep.subr.mxu0 0.0
        %4334 = vmatpush1.xpose.msra.mxu0 %v4324
        %4335 = vmatprep.subr.mxu0 0.0
        %4336 = vmatpush1.xpose.msra.mxu0 %v4327
        %4337 = vmatprep.subr.mxu0 0.0
        %4338 = vmatpush1.xpose.msra.mxu0 0.0
        %4339 = vmatprep.subr.mxu0 0.0
        %4340 = vmatpush1.xpose.msra.mxu0 0.0
        %4341 = vmatprep.subr.mxu0 0.0
        %4342 = vmatpush1.xpose.msra.mxu0 0.0
        %4343 = vmatprep.subr.mxu0 0.0
        %4344 = vmatpush1.xpose.msra.mxu0 0.0
        %4345 = vmatprep.subr.mxu0 0.0
        %4346 = vmatpush1.xpose.msra.mxu0 0.0
        %4347 = vmatprep.subr.mxu0 0.0
        %4348 = vmatpush1.xpose.msra.mxu0 0.0
        %4349 = vmatprep.subr.mxu0 0.0
        %4350 = vmatpush1.xpose.msra.mxu0 0.0
        %4351 = vmatprep.subr.mxu0 0.0
        %4352 = vmatpush1.xpose.msra.mxu0 0.0
        %4353 = vmatprep.subr.mxu0 0.0
        %4354 = vmatpush1.xpose.msra.mxu0 0.0
        %4355 = vmatprep.subr.mxu0 0.0
        %4356 = vmatpush1.xpose.msra.mxu0 0.0
        %4357 = vmatprep.subr.mxu0 0.0
        %4358 = vmatpush1.xpose.msra.mxu0 0.0
        %4359 = vmatprep.subr.mxu0 0.0
        %4360 = vmatpush1.xpose.msra.mxu0 0.0
        %4361 = vmatprep.subr.mxu0 0.0
        %4362 = vmatpush1.xpose.msra.mxu0 0.0
        %4363 = vmatprep.subr.mxu0 0.0
        %4364 = vmatpush1.xpose.msra.mxu0 0.0
        %4365 = vmatprep.subr.mxu0 0.0
        %4366 = vmatpush1.xpose.msra.mxu0 0.0
        %4367 = vmatprep.subr.mxu0 0.0
        %4368 = vmatpush1.xpose.msra.mxu0 0.0
        %4369 = vmatprep.subr.mxu0 0.0
        %4370 = vmatpush1.xpose.msra.mxu0 0.0
        %4371 = vmatprep.subr.mxu0 0.0
        %4372 = vmatpush1.xpose.msra.mxu0 0.0
        %4373 = vmatprep.subr.mxu0 0.0
        %4374 = vmatpush1.xpose.msra.mxu0 0.0
        %4375 = vmatprep.subr.mxu0 0.0
        %4376 = vmatpush1.xpose.msra.mxu0 0.0
        %4377 = vmatprep.subr.mxu0 0.0
        %4378 = vmatpush1.xpose.msra.mxu0 0.0
        %4379 = vmatprep.subr.mxu0 0.0
        %4380 = vmatpush1.xpose.msra.mxu0 0.0
        %4381 = vmatprep.subr.mxu0 0.0
        %4382 = vmatpush1.xpose.msra.mxu0 0.0
        %4383 = vmatprep.subr.mxu0 0.0
        %4384 = vmatpush1.xpose.msra.mxu0 0.0
        %4385 = vmatprep.subr.mxu0 0.0
        %4386 = vmatpush1.xpose.msra.mxu0 0.0
        %4387 = vmatprep.subr.mxu0 0.0
        %4388 = vmatpush1.xpose.msra.mxu0 0.0
        %4389 = vmatprep.subr.mxu0 0.0
        %4390 = vmatpush1.xpose.msra.mxu0 0.0
        %4391 = vmatprep.subr.mxu0 0.0
        %4392 = vmatpush1.xpose.msra.mxu0 0.0
        %4393 = vmatprep.mubr.f32.mxu0 0.0
        %4394 = vmatmul.mubr.f32.gmra.mrb[0].mxu0 %v4315
        %v4395 = vpop.f32.mrb[0].mxu0
        %v4396 = vadd.f32 0.0, %v4395
        %v4397 = vpop.f32.mrb[0].mxu0
        %4398 = vdwg.mxu0
        %v4399 = vsel %vm543, %v4141, 0.0
        %v4400 = vsel %vm543, %v4226, 0.0
        %v4401 = vadd.f32 %v4399, %v4400
        %v4402 = vsel %vm543, %v4311, 0.0
        %v4403 = vadd.f32 %v4401, %v4402
        %v4404 = vsel %vm543, %v4396, 0.0
        %v4405 = vadd.f32 %v4403, %v4404
        %v4407 = vlaneseq
        %v4408 = vshrl.u32 %v4407, 7
        %v4409 = vsub.s32 0, %v4408
        %v4410 = vrot.slane %v2480, %v4409
        %v4412 = vadd.f32 %v4405, %v4410
        %v4413 = vadd.f32 %v2451, %v4412
        %v4414 = vld [vmem:[%s13] sm:$0x7]
        %v4415 = vld [vmem:[%s14] sm:$0x7]
        %v4416 = vsel %vm543, %v4413, 0.0
        %4417 = vadd.xlane.f32.xlu0 %v4416
        %v4418 = vpop.xlane.xlu0 %4417
        %v4419 = vmul.f32 %v4418, %v2431
        %v4420 = vsub.f32 %v4413, %v4419
        %v4421 = vmul.f32 %v4420, %v4420
        %v4422 = vsel %vm543, %v4421, 0.0
        %4423 = vadd.xlane.f32.xlu0 %v4422
        %v4424 = vpop.xlane.xlu0 %4423
        %v4425 = vmul.f32 %v4424, %v2431
        %v4426 = vadd.f32 %v4425, 1e-05
        %v4427 = vrsqrt.pop %v4426
        %v4428 = vmul.f32 %v4420, %v4427
        %v4429 = vlaneseq
        %v4430 = vshrl.u32 %v4429, 7
        %v4431 = vsub.s32 1, %v4430
        %v4432 = vrot.slane %v4414, %v4431
        %v4433 = vmul.f32 %v4428, %v4432
        %v4434 = vlaneseq
        %v4435 = vshrl.u32 %v4434, 7
        %v4436 = vsub.s32 1, %v4435
        %v4437 = vrot.slane %v4415, %v4436
        %v4438 = vadd.f32 %v4433, %v4437
        %v4439 = vld [vmem:[%s9] sm:$0xff]
        %v4440 = vld [vmem:[%s9 + $0x8] sm:$0xff]
        %v4441 = vld [vmem:[%s9 + $0x10] sm:$0xff]
        %v4442 = vld [vmem:[%s9 + $0x18] sm:$0xff]
        %v4443 = vld [vmem:[%s10] sm:$0x1]
        %v4445 = vlaneseq
        %v4446 = vshrl.u32 %v4445, 7
        %v4447 = vsub.s32 0, %v4446
        %v4448 = vrot.slane %v4443, %v4447
        %v4451 = vsel %vm543, %v4438, 0
        %4453 = vmatprep.subr.mxu0 0.0
        %4454 = vmatpush1.msra.mxu0 %v4439
        %4455 = vmatprep.subr.mxu0 0.0
        %4456 = vmatpush1.msra.mxu0 %v4440
        %4457 = vmatprep.subr.mxu0 0.0
        %4458 = vmatpush1.msra.mxu0 %v4441
        %4459 = vmatprep.subr.mxu0 0.0
        %4460 = vmatpush1.msra.mxu0 %v4442
        %4461 = vmatprep.subr.mxu0 0.0
        %4462 = vmatpush1.msra.mxu0 0.0
        %4463 = vmatprep.subr.mxu0 0.0
        %4464 = vmatpush1.msra.mxu0 0.0
        %4465 = vmatprep.subr.mxu0 0.0
        %4466 = vmatpush1.msra.mxu0 0.0
        %4467 = vmatprep.subr.mxu0 0.0
        %4468 = vmatpush1.msra.mxu0 0.0
        %4469 = vmatprep.subr.mxu0 0.0
        %4470 = vmatpush1.msra.mxu0 0.0
        %4471 = vmatprep.subr.mxu0 0.0
        %4472 = vmatpush1.msra.mxu0 0.0
        %4473 = vmatprep.subr.mxu0 0.0
        %4474 = vmatpush1.msra.mxu0 0.0
        %4475 = vmatprep.subr.mxu0 0.0
        %4476 = vmatpush1.msra.mxu0 0.0
        %4477 = vmatprep.subr.mxu0 0.0
        %4478 = vmatpush1.msra.mxu0 0.0
        %4479 = vmatprep.subr.mxu0 0.0
        %4480 = vmatpush1.msra.mxu0 0.0
        %4481 = vmatprep.subr.mxu0 0.0
        %4482 = vmatpush1.msra.mxu0 0.0
        %4483 = vmatprep.subr.mxu0 0.0
        %4484 = vmatpush1.msra.mxu0 0.0
        %4485 = vmatprep.subr.mxu0 0.0
        %4486 = vmatpush1.msra.mxu0 0.0
        %4487 = vmatprep.subr.mxu0 0.0
        %4488 = vmatpush1.msra.mxu0 0.0
        %4489 = vmatprep.subr.mxu0 0.0
        %4490 = vmatpush1.msra.mxu0 0.0
        %4491 = vmatprep.subr.mxu0 0.0
        %4492 = vmatpush1.msra.mxu0 0.0
        %4493 = vmatprep.subr.mxu0 0.0
        %4494 = vmatpush1.msra.mxu0 0.0
        %4495 = vmatprep.subr.mxu0 0.0
        %4496 = vmatpush1.msra.mxu0 0.0
        %4497 = vmatprep.subr.mxu0 0.0
        %4498 = vmatpush1.msra.mxu0 0.0
        %4499 = vmatprep.subr.mxu0 0.0
        %4500 = vmatpush1.msra.mxu0 0.0
        %4501 = vmatprep.subr.mxu0 0.0
        %4502 = vmatpush1.msra.mxu0 0.0
        %4503 = vmatprep.subr.mxu0 0.0
        %4504 = vmatpush1.msra.mxu0 0.0
        %4505 = vmatprep.subr.mxu0 0.0
        %4506 = vmatpush1.msra.mxu0 0.0
        %4507 = vmatprep.subr.mxu0 0.0
        %4508 = vmatpush1.msra.mxu0 0.0
        %4509 = vmatprep.subr.mxu0 0.0
        %4510 = vmatpush1.msra.mxu0 0.0
        %4511 = vmatprep.subr.mxu0 0.0
        %4512 = vmatpush1.msra.mxu0 0.0
        %4513 = vmatprep.subr.mxu0 0.0
        %4514 = vmatpush1.msra.mxu0 0.0
        %4515 = vmatprep.subr.mxu0 0.0
        %4516 = vmatpush1.msra.mxu0 0.0
        %4517 = vmatprep.mubr.f32.mxu0 0.0
        %4518 = vmatmul.mubr.f32.gmra.mrb[0].mxu0 %v4451
        %v4519 = vpop.f32.mrb[0].mxu0
        %v4520 = vadd.f32 %v4448, %v4519
        %v4521 = vpop.f32.mrb[0].mxu0
        %4522 = vdwg.mxu0
        %v4523 = vmax.f32 %v4520, 0.0
        %v4524 = vld [vmem:[%s11] sm:$0xff]
        %v4525 = vld [vmem:[%s11 + $0x8] sm:$0xff]
        %v4526 = vld [vmem:[%s11 + $0x10] sm:$0xff]
        %v4527 = vld [vmem:[%s11 + $0x18] sm:$0xff]
        %v4528 = vld [vmem:[%s11 + $0x20] sm:$0xff]
        %v4529 = vld [vmem:[%s11 + $0x28] sm:$0xff]
        %v4530 = vld [vmem:[%s11 + $0x30] sm:$0xff]
        %v4531 = vld [vmem:[%s11 + $0x38] sm:$0xff]
        %v4532 = vld [vmem:[%s12] sm:$0x1]
        %v4534 = vlaneseq
        %v4535 = vshrl.u32 %v4534, 7
        %v4536 = vsub.s32 0, %v4535
        %v4537 = vrot.slane %v4532, %v4536
        %vm4539 = vcmask 523264
        %v4541 = vsel %vm4539, %v4523, 0
        %4543 = vmatprep.subr.mxu0 0.0
        %4544 = vmatpush1.msra.mxu0 %v4524
        %4545 = vmatprep.subr.mxu0 0.0
        %4546 = vmatpush1.msra.mxu0 %v4525
        %4547 = vmatprep.subr.mxu0 0.0
        %4548 = vmatpush1.msra.mxu0 %v4526
        %4549 = vmatprep.subr.mxu0 0.0
        %4550 = vmatpush1.msra.mxu0 %v4527
        %4551 = vmatprep.subr.mxu0 0.0
        %4552 = vmatpush1.msra.mxu0 %v4528
        %4553 = vmatprep.subr.mxu0 0.0
        %4554 = vmatpush1.msra.mxu0 %v4529
        %4555 = vmatprep.subr.mxu0 0.0
        %4556 = vmatpush1.msra.mxu0 %v4530
        %4557 = vmatprep.subr.mxu0 0.0
        %4558 = vmatpush1.msra.mxu0 %v4531
        %4559 = vmatprep.subr.mxu0 0.0
        %4560 = vmatpush1.msra.mxu0 0.0
        %4561 = vmatprep.subr.mxu0 0.0
        %4562 = vmatpush1.msra.mxu0 0.0
        %4563 = vmatprep.subr.mxu0 0.0
        %4564 = vmatpush1.msra.mxu0 0.0
        %4565 = vmatprep.subr.mxu0 0.0
        %4566 = vmatpush1.msra.mxu0 0.0
        %4567 = vmatprep.subr.mxu0 0.0
        %4568 = vmatpush1.msra.mxu0 0.0
        %4569 = vmatprep.subr.mxu0 0.0
        %4570 = vmatpush1.msra.mxu0 0.0
        %4571 = vmatprep.subr.mxu0 0.0
        %4572 = vmatpush1.msra.mxu0 0.0
        %4573 = vmatprep.subr.mxu0 0.0
        %4574 = vmatpush1.msra.mxu0 0.0
        %4575 = vmatprep.subr.mxu0 0.0
        %4576 = vmatpush1.msra.mxu0 0.0
        %4577 = vmatprep.subr.mxu0 0.0
        %4578 = vmatpush1.msra.mxu0 0.0
        %4579 = vmatprep.subr.mxu0 0.0
        %4580 = vmatpush1.msra.mxu0 0.0
        %4581 = vmatprep.subr.mxu0 0.0
        %4582 = vmatpush1.msra.mxu0 0.0
        %4583 = vmatprep.subr.mxu0 0.0
        %4584 = vmatpush1.msra.mxu0 0.0
        %4585 = vmatprep.subr.mxu0 0.0
        %4586 = vmatpush1.msra.mxu0 0.0
        %4587 = vmatprep.subr.mxu0 0.0
        %4588 = vmatpush1.msra.mxu0 0.0
        %4589 = vmatprep.subr.mxu0 0.0
        %4590 = vmatpush1.msra.mxu0 0.0
        %4591 = vmatprep.subr.mxu0 0.0
        %4592 = vmatpush1.msra.mxu0 0.0
        %4593 = vmatprep.subr.mxu0 0.0
        %4594 = vmatpush1.msra.mxu0 0.0
        %4595 = vmatprep.subr.mxu0 0.0
        %4596 = vmatpush1.msra.mxu0 0.0
        %4597 = vmatprep.subr.mxu0 0.0
        %4598 = vmatpush1.msra.mxu0 0.0
        %4599 = vmatprep.subr.mxu0 0.0
        %4600 = vmatpush1.msra.mxu0 0.0
        %4601 = vmatprep.subr.mxu0 0.0
        %4602 = vmatpush1.msra.mxu0 0.0
        %4603 = vmatprep.subr.mxu0 0.0
        %4604 = vmatpush1.msra.mxu0 0.0
        %4605 = vmatprep.subr.mxu0 0.0
        %4606 = vmatpush1.msra.mxu0 0.0
        %4607 = vmatprep.mubr.f32.mxu0 0.0
        %4608 = vmatmul.mubr.f32.gmra.mrb[0].mxu0 %v4541
        %v4609 = vpop.f32.mrb[0].mxu0
        %v4610 = vadd.f32 %v4537, %v4609
        %v4611 = vpop.f32.mrb[0].mxu0
        %4612 = vdwg.mxu0
        %v4613 = vadd.f32 %v4438, %v4610
        %v4614 = vsel %vm543, %v4613, 0.0
        %4615 = vadd.xlane.f32.xlu0 %v4614
        %v4616 = vpop.xlane.xlu0 %4615
        %v4617 = vmul.f32 %v4616, %v2431
        %v4618 = vsub.f32 %v4613, %v4617
        %v4619 = vmul.f32 %v4618, %v4618
        %v4620 = vsel %vm543, %v4619, 0.0
        %4621 = vadd.xlane.f32.xlu0 %v4620
        %v4622 = vpop.xlane.xlu0 %4621
        %v4623 = vmul.f32 %v4622, %v2431
        %v4624 = vadd.f32 %v4623, 1e-05
        %v4625 = vrsqrt.pop %v4624
        %v4626 = vmul.f32 %v4618, %v4625
        %v4627 = vlaneseq
        %v4628 = vshrl.u32 %v4627, 7
        %v4629 = vsub.s32 2, %v4628
        %v4630 = vrot.slane %v4414, %v4629
        %v4631 = vmul.f32 %v4626, %v4630
        %v4632 = vlaneseq
        %v4633 = vshrl.u32 %v4632, 7
        %v4634 = vsub.s32 2, %v4633
        %v4635 = vrot.slane %v4415, %v4634
        %v4636 = vadd.f32 %v4631, %v4635
        %4637 = vst.msk [vmem:[%s500] sm:$0xff] %vm543, %v4636
        %s4638 = sand.u32 %s362, 1
        %s4639 = scalar_lea.sflag [#allocation3], %s4638
        %s4640 = sand.u32 %s362, 1
        %s4641 = smul.addr %s4640, 8
        %s4642 = scalar_lea.vmem [#allocation2], %s4641
        // Predicated region
        $region81: #{tpu_custom_call.1} parent=79 // pred_check
          %p4643 = pneg %p372
        $region82: #{tpu_custom_call.1} parent=79 // pred_check_branch
          %4645 = sbr.rel (%p4643) target = $region84
        $region83: #{tpu_custom_call.1} parent=79 // pred_region
          %s4647 = ssub.s32 128, 128
          %4648 = vsyncadd %s4639, %s4647
          %s4649 = smul.addr %s29, 128
          %s4650 = scalar_lea.hbm %s15, %s4649
          %s4652 = sshll.u32 %s4642, 4
          %s4653 = int_to_ptr.vmem [resolvable:$true] %s4652
          %4655 = dma.vmem_to_hbm [thread:$0]  %s4653, 128, %s4650, %s4639
        $region84: #{tpu_custom_call.1} parent=79 // pred_fallthru
          _
      $region80: #{tpu_custom_call.1} parent=5 // pred_fallthru
        _
      %p4656 = scmp.le.s32.totalorder 2, %s24
      // Predicated region
      $region85: #{tpu_custom_call.1} parent=5 // pred_check
        %p4657 = pneg %p4656
      $region86: #{tpu_custom_call.1} parent=5 // pred_check_branch
        %4659 = sbr.rel (%p4657) target = $region88
      $region87: #{tpu_custom_call.1} parent=5 // pred_region
        %s4660 = ssub.s32 %s24, 2
        // Predicated region
        $region89: #{tpu_custom_call.1} parent=87 // pred_check
          %p4661 = pneg %p378
        $region90: #{tpu_custom_call.1} parent=87 // pred_check_branch
          %4663 = sbr.rel (%p4661) target = $region92
        $region91: #{tpu_custom_call.1} parent=87 // pred_region
          %s4664 = sand.u32 %s363, 1
          %s4665 = scalar_lea.sflag [#allocation3], %s4664
          %s4666 = sand.u32 %s363, 1
          %s4667 = smul.addr %s4666, 8
          %s4668 = scalar_lea.vmem [#allocation2], %s4667
          %4669 = dma.done %s4665, 128
        $region92: #{tpu_custom_call.1} parent=87 // pred_fallthru
          _
      $region88: #{tpu_custom_call.1} parent=5 // pred_fallthru
        _
    $region6: #{tpu_custom_call.1} parent=1 // loop_footer
      %s28 = sadd.s32 1, %s24
    $region7: #{tpu_custom_call.1} parent=1 // loop_footer_branch
      %23 = sbr.rel target = $region3
    $region8: #{tpu_custom_call.1} parent=1 // loop_exit
      _
    %4670 = vsyncpa [#allocation3], 1
    %s4671 = scalar_lea.sflag [#allocation3], 1
    %4672 = vsyncpa %s4671, 1

</llo_original>
